<compile_context>
chip_gen: v5e
topology: v5e:2x2
jax: 0.10.0
libtpu: 0.0.40
codegen_flags: <defaults>
</compile_context>

<pallas_src>
import functools

import jax
import jax.numpy as jnp
import numpy as np
from jax.experimental import pallas as pl
from jax.experimental.pallas import tpu as pltpu

EPS = 1e-6


def _layernorm(x, a, b):
    mean = jnp.mean(x, axis=-1, keepdims=True)
    var = jnp.mean((x - mean) ** 2, axis=-1, keepdims=True)
    return (x - mean) * jax.lax.rsqrt(var + EPS) * a + b


def _mha(q, k, v, mask, num_heads, scale):
    """Multi-head attention on one batch element, heads batched on the MXU.

    q: [Sq, D] f32, k/v: [Skv, D] f32, mask: bool broadcastable to [H, Sq, Skv].
    Returns [Sq, D] f32.
    """
    Sq, D = q.shape
    Skv = k.shape[0]
    dk = D // num_heads
    bf16 = jnp.bfloat16

    # Split heads with static lane slices, stack into a leading batch dim.
    qh = jnp.stack([q[:, h * dk:(h + 1) * dk] for h in range(num_heads)],
                   axis=0).astype(bf16)           # [H, Sq, dk]
    kh = jnp.stack([k[:, h * dk:(h + 1) * dk] for h in range(num_heads)],
                   axis=0).astype(bf16)           # [H, Skv, dk]
    vh = jnp.stack([v[:, h * dk:(h + 1) * dk] for h in range(num_heads)],
                   axis=0).astype(bf16)           # [H, Skv, dk]

    # One batched MXU matmul over all heads, f32 accumulation.
    scores = jnp.einsum("hqd,hkd->hqk", qh, kh,
                        preferred_element_type=jnp.float32) * scale
    scores = jnp.where(mask, scores, jnp.float32(-1e9))
    scores = scores - jnp.max(scores, axis=-1, keepdims=True)
    p = jnp.exp(scores)
    p = p * pl.reciprocal(jnp.sum(p, axis=-1, keepdims=True), approx=True)

    ctx = jnp.einsum("hqk,hkd->hqd", p.astype(bf16), vh,
                     preferred_element_type=jnp.float32)   # [H, Sq, dk]
    return jnp.concatenate([ctx[h] for h in range(num_heads)], axis=-1)


def decoder_layer_kernel(
        x_ref, mem_ref, src_mask_ref,
        # self-attention sublayer params
        ln0_a_ref, ln0_b_ref, wqkv_ref, bqkv_ref, wo0_ref, bo0_ref,
        # source (cross) attention sublayer params
        ln1_a_ref, ln1_b_ref, wq1_ref, bq1_ref, wkv_ref, bkv_ref,
        wo1_ref, bo1_ref,
        # feed-forward sublayer params
        ln2_a_ref, ln2_b_ref, w1_ref, b1_ref, w2_ref, b2_ref,
        out_ref, *, num_heads):
    bf16 = jnp.bfloat16
    x = x_ref[0]                          # [Sq, D]  f32
    mem = mem_ref[0]                      # [Skv, D] f32
    src_keep = src_mask_ref[0] > 0.0      # [1, Skv] key-padding mask

    Sq, D = x.shape
    dk = D // num_heads
    scale = float(dk) ** -0.5

    # ---- sublayer 0: pre-LN -> causal self-attention -> residual -----------
    xn = _layernorm(x, ln0_a_ref[...], ln0_b_ref[...])
    qkv = jnp.dot(xn.astype(bf16), wqkv_ref[...],
                  preferred_element_type=jnp.float32) + bqkv_ref[...]
    q, k, v = qkv[:, :D], qkv[:, D:2 * D], qkv[:, 2 * D:]
    row = jax.lax.broadcasted_iota(jnp.int32, (Sq, Sq), 0)
    col = jax.lax.broadcasted_iota(jnp.int32, (Sq, Sq), 1)
    causal = row >= col                   # generated in-kernel; no mask DMA
    ctx = _mha(q, k, v, causal, num_heads, scale)
    x = x + (jnp.dot(ctx.astype(bf16), wo0_ref[...],
                     preferred_element_type=jnp.float32) + bo0_ref[...])

    # ---- sublayer 1: pre-LN -> cross attention over memory -> residual -----
    xn = _layernorm(x, ln1_a_ref[...], ln1_b_ref[...])
    q1 = jnp.dot(xn.astype(bf16), wq1_ref[...],
                 preferred_element_type=jnp.float32) + bq1_ref[...]
    kv = jnp.dot(mem.astype(bf16), wkv_ref[...],
                 preferred_element_type=jnp.float32) + bkv_ref[...]
    k1, v1 = kv[:, :D], kv[:, D:]
    ctx1 = _mha(q1, k1, v1, src_keep, num_heads, scale)
    x = x + (jnp.dot(ctx1.astype(bf16), wo1_ref[...],
                     preferred_element_type=jnp.float32) + bo1_ref[...])

    # ---- sublayer 2: pre-LN -> FFN -> residual ------------------------------
    xn = _layernorm(x, ln2_a_ref[...], ln2_b_ref[...])
    h = jnp.dot(xn.astype(bf16), w1_ref[...],
                preferred_element_type=jnp.float32) + b1_ref[...]
    h = jnp.maximum(h, 0.0)
    y = jnp.dot(h.astype(bf16), w2_ref[...],
                preferred_element_type=jnp.float32) + b2_ref[...]
    out_ref[0] = x + y


def decoder_layer(x, memory, source_pad_mask, params, *, num_heads):
    """Fused decoder layer.

    x:               [B, Sq, D]  f32
    memory:          [B, Skv, D] f32 (encoder output)
    source_pad_mask: [B, 1, Skv] f32, 1 = keep / 0 = masked key position.
    Target mask is causal and generated in-kernel.
    """
    B, Sq, D = x.shape
    Skv = memory.shape[1]
    bf16 = jnp.bfloat16

    sa = params["self_attn"]
    ca = params["src_attn"]
    ff = params["ffn"]

    # Fuse Q/K/V (self) and K/V (cross) projections; store matmul weights bf16.
    wqkv = jnp.concatenate([sa[2], sa[4], sa[6]], axis=1).astype(bf16)  # [D,3D]
    bqkv = jnp.concatenate([sa[3], sa[5], sa[7]], axis=1)               # [1,3D]
    wo0, bo0 = sa[8].astype(bf16), sa[9]
    ln0_a, ln0_b = sa[0], sa[1]

    wq1, bq1 = ca[2].astype(bf16), ca[3]
    wkv = jnp.concatenate([ca[4], ca[6]], axis=1).astype(bf16)          # [D,2D]
    bkv = jnp.concatenate([ca[5], ca[7]], axis=1)                       # [1,2D]
    wo1, bo1 = ca[8].astype(bf16), ca[9]
    ln1_a, ln1_b = ca[0], ca[1]

    ln2_a, ln2_b, w1, b1, w2, b2 = ff
    w1 = w1.astype(bf16)
    w2 = w2.astype(bf16)
    D_ff = w1.shape[1]

    def rep(shape):  # replicated (non-batched) operand
        return pl.BlockSpec(shape, lambda b: (0,) * len(shape))

    grid_spec = pltpu.PrefetchScalarGridSpec(
        num_scalar_prefetch=0,
        grid=(B,),
        in_specs=[
            pl.BlockSpec((1, Sq, D), lambda b: (b, 0, 0)),     # x
            pl.BlockSpec((1, Skv, D), lambda b: (b, 0, 0)),    # memory
            pl.BlockSpec((1, 1, Skv), lambda b: (b, 0, 0)),    # src pad mask
            rep((1, D)), rep((1, D)),                          # LN0 a, b
            rep((D, 3 * D)), rep((1, 3 * D)),                  # Wqkv, bqkv
            rep((D, D)), rep((1, D)),                          # Wo0, bo0
            rep((1, D)), rep((1, D)),                          # LN1 a, b
            rep((D, D)), rep((1, D)),                          # Wq1, bq1
            rep((D, 2 * D)), rep((1, 2 * D)),                  # Wkv, bkv
            rep((D, D)), rep((1, D)),                          # Wo1, bo1
            rep((1, D)), rep((1, D)),                          # LN2 a, b
            rep((D, D_ff)), rep((1, D_ff)),                    # W1, b1
            rep((D_ff, D)), rep((1, D)),                       # W2, b2
        ],
        out_specs=pl.BlockSpec((1, Sq, D), lambda b: (b, 0, 0)),
    )

    kern = functools.partial(decoder_layer_kernel, num_heads=num_heads)
    return pl.pallas_call(
        kern,
        out_shape=jax.ShapeDtypeStruct((B, Sq, D), jnp.float32),
        grid_spec=grid_spec,
        compiler_params=pltpu.CompilerParams(
            dimension_semantics=("parallel",)),
    )(x, memory, source_pad_mask,
      ln0_a, ln0_b, wqkv, bqkv, wo0, bo0,
      ln1_a, ln1_b, wq1, bq1, wkv, bkv, wo1, bo1,
      ln2_a, ln2_b, w1, b1, w2, b2)


# ---------------------------------------------------------------------------
# Pure-JAX (f32) reference for verification
# ---------------------------------------------------------------------------
def _ref_mha(xq, xkv, mask, p, num_heads):
    _, _, wq, bq, wk, bk, wv, bv, wo, bo = p
    q = xq @ wq + bq
    k = xkv @ wk + bk
    v = xkv @ wv + bv
    B, Sq, D = q.shape
    Skv = k.shape[1]
    d_k = D // num_heads
    q = q.reshape(B, Sq, num_heads, d_k).transpose(0, 2, 1, 3)
    k = k.reshape(B, Skv, num_heads, d_k).transpose(0, 2, 1, 3)
    v = v.reshape(B, Skv, num_heads, d_k).transpose(0, 2, 1, 3)
    scores = jnp.einsum("bhqd,bhkd->bhqk", q, k) / np.sqrt(d_k)
    scores = jnp.where(mask[:, None] > 0, scores, -1e9)
    attn = jax.nn.softmax(scores, axis=-1)
    ctx = jnp.einsum("bhqk,bhkd->bhqd", attn, v)
    ctx = ctx.transpose(0, 2, 1, 3).reshape(B, Sq, D)
    return ctx @ wo + bo


def ref_decoder_layer(x, memory, source_pad_mask, params, *, num_heads):
    B, Sq, D = x.shape
    Skv = memory.shape[1]
    target_mask = jnp.broadcast_to(jnp.tril(jnp.ones((Sq, Sq), jnp.float32)),
                                   (B, Sq, Sq))
    source_mask = jnp.broadcast_to(source_pad_mask, (B, Sq, Skv))

    p = params["self_attn"]
    xn = _layernorm(x, p[0], p[1])
    x = x + _ref_mha(xn, xn, target_mask, p, num_heads)
    p = params["src_attn"]
    x = x + _ref_mha(_layernorm(x, p[0], p[1]), memory, source_mask, p,
                     num_heads)
    ln_a, ln_b, w1, b1, w2, b2 = params["ffn"]
    xn = _layernorm(x, ln_a, ln_b)
    return x + (jnp.maximum(xn @ w1 + b1, 0.0) @ w2 + b2)


# ---------------------------------------------------------------------------
# Parameter init + driver
# ---------------------------------------------------------------------------
def _init_linear(key, d_in, d_out):
    k1, k2 = jax.random.split(key)
    w = jax.random.normal(k1, (d_in, d_out), jnp.float32) / np.sqrt(d_in)
    b = 0.01 * jax.random.normal(k2, (1, d_out), jnp.float32)
    return w, b


def _init_attn_params(key, d_model):
    ks = jax.random.split(key, 4)
    ln_a = jnp.ones((1, d_model), jnp.float32)
    ln_b = jnp.zeros((1, d_model), jnp.float32)
    wq, bq = _init_linear(ks[0], d_model, d_model)
    wk, bk = _init_linear(ks[1], d_model, d_model)
    wv, bv = _init_linear(ks[2], d_model, d_model)
    wo, bo = _init_linear(ks[3], d_model, d_model)
    return (ln_a, ln_b, wq, bq, wk, bk, wv, bv, wo, bo)


def _init_ffn_params(key, d_model, d_ff):
    k1, k2 = jax.random.split(key)
    ln_a = jnp.ones((1, d_model), jnp.float32)
    ln_b = jnp.zeros((1, d_model), jnp.float32)
    w1, b1 = _init_linear(k1, d_model, d_ff)
    w2, b2 = _init_linear(k2, d_ff, d_model)
    return (ln_a, ln_b, w1, b1, w2, b2)


if __name__ == "__main__":
    # Small but lane-aligned shapes: d_model multiple of 128.
    B, S_TGT, S_SRC, D, H, D_FF = 2, 16, 8, 128, 4, 256

    root = jax.random.PRNGKey(0)
    kx, km, k_self, k_src, k_ffn = jax.random.split(root, 5)

    x = jax.random.normal(kx, (B, S_TGT, D), jnp.float32)
    memory = jax.random.normal(km, (B, S_SRC, D), jnp.float32)

    # Source key-padding mask [B, 1, S_SRC]: mask out the last 2 source
    # positions of batch element 1.  (Target mask is causal, built in-kernel.)
    src = np.ones((B, 1, S_SRC), np.float32)
    src[1, :, -2:] = 0.0
    source_pad_mask = jnp.asarray(src)

    params = {
        "self_attn": _init_attn_params(k_self, D),
        "src_attn": _init_attn_params(k_src, D),
        "ffn": _init_ffn_params(k_ffn, D, D_FF),
    }

    out = decoder_layer(x, memory, source_pad_mask, params, num_heads=H)
    out = jax.block_until_ready(out)

    ref = ref_decoder_layer(x, memory, source_pad_mask, params, num_heads=H)
    # bf16 matmuls + approx reciprocal in the kernel vs f32 reference.
    np.testing.assert_allclose(np.asarray(out), np.asarray(ref),
                               rtol=3e-2, atol=3e-2)

    print("KERNEL_OK")
</pallas_src>

<mosaic_0001>
module attributes {stable_mosaic.version = 11 : i64} {
  func.func @decoder_layer_kernel(%arg0: i32, %arg1: memref<1x16x128xf32, #tpu.memory_space<vmem>>, %arg2: memref<1x8x128xf32, #tpu.memory_space<vmem>>, %arg3: memref<1x1x8xf32, #tpu.memory_space<vmem>>, %arg4: memref<1x128xf32, #tpu.memory_space<vmem>>, %arg5: memref<1x128xf32, #tpu.memory_space<vmem>>, %arg6: memref<128x384xbf16, #tpu.memory_space<vmem>>, %arg7: memref<1x384xf32, #tpu.memory_space<vmem>>, %arg8: memref<128x128xbf16, #tpu.memory_space<vmem>>, %arg9: memref<1x128xf32, #tpu.memory_space<vmem>>, %arg10: memref<1x128xf32, #tpu.memory_space<vmem>>, %arg11: memref<1x128xf32, #tpu.memory_space<vmem>>, %arg12: memref<128x128xbf16, #tpu.memory_space<vmem>>, %arg13: memref<1x128xf32, #tpu.memory_space<vmem>>, %arg14: memref<128x256xbf16, #tpu.memory_space<vmem>>, %arg15: memref<1x256xf32, #tpu.memory_space<vmem>>, %arg16: memref<128x128xbf16, #tpu.memory_space<vmem>>, %arg17: memref<1x128xf32, #tpu.memory_space<vmem>>, %arg18: memref<1x128xf32, #tpu.memory_space<vmem>>, %arg19: memref<1x128xf32, #tpu.memory_space<vmem>>, %arg20: memref<128x256xbf16, #tpu.memory_space<vmem>>, %arg21: memref<1x256xf32, #tpu.memory_space<vmem>>, %arg22: memref<256x128xbf16, #tpu.memory_space<vmem>>, %arg23: memref<1x128xf32, #tpu.memory_space<vmem>>, %arg24: memref<1x16x128xf32, #tpu.memory_space<vmem>>) attributes {dimension_semantics = [#tpu.dimension_semantics<parallel>], iteration_bounds = array<i64: 2>, scalar_prefetch = 0 : i64, scratch_operands = 0 : i64, tpu.core_type = #tpu.core_type<tc>, window_params = [{transform_indices = @transform_0, window_bounds = array<i64: 1, 16, 128>}, {transform_indices = @transform_1, window_bounds = array<i64: 1, 8, 128>}, {transform_indices = @transform_2, window_bounds = array<i64: 1, 1, 8>}, {pipeline_mode = #tpu.pipeline_mode<synchronous>, transform_indices = @transform_3, window_bounds = array<i64: 1, 128>}, {pipeline_mode = #tpu.pipeline_mode<synchronous>, transform_indices = @transform_4, window_bounds = array<i64: 1, 128>}, {pipeline_mode = #tpu.pipeline_mode<synchronous>, transform_indices = @transform_5, window_bounds = array<i64: 128, 384>}, {pipeline_mode = #tpu.pipeline_mode<synchronous>, transform_indices = @transform_6, window_bounds = array<i64: 1, 384>}, {pipeline_mode = #tpu.pipeline_mode<synchronous>, transform_indices = @transform_7, window_bounds = array<i64: 128, 128>}, {pipeline_mode = #tpu.pipeline_mode<synchronous>, transform_indices = @transform_8, window_bounds = array<i64: 1, 128>}, {pipeline_mode = #tpu.pipeline_mode<synchronous>, transform_indices = @transform_9, window_bounds = array<i64: 1, 128>}, {pipeline_mode = #tpu.pipeline_mode<synchronous>, transform_indices = @transform_10, window_bounds = array<i64: 1, 128>}, {pipeline_mode = #tpu.pipeline_mode<synchronous>, transform_indices = @transform_11, window_bounds = array<i64: 128, 128>}, {pipeline_mode = #tpu.pipeline_mode<synchronous>, transform_indices = @transform_12, window_bounds = array<i64: 1, 128>}, {pipeline_mode = #tpu.pipeline_mode<synchronous>, transform_indices = @transform_13, window_bounds = array<i64: 128, 256>}, {pipeline_mode = #tpu.pipeline_mode<synchronous>, transform_indices = @transform_14, window_bounds = array<i64: 1, 256>}, {pipeline_mode = #tpu.pipeline_mode<synchronous>, transform_indices = @transform_15, window_bounds = array<i64: 128, 128>}, {pipeline_mode = #tpu.pipeline_mode<synchronous>, transform_indices = @transform_16, window_bounds = array<i64: 1, 128>}, {pipeline_mode = #tpu.pipeline_mode<synchronous>, transform_indices = @transform_17, window_bounds = array<i64: 1, 128>}, {pipeline_mode = #tpu.pipeline_mode<synchronous>, transform_indices = @transform_18, window_bounds = array<i64: 1, 128>}, {pipeline_mode = #tpu.pipeline_mode<synchronous>, transform_indices = @transform_19, window_bounds = array<i64: 128, 256>}, {pipeline_mode = #tpu.pipeline_mode<synchronous>, transform_indices = @transform_20, window_bounds = array<i64: 1, 256>}, {pipeline_mode = #tpu.pipeline_mode<synchronous>, transform_indices = @transform_21, window_bounds = array<i64: 256, 128>}, {pipeline_mode = #tpu.pipeline_mode<synchronous>, transform_indices = @transform_22, window_bounds = array<i64: 1, 128>}, {transform_indices = @transform_23, window_bounds = array<i64: 1, 16, 128>}]} {
    %c0 = arith.constant 0 : index
    %c0_0 = arith.constant 0 : index
    %c0_1 = arith.constant 0 : index
    %0 = vector.load %arg1[%c0, %c0_0, %c0_1] : memref<1x16x128xf32, #tpu.memory_space<vmem>>, vector<1x16x128xf32>
    %1 = vector.shape_cast %0 : vector<1x16x128xf32> to vector<16x128xf32>
    %c0_2 = arith.constant 0 : index
    %c0_3 = arith.constant 0 : index
    %c0_4 = arith.constant 0 : index
    %2 = vector.load %arg2[%c0_2, %c0_3, %c0_4] : memref<1x8x128xf32, #tpu.memory_space<vmem>>, vector<1x8x128xf32>
    %3 = vector.shape_cast %2 : vector<1x8x128xf32> to vector<8x128xf32>
    %c0_5 = arith.constant 0 : index
    %c0_6 = arith.constant 0 : index
    %c0_7 = arith.constant 0 : index
    %4 = vector.load %arg3[%c0_5, %c0_6, %c0_7] : memref<1x1x8xf32, #tpu.memory_space<vmem>>, vector<1x1x8xf32>
    %5 = vector.shape_cast %4 : vector<1x1x8xf32> to vector<1x8xf32>
    %cst = arith.constant 0.000000e+00 : f32
    %6 = vector.broadcast %cst : f32 to vector<1x8xf32>
    %7 = arith.cmpf ogt, %5, %6 : vector<1x8xf32>
    %c0_8 = arith.constant 0 : index
    %c0_9 = arith.constant 0 : index
    %8 = vector.load %arg4[%c0_8, %c0_9] : memref<1x128xf32, #tpu.memory_space<vmem>>, vector<1x128xf32>
    %c0_10 = arith.constant 0 : index
    %c0_11 = arith.constant 0 : index
    %9 = vector.load %arg5[%c0_10, %c0_11] : memref<1x128xf32, #tpu.memory_space<vmem>>, vector<1x128xf32>
    %cst_12 = arith.constant dense<0.000000e+00> : vector<16xf32>
    %10 = vector.multi_reduction <add>, %1, %cst_12 [1] : vector<16x128xf32> to vector<16xf32>
    %11 = vector.shape_cast %10 : vector<16xf32> to vector<16x1xf32>
    %cst_13 = arith.constant 1.280000e+02 : f32
    %12 = vector.broadcast %cst_13 : f32 to vector<16x1xf32>
    %13 = arith.divf %11, %12 : vector<16x1xf32>
    %14 = vector.broadcast %13 : vector<16x1xf32> to vector<16x128xf32>
    %15 = arith.subf %1, %14 : vector<16x128xf32>
    %16 = arith.mulf %15, %15 : vector<16x128xf32>
    %cst_14 = arith.constant dense<0.000000e+00> : vector<16xf32>
    %17 = vector.multi_reduction <add>, %16, %cst_14 [1] : vector<16x128xf32> to vector<16xf32>
    %18 = vector.shape_cast %17 : vector<16xf32> to vector<16x1xf32>
    %cst_15 = arith.constant 1.280000e+02 : f32
    %19 = vector.broadcast %cst_15 : f32 to vector<16x1xf32>
    %20 = arith.divf %18, %19 : vector<16x1xf32>
    %21 = vector.broadcast %13 : vector<16x1xf32> to vector<16x128xf32>
    %22 = arith.subf %1, %21 : vector<16x128xf32>
    %cst_16 = arith.constant 9.99999997E-7 : f32
    %23 = vector.broadcast %cst_16 : f32 to vector<16x1xf32>
    %24 = arith.addf %20, %23 : vector<16x1xf32>
    %25 = math.rsqrt %24 : vector<16x1xf32>
    %26 = vector.broadcast %25 : vector<16x1xf32> to vector<16x128xf32>
    %27 = arith.mulf %22, %26 : vector<16x128xf32>
    %28 = vector.broadcast %8 : vector<1x128xf32> to vector<16x128xf32>
    %29 = arith.mulf %27, %28 : vector<16x128xf32>
    %30 = vector.broadcast %9 : vector<1x128xf32> to vector<16x128xf32>
    %31 = arith.addf %29, %30 : vector<16x128xf32>
    %32 = arith.truncf %31 : vector<16x128xf32> to vector<16x128xbf16>
    %c0_17 = arith.constant 0 : index
    %c0_18 = arith.constant 0 : index
    %33 = vector.load %arg6[%c0_17, %c0_18] : memref<128x384xbf16, #tpu.memory_space<vmem>>, vector<128x384xbf16>
    %cst_19 = arith.constant dense<0.000000e+00> : vector<16x384xf32>
    %34 = tpu.matmul %32, %33, %cst_19 {dimension_numbers = #tpu.dot_dimension_numbers<[1], [0], [0], [1], [0, 0, 1, 1], [], []>} : vector<16x128xbf16>, vector<128x384xbf16>, vector<16x384xf32> -> vector<16x384xf32>
    %c0_20 = arith.constant 0 : index
    %c0_21 = arith.constant 0 : index
    %35 = vector.load %arg7[%c0_20, %c0_21] : memref<1x384xf32, #tpu.memory_space<vmem>>, vector<1x384xf32>
    %36 = vector.broadcast %35 : vector<1x384xf32> to vector<16x384xf32>
    %37 = arith.addf %34, %36 : vector<16x384xf32>
    %38 = vector.extract_strided_slice %37 {offsets = [0, 0], sizes = [16, 128], strides = [1, 1]} : vector<16x384xf32> to vector<16x128xf32>
    %39 = vector.extract_strided_slice %37 {offsets = [0, 128], sizes = [16, 128], strides = [1, 1]} : vector<16x384xf32> to vector<16x128xf32>
    %40 = vector.extract_strided_slice %37 {offsets = [0, 256], sizes = [16, 128], strides = [1, 1]} : vector<16x384xf32> to vector<16x128xf32>
    %41 = tpu.iota {dimensions = array<i32: 0>} : vector<16x16xi32>
    %42 = tpu.iota {dimensions = array<i32: 1>} : vector<16x16xi32>
    %43 = arith.cmpi sge, %41, %42 : vector<16x16xi32>
    %44 = vector.extract_strided_slice %38 {offsets = [0, 0], sizes = [16, 32], strides = [1, 1]} : vector<16x128xf32> to vector<16x32xf32>
    %45 = vector.extract_strided_slice %38 {offsets = [0, 32], sizes = [16, 32], strides = [1, 1]} : vector<16x128xf32> to vector<16x32xf32>
    %46 = vector.extract_strided_slice %38 {offsets = [0, 64], sizes = [16, 32], strides = [1, 1]} : vector<16x128xf32> to vector<16x32xf32>
    %47 = vector.extract_strided_slice %38 {offsets = [0, 96], sizes = [16, 32], strides = [1, 1]} : vector<16x128xf32> to vector<16x32xf32>
    %48 = vector.shape_cast %44 : vector<16x32xf32> to vector<1x16x32xf32>
    %49 = vector.shape_cast %45 : vector<16x32xf32> to vector<1x16x32xf32>
    %50 = vector.shape_cast %46 : vector<16x32xf32> to vector<1x16x32xf32>
    %51 = vector.shape_cast %47 : vector<16x32xf32> to vector<1x16x32xf32>
    %52 = tpu.concatenate %48, %49, %50, %51 in 0 : vector<1x16x32xf32>, vector<1x16x32xf32>, vector<1x16x32xf32>, vector<1x16x32xf32> -> vector<4x16x32xf32>
    %53 = arith.truncf %52 : vector<4x16x32xf32> to vector<4x16x32xbf16>
    %54 = vector.extract_strided_slice %39 {offsets = [0, 0], sizes = [16, 32], strides = [1, 1]} : vector<16x128xf32> to vector<16x32xf32>
    %55 = vector.extract_strided_slice %39 {offsets = [0, 32], sizes = [16, 32], strides = [1, 1]} : vector<16x128xf32> to vector<16x32xf32>
    %56 = vector.extract_strided_slice %39 {offsets = [0, 64], sizes = [16, 32], strides = [1, 1]} : vector<16x128xf32> to vector<16x32xf32>
    %57 = vector.extract_strided_slice %39 {offsets = [0, 96], sizes = [16, 32], strides = [1, 1]} : vector<16x128xf32> to vector<16x32xf32>
    %58 = vector.shape_cast %54 : vector<16x32xf32> to vector<1x16x32xf32>
    %59 = vector.shape_cast %55 : vector<16x32xf32> to vector<1x16x32xf32>
    %60 = vector.shape_cast %56 : vector<16x32xf32> to vector<1x16x32xf32>
    %61 = vector.shape_cast %57 : vector<16x32xf32> to vector<1x16x32xf32>
    %62 = tpu.concatenate %58, %59, %60, %61 in 0 : vector<1x16x32xf32>, vector<1x16x32xf32>, vector<1x16x32xf32>, vector<1x16x32xf32> -> vector<4x16x32xf32>
    %63 = arith.truncf %62 : vector<4x16x32xf32> to vector<4x16x32xbf16>
    %64 = vector.extract_strided_slice %40 {offsets = [0, 0], sizes = [16, 32], strides = [1, 1]} : vector<16x128xf32> to vector<16x32xf32>
    %65 = vector.extract_strided_slice %40 {offsets = [0, 32], sizes = [16, 32], strides = [1, 1]} : vector<16x128xf32> to vector<16x32xf32>
    %66 = vector.extract_strided_slice %40 {offsets = [0, 64], sizes = [16, 32], strides = [1, 1]} : vector<16x128xf32> to vector<16x32xf32>
    %67 = vector.extract_strided_slice %40 {offsets = [0, 96], sizes = [16, 32], strides = [1, 1]} : vector<16x128xf32> to vector<16x32xf32>
    %68 = vector.shape_cast %64 : vector<16x32xf32> to vector<1x16x32xf32>
    %69 = vector.shape_cast %65 : vector<16x32xf32> to vector<1x16x32xf32>
    %70 = vector.shape_cast %66 : vector<16x32xf32> to vector<1x16x32xf32>
    %71 = vector.shape_cast %67 : vector<16x32xf32> to vector<1x16x32xf32>
    %72 = tpu.concatenate %68, %69, %70, %71 in 0 : vector<1x16x32xf32>, vector<1x16x32xf32>, vector<1x16x32xf32>, vector<1x16x32xf32> -> vector<4x16x32xf32>
    %73 = arith.truncf %72 : vector<4x16x32xf32> to vector<4x16x32xbf16>
    "tpu.trace_start"() <{level = 10 : i32, message = "hqd,hkd->hqk"}> : () -> ()
    %cst_22 = arith.constant dense<0.000000e+00> : vector<4x16x16xf32>
    %74 = tpu.matmul %53, %63, %cst_22 {dimension_numbers = #tpu.dot_dimension_numbers<[2], [2], [1], [1], [0, 0, 0, 1, 1, 1], [0], [0]>} : vector<4x16x32xbf16>, vector<4x16x32xbf16>, vector<4x16x16xf32> -> vector<4x16x16xf32>
    "tpu.trace_stop"() : () -> ()
    %cst_23 = arith.constant 0.176776692 : f32
    %75 = vector.broadcast %cst_23 : f32 to vector<4x16x16xf32>
    %76 = arith.mulf %74, %75 : vector<4x16x16xf32>
    %cst_24 = arith.constant -1.000000e+09 : f32
    %77 = vector.shape_cast %43 : vector<16x16xi1> to vector<1x16x16xi1>
    %78 = vector.broadcast %77 : vector<1x16x16xi1> to vector<4x16x16xi1>
    %79 = vector.broadcast %cst_24 : f32 to vector<4x16x16xf32>
    %80 = arith.select %78, %76, %79 : vector<4x16x16xi1>, vector<4x16x16xf32>
    %cst_25 = arith.constant dense<0xFF800000> : vector<4x16xf32>
    %81 = vector.multi_reduction <maximumf>, %80, %cst_25 [2] : vector<4x16x16xf32> to vector<4x16xf32>
    %82 = vector.shape_cast %81 : vector<4x16xf32> to vector<4x16x1xf32>
    %83 = vector.broadcast %82 : vector<4x16x1xf32> to vector<4x16x16xf32>
    %84 = arith.subf %80, %83 : vector<4x16x16xf32>
    %85 = math.exp %84 : vector<4x16x16xf32>
    %cst_26 = arith.constant dense<0.000000e+00> : vector<4x16xf32>
    %86 = vector.multi_reduction <add>, %85, %cst_26 [2] : vector<4x16x16xf32> to vector<4x16xf32>
    %87 = vector.shape_cast %86 : vector<4x16xf32> to vector<4x16x1xf32>
    %88 = tpu.reciprocal %87 {approx = true} : vector<4x16x1xf32> -> vector<4x16x1xf32>
    %89 = vector.broadcast %88 : vector<4x16x1xf32> to vector<4x16x16xf32>
    %90 = arith.mulf %85, %89 : vector<4x16x16xf32>
    %91 = arith.truncf %90 : vector<4x16x16xf32> to vector<4x16x16xbf16>
    "tpu.trace_start"() <{level = 10 : i32, message = "hqk,hkd->hqd"}> : () -> ()
    %cst_27 = arith.constant dense<0.000000e+00> : vector<4x16x32xf32>
    %92 = tpu.matmul %91, %73, %cst_27 {dimension_numbers = #tpu.dot_dimension_numbers<[2], [1], [1], [2], [0, 0, 0, 1, 1, 2], [0], [0]>} : vector<4x16x16xbf16>, vector<4x16x32xbf16>, vector<4x16x32xf32> -> vector<4x16x32xf32>
    "tpu.trace_stop"() : () -> ()
    %93 = vector.extract_strided_slice %92 {offsets = [0, 0, 0], sizes = [1, 16, 32], strides = [1, 1, 1]} : vector<4x16x32xf32> to vector<1x16x32xf32>
    %94 = vector.shape_cast %93 : vector<1x16x32xf32> to vector<16x32xf32>
    %95 = vector.extract_strided_slice %92 {offsets = [1, 0, 0], sizes = [1, 16, 32], strides = [1, 1, 1]} : vector<4x16x32xf32> to vector<1x16x32xf32>
    %96 = vector.shape_cast %95 : vector<1x16x32xf32> to vector<16x32xf32>
    %97 = vector.extract_strided_slice %92 {offsets = [2, 0, 0], sizes = [1, 16, 32], strides = [1, 1, 1]} : vector<4x16x32xf32> to vector<1x16x32xf32>
    %98 = vector.shape_cast %97 : vector<1x16x32xf32> to vector<16x32xf32>
    %99 = vector.extract_strided_slice %92 {offsets = [3, 0, 0], sizes = [1, 16, 32], strides = [1, 1, 1]} : vector<4x16x32xf32> to vector<1x16x32xf32>
    %100 = vector.shape_cast %99 : vector<1x16x32xf32> to vector<16x32xf32>
    %101 = tpu.concatenate %94, %96, %98, %100 in 1 : vector<16x32xf32>, vector<16x32xf32>, vector<16x32xf32>, vector<16x32xf32> -> vector<16x128xf32>
    %102 = arith.truncf %101 : vector<16x128xf32> to vector<16x128xbf16>
    %c0_28 = arith.constant 0 : index
    %c0_29 = arith.constant 0 : index
    %103 = vector.load %arg8[%c0_28, %c0_29] : memref<128x128xbf16, #tpu.memory_space<vmem>>, vector<128x128xbf16>
    %cst_30 = arith.constant dense<0.000000e+00> : vector<16x128xf32>
    %104 = tpu.matmul %102, %103, %cst_30 {dimension_numbers = #tpu.dot_dimension_numbers<[1], [0], [0], [1], [0, 0, 1, 1], [], []>} : vector<16x128xbf16>, vector<128x128xbf16>, vector<16x128xf32> -> vector<16x128xf32>
    %c0_31 = arith.constant 0 : index
    %c0_32 = arith.constant 0 : index
    %105 = vector.load %arg9[%c0_31, %c0_32] : memref<1x128xf32, #tpu.memory_space<vmem>>, vector<1x128xf32>
    %106 = vector.broadcast %105 : vector<1x128xf32> to vector<16x128xf32>
    %107 = arith.addf %104, %106 : vector<16x128xf32>
    %108 = arith.addf %1, %107 : vector<16x128xf32>
    %c0_33 = arith.constant 0 : index
    %c0_34 = arith.constant 0 : index
    %109 = vector.load %arg10[%c0_33, %c0_34] : memref<1x128xf32, #tpu.memory_space<vmem>>, vector<1x128xf32>
    %c0_35 = arith.constant 0 : index
    %c0_36 = arith.constant 0 : index
    %110 = vector.load %arg11[%c0_35, %c0_36] : memref<1x128xf32, #tpu.memory_space<vmem>>, vector<1x128xf32>
    %cst_37 = arith.constant dense<0.000000e+00> : vector<16xf32>
    %111 = vector.multi_reduction <add>, %108, %cst_37 [1] : vector<16x128xf32> to vector<16xf32>
    %112 = vector.shape_cast %111 : vector<16xf32> to vector<16x1xf32>
    %cst_38 = arith.constant 1.280000e+02 : f32
    %113 = vector.broadcast %cst_38 : f32 to vector<16x1xf32>
    %114 = arith.divf %112, %113 : vector<16x1xf32>
    %115 = vector.broadcast %114 : vector<16x1xf32> to vector<16x128xf32>
    %116 = arith.subf %108, %115 : vector<16x128xf32>
    %117 = arith.mulf %116, %116 : vector<16x128xf32>
    %cst_39 = arith.constant dense<0.000000e+00> : vector<16xf32>
    %118 = vector.multi_reduction <add>, %117, %cst_39 [1] : vector<16x128xf32> to vector<16xf32>
    %119 = vector.shape_cast %118 : vector<16xf32> to vector<16x1xf32>
    %cst_40 = arith.constant 1.280000e+02 : f32
    %120 = vector.broadcast %cst_40 : f32 to vector<16x1xf32>
    %121 = arith.divf %119, %120 : vector<16x1xf32>
    %122 = vector.broadcast %114 : vector<16x1xf32> to vector<16x128xf32>
    %123 = arith.subf %108, %122 : vector<16x128xf32>
    %cst_41 = arith.constant 9.99999997E-7 : f32
    %124 = vector.broadcast %cst_41 : f32 to vector<16x1xf32>
    %125 = arith.addf %121, %124 : vector<16x1xf32>
    %126 = math.rsqrt %125 : vector<16x1xf32>
    %127 = vector.broadcast %126 : vector<16x1xf32> to vector<16x128xf32>
    %128 = arith.mulf %123, %127 : vector<16x128xf32>
    %129 = vector.broadcast %109 : vector<1x128xf32> to vector<16x128xf32>
    %130 = arith.mulf %128, %129 : vector<16x128xf32>
    %131 = vector.broadcast %110 : vector<1x128xf32> to vector<16x128xf32>
    %132 = arith.addf %130, %131 : vector<16x128xf32>
    %133 = arith.truncf %132 : vector<16x128xf32> to vector<16x128xbf16>
    %c0_42 = arith.constant 0 : index
    %c0_43 = arith.constant 0 : index
    %134 = vector.load %arg12[%c0_42, %c0_43] : memref<128x128xbf16, #tpu.memory_space<vmem>>, vector<128x128xbf16>
    %cst_44 = arith.constant dense<0.000000e+00> : vector<16x128xf32>
    %135 = tpu.matmul %133, %134, %cst_44 {dimension_numbers = #tpu.dot_dimension_numbers<[1], [0], [0], [1], [0, 0, 1, 1], [], []>} : vector<16x128xbf16>, vector<128x128xbf16>, vector<16x128xf32> -> vector<16x128xf32>
    %c0_45 = arith.constant 0 : index
    %c0_46 = arith.constant 0 : index
    %136 = vector.load %arg13[%c0_45, %c0_46] : memref<1x128xf32, #tpu.memory_space<vmem>>, vector<1x128xf32>
    %137 = vector.broadcast %136 : vector<1x128xf32> to vector<16x128xf32>
    %138 = arith.addf %135, %137 : vector<16x128xf32>
    %139 = arith.truncf %3 : vector<8x128xf32> to vector<8x128xbf16>
    %c0_47 = arith.constant 0 : index
    %c0_48 = arith.constant 0 : index
    %140 = vector.load %arg14[%c0_47, %c0_48] : memref<128x256xbf16, #tpu.memory_space<vmem>>, vector<128x256xbf16>
    %cst_49 = arith.constant dense<0.000000e+00> : vector<8x256xf32>
    %141 = tpu.matmul %139, %140, %cst_49 {dimension_numbers = #tpu.dot_dimension_numbers<[1], [0], [0], [1], [0, 0, 1, 1], [], []>} : vector<8x128xbf16>, vector<128x256xbf16>, vector<8x256xf32> -> vector<8x256xf32>
    %c0_50 = arith.constant 0 : index
    %c0_51 = arith.constant 0 : index
    %142 = vector.load %arg15[%c0_50, %c0_51] : memref<1x256xf32, #tpu.memory_space<vmem>>, vector<1x256xf32>
    %143 = vector.broadcast %142 : vector<1x256xf32> to vector<8x256xf32>
    %144 = arith.addf %141, %143 : vector<8x256xf32>
    %145 = vector.extract_strided_slice %144 {offsets = [0, 0], sizes = [8, 128], strides = [1, 1]} : vector<8x256xf32> to vector<8x128xf32>
    %146 = vector.extract_strided_slice %144 {offsets = [0, 128], sizes = [8, 128], strides = [1, 1]} : vector<8x256xf32> to vector<8x128xf32>
    %147 = vector.extract_strided_slice %138 {offsets = [0, 0], sizes = [16, 32], strides = [1, 1]} : vector<16x128xf32> to vector<16x32xf32>
    %148 = vector.extract_strided_slice %138 {offsets = [0, 32], sizes = [16, 32], strides = [1, 1]} : vector<16x128xf32> to vector<16x32xf32>
    %149 = vector.extract_strided_slice %138 {offsets = [0, 64], sizes = [16, 32], strides = [1, 1]} : vector<16x128xf32> to vector<16x32xf32>
    %150 = vector.extract_strided_slice %138 {offsets = [0, 96], sizes = [16, 32], strides = [1, 1]} : vector<16x128xf32> to vector<16x32xf32>
    %151 = vector.shape_cast %147 : vector<16x32xf32> to vector<1x16x32xf32>
    %152 = vector.shape_cast %148 : vector<16x32xf32> to vector<1x16x32xf32>
    %153 = vector.shape_cast %149 : vector<16x32xf32> to vector<1x16x32xf32>
    %154 = vector.shape_cast %150 : vector<16x32xf32> to vector<1x16x32xf32>
    %155 = tpu.concatenate %151, %152, %153, %154 in 0 : vector<1x16x32xf32>, vector<1x16x32xf32>, vector<1x16x32xf32>, vector<1x16x32xf32> -> vector<4x16x32xf32>
    %156 = arith.truncf %155 : vector<4x16x32xf32> to vector<4x16x32xbf16>
    %157 = vector.extract_strided_slice %145 {offsets = [0, 0], sizes = [8, 32], strides = [1, 1]} : vector<8x128xf32> to vector<8x32xf32>
    %158 = vector.extract_strided_slice %145 {offsets = [0, 32], sizes = [8, 32], strides = [1, 1]} : vector<8x128xf32> to vector<8x32xf32>
    %159 = vector.extract_strided_slice %145 {offsets = [0, 64], sizes = [8, 32], strides = [1, 1]} : vector<8x128xf32> to vector<8x32xf32>
    %160 = vector.extract_strided_slice %145 {offsets = [0, 96], sizes = [8, 32], strides = [1, 1]} : vector<8x128xf32> to vector<8x32xf32>
    %161 = vector.shape_cast %157 : vector<8x32xf32> to vector<1x8x32xf32>
    %162 = vector.shape_cast %158 : vector<8x32xf32> to vector<1x8x32xf32>
    %163 = vector.shape_cast %159 : vector<8x32xf32> to vector<1x8x32xf32>
    %164 = vector.shape_cast %160 : vector<8x32xf32> to vector<1x8x32xf32>
    %165 = tpu.concatenate %161, %162, %163, %164 in 0 : vector<1x8x32xf32>, vector<1x8x32xf32>, vector<1x8x32xf32>, vector<1x8x32xf32> -> vector<4x8x32xf32>
    %166 = arith.truncf %165 : vector<4x8x32xf32> to vector<4x8x32xbf16>
    %167 = vector.extract_strided_slice %146 {offsets = [0, 0], sizes = [8, 32], strides = [1, 1]} : vector<8x128xf32> to vector<8x32xf32>
    %168 = vector.extract_strided_slice %146 {offsets = [0, 32], sizes = [8, 32], strides = [1, 1]} : vector<8x128xf32> to vector<8x32xf32>
    %169 = vector.extract_strided_slice %146 {offsets = [0, 64], sizes = [8, 32], strides = [1, 1]} : vector<8x128xf32> to vector<8x32xf32>
    %170 = vector.extract_strided_slice %146 {offsets = [0, 96], sizes = [8, 32], strides = [1, 1]} : vector<8x128xf32> to vector<8x32xf32>
    %171 = vector.shape_cast %167 : vector<8x32xf32> to vector<1x8x32xf32>
    %172 = vector.shape_cast %168 : vector<8x32xf32> to vector<1x8x32xf32>
    %173 = vector.shape_cast %169 : vector<8x32xf32> to vector<1x8x32xf32>
    %174 = vector.shape_cast %170 : vector<8x32xf32> to vector<1x8x32xf32>
    %175 = tpu.concatenate %171, %172, %173, %174 in 0 : vector<1x8x32xf32>, vector<1x8x32xf32>, vector<1x8x32xf32>, vector<1x8x32xf32> -> vector<4x8x32xf32>
    %176 = arith.truncf %175 : vector<4x8x32xf32> to vector<4x8x32xbf16>
    "tpu.trace_start"() <{level = 10 : i32, message = "hqd,hkd->hqk"}> : () -> ()
    %cst_52 = arith.constant dense<0.000000e+00> : vector<4x16x8xf32>
    %177 = tpu.matmul %156, %166, %cst_52 {dimension_numbers = #tpu.dot_dimension_numbers<[2], [2], [1], [1], [0, 0, 0, 1, 1, 1], [0], [0]>} : vector<4x16x32xbf16>, vector<4x8x32xbf16>, vector<4x16x8xf32> -> vector<4x16x8xf32>
    "tpu.trace_stop"() : () -> ()
    %cst_53 = arith.constant 0.176776692 : f32
    %178 = vector.broadcast %cst_53 : f32 to vector<4x16x8xf32>
    %179 = arith.mulf %177, %178 : vector<4x16x8xf32>
    %cst_54 = arith.constant -1.000000e+09 : f32
    %180 = vector.shape_cast %7 : vector<1x8xi1> to vector<1x1x8xi1>
    %181 = vector.broadcast %180 : vector<1x1x8xi1> to vector<4x16x8xi1>
    %182 = vector.broadcast %cst_54 : f32 to vector<4x16x8xf32>
    %183 = arith.select %181, %179, %182 : vector<4x16x8xi1>, vector<4x16x8xf32>
    %cst_55 = arith.constant dense<0xFF800000> : vector<4x16xf32>
    %184 = vector.multi_reduction <maximumf>, %183, %cst_55 [2] : vector<4x16x8xf32> to vector<4x16xf32>
    %185 = vector.shape_cast %184 : vector<4x16xf32> to vector<4x16x1xf32>
    %186 = vector.broadcast %185 : vector<4x16x1xf32> to vector<4x16x8xf32>
    %187 = arith.subf %183, %186 : vector<4x16x8xf32>
    %188 = math.exp %187 : vector<4x16x8xf32>
    %cst_56 = arith.constant dense<0.000000e+00> : vector<4x16xf32>
    %189 = vector.multi_reduction <add>, %188, %cst_56 [2] : vector<4x16x8xf32> to vector<4x16xf32>
    %190 = vector.shape_cast %189 : vector<4x16xf32> to vector<4x16x1xf32>
    %191 = tpu.reciprocal %190 {approx = true} : vector<4x16x1xf32> -> vector<4x16x1xf32>
    %192 = vector.broadcast %191 : vector<4x16x1xf32> to vector<4x16x8xf32>
    %193 = arith.mulf %188, %192 : vector<4x16x8xf32>
    %194 = arith.truncf %193 : vector<4x16x8xf32> to vector<4x16x8xbf16>
    "tpu.trace_start"() <{level = 10 : i32, message = "hqk,hkd->hqd"}> : () -> ()
    %cst_57 = arith.constant dense<0.000000e+00> : vector<4x16x32xf32>
    %195 = tpu.matmul %194, %176, %cst_57 {dimension_numbers = #tpu.dot_dimension_numbers<[2], [1], [1], [2], [0, 0, 0, 1, 1, 2], [0], [0]>} : vector<4x16x8xbf16>, vector<4x8x32xbf16>, vector<4x16x32xf32> -> vector<4x16x32xf32>
    "tpu.trace_stop"() : () -> ()
    %196 = vector.extract_strided_slice %195 {offsets = [0, 0, 0], sizes = [1, 16, 32], strides = [1, 1, 1]} : vector<4x16x32xf32> to vector<1x16x32xf32>
    %197 = vector.shape_cast %196 : vector<1x16x32xf32> to vector<16x32xf32>
    %198 = vector.extract_strided_slice %195 {offsets = [1, 0, 0], sizes = [1, 16, 32], strides = [1, 1, 1]} : vector<4x16x32xf32> to vector<1x16x32xf32>
    %199 = vector.shape_cast %198 : vector<1x16x32xf32> to vector<16x32xf32>
    %200 = vector.extract_strided_slice %195 {offsets = [2, 0, 0], sizes = [1, 16, 32], strides = [1, 1, 1]} : vector<4x16x32xf32> to vector<1x16x32xf32>
    %201 = vector.shape_cast %200 : vector<1x16x32xf32> to vector<16x32xf32>
    %202 = vector.extract_strided_slice %195 {offsets = [3, 0, 0], sizes = [1, 16, 32], strides = [1, 1, 1]} : vector<4x16x32xf32> to vector<1x16x32xf32>
    %203 = vector.shape_cast %202 : vector<1x16x32xf32> to vector<16x32xf32>
    %204 = tpu.concatenate %197, %199, %201, %203 in 1 : vector<16x32xf32>, vector<16x32xf32>, vector<16x32xf32>, vector<16x32xf32> -> vector<16x128xf32>
    %205 = arith.truncf %204 : vector<16x128xf32> to vector<16x128xbf16>
    %c0_58 = arith.constant 0 : index
    %c0_59 = arith.constant 0 : index
    %206 = vector.load %arg16[%c0_58, %c0_59] : memref<128x128xbf16, #tpu.memory_space<vmem>>, vector<128x128xbf16>
    %cst_60 = arith.constant dense<0.000000e+00> : vector<16x128xf32>
    %207 = tpu.matmul %205, %206, %cst_60 {dimension_numbers = #tpu.dot_dimension_numbers<[1], [0], [0], [1], [0, 0, 1, 1], [], []>} : vector<16x128xbf16>, vector<128x128xbf16>, vector<16x128xf32> -> vector<16x128xf32>
    %c0_61 = arith.constant 0 : index
    %c0_62 = arith.constant 0 : index
    %208 = vector.load %arg17[%c0_61, %c0_62] : memref<1x128xf32, #tpu.memory_space<vmem>>, vector<1x128xf32>
    %209 = vector.broadcast %208 : vector<1x128xf32> to vector<16x128xf32>
    %210 = arith.addf %207, %209 : vector<16x128xf32>
    %211 = arith.addf %108, %210 : vector<16x128xf32>
    %c0_63 = arith.constant 0 : index
    %c0_64 = arith.constant 0 : index
    %212 = vector.load %arg18[%c0_63, %c0_64] : memref<1x128xf32, #tpu.memory_space<vmem>>, vector<1x128xf32>
    %c0_65 = arith.constant 0 : index
    %c0_66 = arith.constant 0 : index
    %213 = vector.load %arg19[%c0_65, %c0_66] : memref<1x128xf32, #tpu.memory_space<vmem>>, vector<1x128xf32>
    %cst_67 = arith.constant dense<0.000000e+00> : vector<16xf32>
    %214 = vector.multi_reduction <add>, %211, %cst_67 [1] : vector<16x128xf32> to vector<16xf32>
    %215 = vector.shape_cast %214 : vector<16xf32> to vector<16x1xf32>
    %cst_68 = arith.constant 1.280000e+02 : f32
    %216 = vector.broadcast %cst_68 : f32 to vector<16x1xf32>
    %217 = arith.divf %215, %216 : vector<16x1xf32>
    %218 = vector.broadcast %217 : vector<16x1xf32> to vector<16x128xf32>
    %219 = arith.subf %211, %218 : vector<16x128xf32>
    %220 = arith.mulf %219, %219 : vector<16x128xf32>
    %cst_69 = arith.constant dense<0.000000e+00> : vector<16xf32>
    %221 = vector.multi_reduction <add>, %220, %cst_69 [1] : vector<16x128xf32> to vector<16xf32>
    %222 = vector.shape_cast %221 : vector<16xf32> to vector<16x1xf32>
    %cst_70 = arith.constant 1.280000e+02 : f32
    %223 = vector.broadcast %cst_70 : f32 to vector<16x1xf32>
    %224 = arith.divf %222, %223 : vector<16x1xf32>
    %225 = vector.broadcast %217 : vector<16x1xf32> to vector<16x128xf32>
    %226 = arith.subf %211, %225 : vector<16x128xf32>
    %cst_71 = arith.constant 9.99999997E-7 : f32
    %227 = vector.broadcast %cst_71 : f32 to vector<16x1xf32>
    %228 = arith.addf %224, %227 : vector<16x1xf32>
    %229 = math.rsqrt %228 : vector<16x1xf32>
    %230 = vector.broadcast %229 : vector<16x1xf32> to vector<16x128xf32>
    %231 = arith.mulf %226, %230 : vector<16x128xf32>
    %232 = vector.broadcast %212 : vector<1x128xf32> to vector<16x128xf32>
    %233 = arith.mulf %231, %232 : vector<16x128xf32>
    %234 = vector.broadcast %213 : vector<1x128xf32> to vector<16x128xf32>
    %235 = arith.addf %233, %234 : vector<16x128xf32>
    %236 = arith.truncf %235 : vector<16x128xf32> to vector<16x128xbf16>
    %c0_72 = arith.constant 0 : index
    %c0_73 = arith.constant 0 : index
    %237 = vector.load %arg20[%c0_72, %c0_73] : memref<128x256xbf16, #tpu.memory_space<vmem>>, vector<128x256xbf16>
    %cst_74 = arith.constant dense<0.000000e+00> : vector<16x256xf32>
    %238 = tpu.matmul %236, %237, %cst_74 {dimension_numbers = #tpu.dot_dimension_numbers<[1], [0], [0], [1], [0, 0, 1, 1], [], []>} : vector<16x128xbf16>, vector<128x256xbf16>, vector<16x256xf32> -> vector<16x256xf32>
    %c0_75 = arith.constant 0 : index
    %c0_76 = arith.constant 0 : index
    %239 = vector.load %arg21[%c0_75, %c0_76] : memref<1x256xf32, #tpu.memory_space<vmem>>, vector<1x256xf32>
    %240 = vector.broadcast %239 : vector<1x256xf32> to vector<16x256xf32>
    %241 = arith.addf %238, %240 : vector<16x256xf32>
    %cst_77 = arith.constant 0.000000e+00 : f32
    %242 = vector.broadcast %cst_77 : f32 to vector<16x256xf32>
    %243 = arith.maximumf %241, %242 : vector<16x256xf32>
    %244 = arith.truncf %243 : vector<16x256xf32> to vector<16x256xbf16>
    %c0_78 = arith.constant 0 : index
    %c0_79 = arith.constant 0 : index
    %245 = vector.load %arg22[%c0_78, %c0_79] : memref<256x128xbf16, #tpu.memory_space<vmem>>, vector<256x128xbf16>
    %cst_80 = arith.constant dense<0.000000e+00> : vector<16x128xf32>
    %246 = tpu.matmul %244, %245, %cst_80 {dimension_numbers = #tpu.dot_dimension_numbers<[1], [0], [0], [1], [0, 0, 1, 1], [], []>} : vector<16x256xbf16>, vector<256x128xbf16>, vector<16x128xf32> -> vector<16x128xf32>
    %c0_81 = arith.constant 0 : index
    %c0_82 = arith.constant 0 : index
    %247 = vector.load %arg23[%c0_81, %c0_82] : memref<1x128xf32, #tpu.memory_space<vmem>>, vector<1x128xf32>
    %248 = vector.broadcast %247 : vector<1x128xf32> to vector<16x128xf32>
    %249 = arith.addf %246, %248 : vector<16x128xf32>
    %250 = arith.addf %211, %249 : vector<16x128xf32>
    %c0_83 = arith.constant 0 : index
    %c0_84 = arith.constant 0 : index
    %c0_85 = arith.constant 0 : index
    %251 = vector.load %arg24[%c0_83, %c0_84, %c0_85] : memref<1x16x128xf32, #tpu.memory_space<vmem>>, vector<1x16x128xf32>
    %252 = vector.shape_cast %251 : vector<1x16x128xf32> to vector<16x128xf32>
    %253 = vector.shape_cast %250 : vector<16x128xf32> to vector<1x16x128xf32>
    tpu.vector_store %arg24[%c0_83, %c0_84, %c0_85], %253 {strides = array<i32>} : memref<1x16x128xf32, #tpu.memory_space<vmem>>, vector<1x16x128xf32>,
    return
  }
  func.func @transform_0(%arg0: i32) -> (i32, i32, i32) {
    %c0_i32 = arith.constant 0 : i32
    %c0_i32_0 = arith.constant 0 : i32
    %c0_i32_1 = arith.constant 0 : i32
    return %arg0, %c0_i32, %c0_i32_0 : i32, i32, i32
  }
  func.func @transform_1(%arg0: i32) -> (i32, i32, i32) {
    %c0_i32 = arith.constant 0 : i32
    %c0_i32_0 = arith.constant 0 : i32
    %c0_i32_1 = arith.constant 0 : i32
    return %arg0, %c0_i32, %c0_i32_0 : i32, i32, i32
  }
  func.func @transform_2(%arg0: i32) -> (i32, i32, i32) {
    %c0_i32 = arith.constant 0 : i32
    %c0_i32_0 = arith.constant 0 : i32
    %c0_i32_1 = arith.constant 0 : i32
    return %arg0, %c0_i32, %c0_i32_0 : i32, i32, i32
  }
  func.func @transform_3(%arg0: i32) -> (i32, i32) {
    %c0_i32 = arith.constant 0 : i32
    %c0_i32_0 = arith.constant 0 : i32
    %c0_i32_1 = arith.constant 0 : i32
    return %c0_i32, %c0_i32_0 : i32, i32
  }
  func.func @transform_4(%arg0: i32) -> (i32, i32) {
    %c0_i32 = arith.constant 0 : i32
    %c0_i32_0 = arith.constant 0 : i32
    %c0_i32_1 = arith.constant 0 : i32
    return %c0_i32, %c0_i32_0 : i32, i32
  }
  func.func @transform_5(%arg0: i32) -> (i32, i32) {
    %c0_i32 = arith.constant 0 : i32
    %c0_i32_0 = arith.constant 0 : i32
    %c0_i32_1 = arith.constant 0 : i32
    return %c0_i32, %c0_i32_0 : i32, i32
  }
  func.func @transform_6(%arg0: i32) -> (i32, i32) {
    %c0_i32 = arith.constant 0 : i32
    %c0_i32_0 = arith.constant 0 : i32
    %c0_i32_1 = arith.constant 0 : i32
    return %c0_i32, %c0_i32_0 : i32, i32
  }
  func.func @transform_7(%arg0: i32) -> (i32, i32) {
    %c0_i32 = arith.constant 0 : i32
    %c0_i32_0 = arith.constant 0 : i32
    %c0_i32_1 = arith.constant 0 : i32
    return %c0_i32, %c0_i32_0 : i32, i32
  }
  func.func @transform_8(%arg0: i32) -> (i32, i32) {
    %c0_i32 = arith.constant 0 : i32
    %c0_i32_0 = arith.constant 0 : i32
    %c0_i32_1 = arith.constant 0 : i32
    return %c0_i32, %c0_i32_0 : i32, i32
  }
  func.func @transform_9(%arg0: i32) -> (i32, i32) {
    %c0_i32 = arith.constant 0 : i32
    %c0_i32_0 = arith.constant 0 : i32
    %c0_i32_1 = arith.constant 0 : i32
    return %c0_i32, %c0_i32_0 : i32, i32
  }
  func.func @transform_10(%arg0: i32) -> (i32, i32) {
    %c0_i32 = arith.constant 0 : i32
    %c0_i32_0 = arith.constant 0 : i32
    %c0_i32_1 = arith.constant 0 : i32
    return %c0_i32, %c0_i32_0 : i32, i32
  }
  func.func @transform_11(%arg0: i32) -> (i32, i32) {
    %c0_i32 = arith.constant 0 : i32
    %c0_i32_0 = arith.constant 0 : i32
    %c0_i32_1 = arith.constant 0 : i32
    return %c0_i32, %c0_i32_0 : i32, i32
  }
  func.func @transform_12(%arg0: i32) -> (i32, i32) {
    %c0_i32 = arith.constant 0 : i32
    %c0_i32_0 = arith.constant 0 : i32
    %c0_i32_1 = arith.constant 0 : i32
    return %c0_i32, %c0_i32_0 : i32, i32
  }
  func.func @transform_13(%arg0: i32) -> (i32, i32) {
    %c0_i32 = arith.constant 0 : i32
    %c0_i32_0 = arith.constant 0 : i32
    %c0_i32_1 = arith.constant 0 : i32
    return %c0_i32, %c0_i32_0 : i32, i32
  }
  func.func @transform_14(%arg0: i32) -> (i32, i32) {
    %c0_i32 = arith.constant 0 : i32
    %c0_i32_0 = arith.constant 0 : i32
    %c0_i32_1 = arith.constant 0 : i32
    return %c0_i32, %c0_i32_0 : i32, i32
  }
  func.func @transform_15(%arg0: i32) -> (i32, i32) {
    %c0_i32 = arith.constant 0 : i32
    %c0_i32_0 = arith.constant 0 : i32
    %c0_i32_1 = arith.constant 0 : i32
    return %c0_i32, %c0_i32_0 : i32, i32
  }
  func.func @transform_16(%arg0: i32) -> (i32, i32) {
    %c0_i32 = arith.constant 0 : i32
    %c0_i32_0 = arith.constant 0 : i32
    %c0_i32_1 = arith.constant 0 : i32
    return %c0_i32, %c0_i32_0 : i32, i32
  }
  func.func @transform_17(%arg0: i32) -> (i32, i32) {
    %c0_i32 = arith.constant 0 : i32
    %c0_i32_0 = arith.constant 0 : i32
    %c0_i32_1 = arith.constant 0 : i32
    return %c0_i32, %c0_i32_0 : i32, i32
  }
  func.func @transform_18(%arg0: i32) -> (i32, i32) {
    %c0_i32 = arith.constant 0 : i32
    %c0_i32_0 = arith.constant 0 : i32
    %c0_i32_1 = arith.constant 0 : i32
    return %c0_i32, %c0_i32_0 : i32, i32
  }
  func.func @transform_19(%arg0: i32) -> (i32, i32) {
    %c0_i32 = arith.constant 0 : i32
    %c0_i32_0 = arith.constant 0 : i32
    %c0_i32_1 = arith.constant 0 : i32
    return %c0_i32, %c0_i32_0 : i32, i32
  }
  func.func @transform_20(%arg0: i32) -> (i32, i32) {
    %c0_i32 = arith.constant 0 : i32
    %c0_i32_0 = arith.constant 0 : i32
    %c0_i32_1 = arith.constant 0 : i32
    return %c0_i32, %c0_i32_0 : i32, i32
  }
  func.func @transform_21(%arg0: i32) -> (i32, i32) {
    %c0_i32 = arith.constant 0 : i32
    %c0_i32_0 = arith.constant 0 : i32
    %c0_i32_1 = arith.constant 0 : i32
    return %c0_i32, %c0_i32_0 : i32, i32
  }
  func.func @transform_22(%arg0: i32) -> (i32, i32) {
    %c0_i32 = arith.constant 0 : i32
    %c0_i32_0 = arith.constant 0 : i32
    %c0_i32_1 = arith.constant 0 : i32
    return %c0_i32, %c0_i32_0 : i32, i32
  }
  func.func @transform_23(%arg0: i32) -> (i32, i32, i32) {
    %c0_i32 = arith.constant 0 : i32
    %c0_i32_0 = arith.constant 0 : i32
    %c0_i32_1 = arith.constant 0 : i32
    return %arg0, %c0_i32, %c0_i32_0 : i32, i32, i32
  }
}

</mosaic_0001>

<llo_original>
// kernel: tpu_custom_call.1
$region0: #{tpu_custom_call.1}
  #allocation0 [shape = 'u32[]', space=smem, size = 0x4, offset = 0x4, fixed_abs, tag = 'smem constant byte address 0x4 - core index']
  #allocation1 [shape = 'u32[72,128]{1,0:T(1,128)}', space=vmem, size = 0x9000, scoped, tag = 'internal scratch']
  %s0 = inlined_call_operand.hbm [shape: f32[2,16,128], index: 0, kind: input, shape index: {}]
  %s1 = inlined_call_operand.hbm [shape: f32[2,8,128], index: 1, kind: input, shape index: {}]
  %s2 = inlined_call_operand.hbm [shape: f32[2,1,8], index: 2, kind: input, shape index: {}]
  %s3 = inlined_call_operand.hbm [shape: f32[1,128], index: 3, kind: input, shape index: {}]
  %s4 = inlined_call_operand.hbm [shape: f32[1,128], index: 4, kind: input, shape index: {}]
  %s5 = inlined_call_operand.hbm [shape: bf16[128,384], index: 5, kind: input, shape index: {}]
  %s6 = inlined_call_operand.vmem [shape: f32[1,384], index: 6, kind: input, shape index: {}]
  %s7 = inlined_call_operand.hbm [shape: bf16[128,128], index: 7, kind: input, shape index: {}]
  %s8 = inlined_call_operand.hbm [shape: f32[1,128], index: 8, kind: input, shape index: {}]
  %s9 = inlined_call_operand.vmem [shape: f32[1,128], index: 9, kind: input, shape index: {}]
  %s10 = inlined_call_operand.vmem [shape: f32[1,128], index: 10, kind: input, shape index: {}]
  %s11 = inlined_call_operand.hbm [shape: bf16[128,128], index: 11, kind: input, shape index: {}]
  %s12 = inlined_call_operand.vmem [shape: f32[1,128], index: 12, kind: input, shape index: {}]
  %s13 = inlined_call_operand.hbm [shape: bf16[128,256], index: 13, kind: input, shape index: {}]
  %s14 = inlined_call_operand.vmem [shape: f32[1,256], index: 14, kind: input, shape index: {}]
  %s15 = inlined_call_operand.hbm [shape: bf16[128,128], index: 15, kind: input, shape index: {}]
  %s16 = inlined_call_operand.vmem [shape: f32[1,128], index: 16, kind: input, shape index: {}]
  %s17 = inlined_call_operand.vmem [shape: f32[1,128], index: 17, kind: input, shape index: {}]
  %s18 = inlined_call_operand.vmem [shape: f32[1,128], index: 18, kind: input, shape index: {}]
  %s19 = inlined_call_operand.hbm [shape: bf16[128,256], index: 19, kind: input, shape index: {}]
  %s20 = inlined_call_operand.vmem [shape: f32[1,256], index: 20, kind: input, shape index: {}]
  %s21 = inlined_call_operand.hbm [shape: bf16[256,128], index: 21, kind: input, shape index: {}]
  %s22 = inlined_call_operand.vmem [shape: f32[1,128], index: 22, kind: input, shape index: {}]
  %s23 = inlined_call_operand.hbm [shape: f32[2,16,128], index: 23, kind: output, shape index: {}]
  %s24 = sld [smem:[#allocation0]]
  $region177: #{tpu_custom_call.1} parent=0
    _
  %s26 = ssub.s32 1, %s24
  %s27 = scalar_select 0, %s26, %s24
  $region1: #{tpu_custom_call.1} parent=0
    #allocation2 [shape = 'u8[16384]{0}', space=vmem, size = 0x4000, scoped, tag = 'input window, operand 0']
    #allocation3 [shape = 's32[2]{0}', space=sflag, size = 0x8, scoped, tag = 'scoped memory for tpu_custom_call.1']
    #allocation4 [shape = 's32[2]{0}', space=sflag, size = 0x8, scoped, tag = 'scoped memory for tpu_custom_call.1']
    #allocation5 [shape = 'u8[8192]{0}', space=vmem, size = 0x2000, scoped, tag = 'input window, operand 1']
    #allocation6 [shape = 's32[2]{0}', space=sflag, size = 0x8, scoped, tag = 'scoped memory for tpu_custom_call.1']
    #allocation7 [shape = 'u8[1024]{0}', space=vmem, size = 0x400, scoped, tag = 'input window, operand 2']
    #allocation8 [shape = 'u8[512]{0}', space=vmem, size = 0x400, scoped, tag = 'input window, operand 3, single buffered']
    #allocation9 [shape = 's32[1]{0}', space=sflag, size = 0x4, scoped, tag = 'scoped memory for tpu_custom_call.1']
    #allocation10 [shape = 'u8[512]{0}', space=vmem, size = 0x400, scoped, tag = 'input window, operand 4, single buffered']
    #allocation11 [shape = 'u8[98304]{0}', space=vmem, size = 0x18000, scoped, tag = 'input window, operand 5, single buffered']
    #allocation12 [shape = 's32[1]{0}', space=sflag, size = 0x4, scoped, tag = 'scoped memory for tpu_custom_call.1']
    #allocation13 [shape = 'u8[32768]{0}', space=vmem, size = 0x8000, scoped, tag = 'input window, operand 7, single buffered']
    #allocation14 [shape = 'u8[512]{0}', space=vmem, size = 0x400, scoped, tag = 'input window, operand 8, single buffered']
    #allocation15 [shape = 's32[1]{0}', space=sflag, size = 0x4, scoped, tag = 'scoped memory for tpu_custom_call.1']
    #allocation16 [shape = 'u8[32768]{0}', space=vmem, size = 0x8000, scoped, tag = 'input window, operand 11, single buffered']
    #allocation17 [shape = 'u8[65536]{0}', space=vmem, size = 0x10000, scoped, tag = 'input window, operand 13, single buffered']
    #allocation18 [shape = 's32[1]{0}', space=sflag, size = 0x4, scoped, tag = 'scoped memory for tpu_custom_call.1']
    #allocation19 [shape = 'u8[32768]{0}', space=vmem, size = 0x8000, scoped, tag = 'input window, operand 15, single buffered']
    #allocation20 [shape = 'u8[65536]{0}', space=vmem, size = 0x10000, scoped, tag = 'input window, operand 19, single buffered']
    #allocation21 [shape = 's32[1]{0}', space=sflag, size = 0x4, scoped, tag = 'scoped memory for tpu_custom_call.1']
    #allocation22 [shape = 'u8[65536]{0}', space=vmem, size = 0x10000, scoped, tag = 'input window, operand 21, single buffered']
    #allocation23 [shape = 'u8[16384]{0}', space=vmem, size = 0x4000, scoped, tag = 'output window, operand 0']
    %28 = vsyncpa [#allocation3], 0
    %s29 = scalar_lea.sflag [#allocation3], 1
    %30 = vsyncpa %s29, 0
    %31 = vsyncpa [#allocation6], 0
    %s32 = scalar_lea.sflag [#allocation6], 1
    %33 = vsyncpa %s32, 0
    %34 = vsyncpa [#allocation9], 0
    %35 = vsyncpa [#allocation12], 0
    %36 = vsyncpa [#allocation15], 0
    %37 = vsyncpa [#allocation18], 0
    %38 = vsyncpa [#allocation21], 0
    %39 = vsyncpa [#allocation4], 0
    %s40 = scalar_lea.sflag [#allocation4], 1
    %41 = vsyncpa %s40, 0
    loop: start=0, step=1, limit=4
    $region2: #{tpu_custom_call.1} parent=1 // loop_pre_header
      _
    $region3: #{tpu_custom_call.1} parent=1 // loop_header
      %s43 = sphi 0, %s47
      %p44 = scmp.ge.s32.totalorder %s43, 4
      %s53 = sphi 0, %s55
      %s56 = sphi 0, %s53
      %s57 = sphi 0, %s56
      %s73 = sphi 0, %s57
      %s79 = sphi 0, %s81
      %s82 = sphi 0, %s79
      %s83 = sphi 0, %s82
      %s99 = sphi 0, %s83
      %s105 = sphi 0, %s107
      %s108 = sphi 0, %s105
      %s109 = sphi 0, %s108
      %s125 = sphi 0, %s109
      %s129 = sphi 0, %s129
      %s131 = sphi 0, %s129
      %s132 = sphi 0, %s131
      %s146 = sphi 0, %s132
      %s150 = sphi 0, %s150
      %s152 = sphi 0, %s150
      %s153 = sphi 0, %s152
      %s167 = sphi 0, %s153
      %s171 = sphi 0, %s171
      %s173 = sphi 0, %s171
      %s174 = sphi 0, %s173
      %s188 = sphi 0, %s174
      %s192 = sphi 0, %s192
      %s194 = sphi 0, %s192
      %s195 = sphi 0, %s194
      %s209 = sphi 0, %s195
      %s213 = sphi 0, %s213
      %s215 = sphi 0, %s213
      %s216 = sphi 0, %s215
      %s230 = sphi 0, %s216
      %s234 = sphi 0, %s234
      %s236 = sphi 0, %s234
      %s237 = sphi 0, %s236
      %s251 = sphi 0, %s237
      %s255 = sphi 0, %s255
      %s257 = sphi 0, %s255
      %s258 = sphi 0, %s257
      %s272 = sphi 0, %s258
      %s276 = sphi 0, %s276
      %s278 = sphi 0, %s276
      %s279 = sphi 0, %s278
      %s293 = sphi 0, %s279
      %s297 = sphi 0, %s297
      %s299 = sphi 0, %s297
      %s300 = sphi 0, %s299
      %s314 = sphi 0, %s300
      %s318 = sphi 0, %s318
      %s320 = sphi 0, %s318
      %s321 = sphi 0, %s320
      %s335 = sphi 0, %s321
      %s339 = sphi 0, %s339
      %s341 = sphi 0, %s339
      %s342 = sphi 0, %s341
      %s356 = sphi 0, %s342
      %s360 = sphi 0, %s360
      %s362 = sphi 0, %s360
      %s363 = sphi 0, %s362
      %s377 = sphi 0, %s363
      %s381 = sphi 0, %s381
      %s383 = sphi 0, %s381
      %s384 = sphi 0, %s383
      %s398 = sphi 0, %s384
      %s402 = sphi 0, %s402
      %s404 = sphi 0, %s402
      %s405 = sphi 0, %s404
      %s419 = sphi 0, %s405
      %s423 = sphi 0, %s423
      %s425 = sphi 0, %s423
      %s426 = sphi 0, %s425
      %s440 = sphi 0, %s426
      %s444 = sphi 0, %s444
      %s446 = sphi 0, %s444
      %s447 = sphi 0, %s446
      %s461 = sphi 0, %s447
      %s465 = sphi 0, %s465
      %s467 = sphi 0, %s465
      %s468 = sphi 0, %s467
      %s482 = sphi 0, %s468
      %s486 = sphi 0, %s486
      %s488 = sphi 0, %s486
      %s489 = sphi 0, %s488
      %s503 = sphi 0, %s489
      %s507 = sphi 0, %s507
      %s509 = sphi 0, %s507
      %s510 = sphi 0, %s509
      %s524 = sphi 0, %s510
      %s528 = sphi 0, %s528
      %s530 = sphi 0, %s528
      %s531 = sphi 0, %s530
      %s545 = sphi 0, %s531
      %s551 = sphi 0, %s553
      %s554 = sphi 0, %s551
      %s555 = sphi 0, %s554
      %s571 = sphi 0, %s555
    $region4: #{tpu_custom_call.1} parent=1 // loop_header_branch
      %46 = sbr.rel (%p44) target = $region8
    $region5: #{tpu_custom_call.1} parent=1 // loop_body
      %s48 = ssub.s32 %s43, 1
      %s49 = ssub.s32 %s43, 2
      %s50 = sadd.s32 %s43, 1
      %s51 = ssub.s32 %s43, %s50
      %p52 = scmp.eq.s32.totalorder %s51, 0
      %s54 = sadd.s32 %s53, 1
      %s55 = scalar_select %p52, %s53, %s54
      %p58 = pneg %p52
      %p59 = scmp.eq.s32.totalorder %s43, 1
      %p60 = por %p58, %p59
      %p61 = scmp.ne.s32.totalorder %s53, %s56
      %p62 = scmp.eq.s32.totalorder %s43, 0
      %p63 = por %p61, %p62
      %p64 = scmp.ne.s32.totalorder %s53, %s56
      %p65 = scmp.eq.s32.totalorder %s48, 1
      %p66 = por %p64, %p65
      %p67 = scmp.ne.s32.totalorder %s56, %s57
      %p68 = scmp.eq.s32.totalorder %s48, 0
      %p69 = por %p67, %p68
      %p70 = scmp.ne.s32.totalorder %s56, %s57
      %p71 = scmp.eq.s32.totalorder %s49, 1
      %p72 = por %p70, %p71
      %p74 = scmp.ne.s32.totalorder %s57, %s73
      %p75 = scmp.eq.s32.totalorder %s49, 0
      %p76 = por %p74, %p75
      %s77 = ssub.s32 %s43, %s50
      %p78 = scmp.eq.s32.totalorder %s77, 0
      %s80 = sadd.s32 %s79, 1
      %s81 = scalar_select %p78, %s79, %s80
      %p84 = pneg %p78
      %p85 = scmp.eq.s32.totalorder %s43, 1
      %p86 = por %p84, %p85
      %p87 = scmp.ne.s32.totalorder %s79, %s82
      %p88 = scmp.eq.s32.totalorder %s43, 0
      %p89 = por %p87, %p88
      %p90 = scmp.ne.s32.totalorder %s79, %s82
      %p91 = scmp.eq.s32.totalorder %s48, 1
      %p92 = por %p90, %p91
      %p93 = scmp.ne.s32.totalorder %s82, %s83
      %p94 = scmp.eq.s32.totalorder %s48, 0
      %p95 = por %p93, %p94
      %p96 = scmp.ne.s32.totalorder %s82, %s83
      %p97 = scmp.eq.s32.totalorder %s49, 1
      %p98 = por %p96, %p97
      %p100 = scmp.ne.s32.totalorder %s83, %s99
      %p101 = scmp.eq.s32.totalorder %s49, 0
      %p102 = por %p100, %p101
      %s103 = ssub.s32 %s43, %s50
      %p104 = scmp.eq.s32.totalorder %s103, 0
      %s106 = sadd.s32 %s105, 1
      %s107 = scalar_select %p104, %s105, %s106
      %p110 = pneg %p104
      %p111 = scmp.eq.s32.totalorder %s43, 1
      %p112 = por %p110, %p111
      %p113 = scmp.ne.s32.totalorder %s105, %s108
      %p114 = scmp.eq.s32.totalorder %s43, 0
      %p115 = por %p113, %p114
      %p116 = scmp.ne.s32.totalorder %s105, %s108
      %p117 = scmp.eq.s32.totalorder %s48, 1
      %p118 = por %p116, %p117
      %p119 = scmp.ne.s32.totalorder %s108, %s109
      %p120 = scmp.eq.s32.totalorder %s48, 0
      %p121 = por %p119, %p120
      %p122 = scmp.ne.s32.totalorder %s108, %s109
      %p123 = scmp.eq.s32.totalorder %s49, 1
      %p124 = por %p122, %p123
      %p126 = scmp.ne.s32.totalorder %s109, %s125
      %p127 = scmp.eq.s32.totalorder %s49, 0
      %p128 = por %p126, %p127
      %s130 = sadd.s32 %s129, 1
      %p133 = scmp.eq.s32.totalorder %s43, 1
      %p134 = scmp.ne.s32.totalorder %s129, %s131
      %p135 = scmp.eq.s32.totalorder %s43, 0
      %p136 = por %p134, %p135
      %p137 = scmp.ne.s32.totalorder %s129, %s131
      %p138 = scmp.eq.s32.totalorder %s48, 1
      %p139 = por %p137, %p138
      %p140 = scmp.ne.s32.totalorder %s131, %s132
      %p141 = scmp.eq.s32.totalorder %s48, 0
      %p142 = por %p140, %p141
      %p143 = scmp.ne.s32.totalorder %s131, %s132
      %p144 = scmp.eq.s32.totalorder %s49, 1
      %p145 = por %p143, %p144
      %p147 = scmp.ne.s32.totalorder %s132, %s146
      %p148 = scmp.eq.s32.totalorder %s49, 0
      %p149 = por %p147, %p148
      %s151 = sadd.s32 %s150, 1
      %p154 = scmp.eq.s32.totalorder %s43, 1
      %p155 = scmp.ne.s32.totalorder %s150, %s152
      %p156 = scmp.eq.s32.totalorder %s43, 0
      %p157 = por %p155, %p156
      %p158 = scmp.ne.s32.totalorder %s150, %s152
      %p159 = scmp.eq.s32.totalorder %s48, 1
      %p160 = por %p158, %p159
      %p161 = scmp.ne.s32.totalorder %s152, %s153
      %p162 = scmp.eq.s32.totalorder %s48, 0
      %p163 = por %p161, %p162
      %p164 = scmp.ne.s32.totalorder %s152, %s153
      %p165 = scmp.eq.s32.totalorder %s49, 1
      %p166 = por %p164, %p165
      %p168 = scmp.ne.s32.totalorder %s153, %s167
      %p169 = scmp.eq.s32.totalorder %s49, 0
      %p170 = por %p168, %p169
      %s172 = sadd.s32 %s171, 1
      %p175 = scmp.eq.s32.totalorder %s43, 1
      %p176 = scmp.ne.s32.totalorder %s171, %s173
      %p177 = scmp.eq.s32.totalorder %s43, 0
      %p178 = por %p176, %p177
      %p179 = scmp.ne.s32.totalorder %s171, %s173
      %p180 = scmp.eq.s32.totalorder %s48, 1
      %p181 = por %p179, %p180
      %p182 = scmp.ne.s32.totalorder %s173, %s174
      %p183 = scmp.eq.s32.totalorder %s48, 0
      %p184 = por %p182, %p183
      %p185 = scmp.ne.s32.totalorder %s173, %s174
      %p186 = scmp.eq.s32.totalorder %s49, 1
      %p187 = por %p185, %p186
      %p189 = scmp.ne.s32.totalorder %s174, %s188
      %p190 = scmp.eq.s32.totalorder %s49, 0
      %p191 = por %p189, %p190
      %s193 = sadd.s32 %s192, 1
      %p196 = scmp.eq.s32.totalorder %s43, 1
      %p197 = scmp.ne.s32.totalorder %s192, %s194
      %p198 = scmp.eq.s32.totalorder %s43, 0
      %p199 = por %p197, %p198
      %p200 = scmp.ne.s32.totalorder %s192, %s194
      %p201 = scmp.eq.s32.totalorder %s48, 1
      %p202 = por %p200, %p201
      %p203 = scmp.ne.s32.totalorder %s194, %s195
      %p204 = scmp.eq.s32.totalorder %s48, 0
      %p205 = por %p203, %p204
      %p206 = scmp.ne.s32.totalorder %s194, %s195
      %p207 = scmp.eq.s32.totalorder %s49, 1
      %p208 = por %p206, %p207
      %p210 = scmp.ne.s32.totalorder %s195, %s209
      %p211 = scmp.eq.s32.totalorder %s49, 0
      %p212 = por %p210, %p211
      %s214 = sadd.s32 %s213, 1
      %p217 = scmp.eq.s32.totalorder %s43, 1
      %p218 = scmp.ne.s32.totalorder %s213, %s215
      %p219 = scmp.eq.s32.totalorder %s43, 0
      %p220 = por %p218, %p219
      %p221 = scmp.ne.s32.totalorder %s213, %s215
      %p222 = scmp.eq.s32.totalorder %s48, 1
      %p223 = por %p221, %p222
      %p224 = scmp.ne.s32.totalorder %s215, %s216
      %p225 = scmp.eq.s32.totalorder %s48, 0
      %p226 = por %p224, %p225
      %p227 = scmp.ne.s32.totalorder %s215, %s216
      %p228 = scmp.eq.s32.totalorder %s49, 1
      %p229 = por %p227, %p228
      %p231 = scmp.ne.s32.totalorder %s216, %s230
      %p232 = scmp.eq.s32.totalorder %s49, 0
      %p233 = por %p231, %p232
      %s235 = sadd.s32 %s234, 1
      %p238 = scmp.eq.s32.totalorder %s43, 1
      %p239 = scmp.ne.s32.totalorder %s234, %s236
      %p240 = scmp.eq.s32.totalorder %s43, 0
      %p241 = por %p239, %p240
      %p242 = scmp.ne.s32.totalorder %s234, %s236
      %p243 = scmp.eq.s32.totalorder %s48, 1
      %p244 = por %p242, %p243
      %p245 = scmp.ne.s32.totalorder %s236, %s237
      %p246 = scmp.eq.s32.totalorder %s48, 0
      %p247 = por %p245, %p246
      %p248 = scmp.ne.s32.totalorder %s236, %s237
      %p249 = scmp.eq.s32.totalorder %s49, 1
      %p250 = por %p248, %p249
      %p252 = scmp.ne.s32.totalorder %s237, %s251
      %p253 = scmp.eq.s32.totalorder %s49, 0
      %p254 = por %p252, %p253
      %s256 = sadd.s32 %s255, 1
      %p259 = scmp.eq.s32.totalorder %s43, 1
      %p260 = scmp.ne.s32.totalorder %s255, %s257
      %p261 = scmp.eq.s32.totalorder %s43, 0
      %p262 = por %p260, %p261
      %p263 = scmp.ne.s32.totalorder %s255, %s257
      %p264 = scmp.eq.s32.totalorder %s48, 1
      %p265 = por %p263, %p264
      %p266 = scmp.ne.s32.totalorder %s257, %s258
      %p267 = scmp.eq.s32.totalorder %s48, 0
      %p268 = por %p266, %p267
      %p269 = scmp.ne.s32.totalorder %s257, %s258
      %p270 = scmp.eq.s32.totalorder %s49, 1
      %p271 = por %p269, %p270
      %p273 = scmp.ne.s32.totalorder %s258, %s272
      %p274 = scmp.eq.s32.totalorder %s49, 0
      %p275 = por %p273, %p274
      %s277 = sadd.s32 %s276, 1
      %p280 = scmp.eq.s32.totalorder %s43, 1
      %p281 = scmp.ne.s32.totalorder %s276, %s278
      %p282 = scmp.eq.s32.totalorder %s43, 0
      %p283 = por %p281, %p282
      %p284 = scmp.ne.s32.totalorder %s276, %s278
      %p285 = scmp.eq.s32.totalorder %s48, 1
      %p286 = por %p284, %p285
      %p287 = scmp.ne.s32.totalorder %s278, %s279
      %p288 = scmp.eq.s32.totalorder %s48, 0
      %p289 = por %p287, %p288
      %p290 = scmp.ne.s32.totalorder %s278, %s279
      %p291 = scmp.eq.s32.totalorder %s49, 1
      %p292 = por %p290, %p291
      %p294 = scmp.ne.s32.totalorder %s279, %s293
      %p295 = scmp.eq.s32.totalorder %s49, 0
      %p296 = por %p294, %p295
      %s298 = sadd.s32 %s297, 1
      %p301 = scmp.eq.s32.totalorder %s43, 1
      %p302 = scmp.ne.s32.totalorder %s297, %s299
      %p303 = scmp.eq.s32.totalorder %s43, 0
      %p304 = por %p302, %p303
      %p305 = scmp.ne.s32.totalorder %s297, %s299
      %p306 = scmp.eq.s32.totalorder %s48, 1
      %p307 = por %p305, %p306
      %p308 = scmp.ne.s32.totalorder %s299, %s300
      %p309 = scmp.eq.s32.totalorder %s48, 0
      %p310 = por %p308, %p309
      %p311 = scmp.ne.s32.totalorder %s299, %s300
      %p312 = scmp.eq.s32.totalorder %s49, 1
      %p313 = por %p311, %p312
      %p315 = scmp.ne.s32.totalorder %s300, %s314
      %p316 = scmp.eq.s32.totalorder %s49, 0
      %p317 = por %p315, %p316
      %s319 = sadd.s32 %s318, 1
      %p322 = scmp.eq.s32.totalorder %s43, 1
      %p323 = scmp.ne.s32.totalorder %s318, %s320
      %p324 = scmp.eq.s32.totalorder %s43, 0
      %p325 = por %p323, %p324
      %p326 = scmp.ne.s32.totalorder %s318, %s320
      %p327 = scmp.eq.s32.totalorder %s48, 1
      %p328 = por %p326, %p327
      %p329 = scmp.ne.s32.totalorder %s320, %s321
      %p330 = scmp.eq.s32.totalorder %s48, 0
      %p331 = por %p329, %p330
      %p332 = scmp.ne.s32.totalorder %s320, %s321
      %p333 = scmp.eq.s32.totalorder %s49, 1
      %p334 = por %p332, %p333
      %p336 = scmp.ne.s32.totalorder %s321, %s335
      %p337 = scmp.eq.s32.totalorder %s49, 0
      %p338 = por %p336, %p337
      %s340 = sadd.s32 %s339, 1
      %p343 = scmp.eq.s32.totalorder %s43, 1
      %p344 = scmp.ne.s32.totalorder %s339, %s341
      %p345 = scmp.eq.s32.totalorder %s43, 0
      %p346 = por %p344, %p345
      %p347 = scmp.ne.s32.totalorder %s339, %s341
      %p348 = scmp.eq.s32.totalorder %s48, 1
      %p349 = por %p347, %p348
      %p350 = scmp.ne.s32.totalorder %s341, %s342
      %p351 = scmp.eq.s32.totalorder %s48, 0
      %p352 = por %p350, %p351
      %p353 = scmp.ne.s32.totalorder %s341, %s342
      %p354 = scmp.eq.s32.totalorder %s49, 1
      %p355 = por %p353, %p354
      %p357 = scmp.ne.s32.totalorder %s342, %s356
      %p358 = scmp.eq.s32.totalorder %s49, 0
      %p359 = por %p357, %p358
      %s361 = sadd.s32 %s360, 1
      %p364 = scmp.eq.s32.totalorder %s43, 1
      %p365 = scmp.ne.s32.totalorder %s360, %s362
      %p366 = scmp.eq.s32.totalorder %s43, 0
      %p367 = por %p365, %p366
      %p368 = scmp.ne.s32.totalorder %s360, %s362
      %p369 = scmp.eq.s32.totalorder %s48, 1
      %p370 = por %p368, %p369
      %p371 = scmp.ne.s32.totalorder %s362, %s363
      %p372 = scmp.eq.s32.totalorder %s48, 0
      %p373 = por %p371, %p372
      %p374 = scmp.ne.s32.totalorder %s362, %s363
      %p375 = scmp.eq.s32.totalorder %s49, 1
      %p376 = por %p374, %p375
      %p378 = scmp.ne.s32.totalorder %s363, %s377
      %p379 = scmp.eq.s32.totalorder %s49, 0
      %p380 = por %p378, %p379
      %s382 = sadd.s32 %s381, 1
      %p385 = scmp.eq.s32.totalorder %s43, 1
      %p386 = scmp.ne.s32.totalorder %s381, %s383
      %p387 = scmp.eq.s32.totalorder %s43, 0
      %p388 = por %p386, %p387
      %p389 = scmp.ne.s32.totalorder %s381, %s383
      %p390 = scmp.eq.s32.totalorder %s48, 1
      %p391 = por %p389, %p390
      %p392 = scmp.ne.s32.totalorder %s383, %s384
      %p393 = scmp.eq.s32.totalorder %s48, 0
      %p394 = por %p392, %p393
      %p395 = scmp.ne.s32.totalorder %s383, %s384
      %p396 = scmp.eq.s32.totalorder %s49, 1
      %p397 = por %p395, %p396
      %p399 = scmp.ne.s32.totalorder %s384, %s398
      %p400 = scmp.eq.s32.totalorder %s49, 0
      %p401 = por %p399, %p400
      %s403 = sadd.s32 %s402, 1
      %p406 = scmp.eq.s32.totalorder %s43, 1
      %p407 = scmp.ne.s32.totalorder %s402, %s404
      %p408 = scmp.eq.s32.totalorder %s43, 0
      %p409 = por %p407, %p408
      %p410 = scmp.ne.s32.totalorder %s402, %s404
      %p411 = scmp.eq.s32.totalorder %s48, 1
      %p412 = por %p410, %p411
      %p413 = scmp.ne.s32.totalorder %s404, %s405
      %p414 = scmp.eq.s32.totalorder %s48, 0
      %p415 = por %p413, %p414
      %p416 = scmp.ne.s32.totalorder %s404, %s405
      %p417 = scmp.eq.s32.totalorder %s49, 1
      %p418 = por %p416, %p417
      %p420 = scmp.ne.s32.totalorder %s405, %s419
      %p421 = scmp.eq.s32.totalorder %s49, 0
      %p422 = por %p420, %p421
      %s424 = sadd.s32 %s423, 1
      %p427 = scmp.eq.s32.totalorder %s43, 1
      %p428 = scmp.ne.s32.totalorder %s423, %s425
      %p429 = scmp.eq.s32.totalorder %s43, 0
      %p430 = por %p428, %p429
      %p431 = scmp.ne.s32.totalorder %s423, %s425
      %p432 = scmp.eq.s32.totalorder %s48, 1
      %p433 = por %p431, %p432
      %p434 = scmp.ne.s32.totalorder %s425, %s426
      %p435 = scmp.eq.s32.totalorder %s48, 0
      %p436 = por %p434, %p435
      %p437 = scmp.ne.s32.totalorder %s425, %s426
      %p438 = scmp.eq.s32.totalorder %s49, 1
      %p439 = por %p437, %p438
      %p441 = scmp.ne.s32.totalorder %s426, %s440
      %p442 = scmp.eq.s32.totalorder %s49, 0
      %p443 = por %p441, %p442
      %s445 = sadd.s32 %s444, 1
      %p448 = scmp.eq.s32.totalorder %s43, 1
      %p449 = scmp.ne.s32.totalorder %s444, %s446
      %p450 = scmp.eq.s32.totalorder %s43, 0
      %p451 = por %p449, %p450
      %p452 = scmp.ne.s32.totalorder %s444, %s446
      %p453 = scmp.eq.s32.totalorder %s48, 1
      %p454 = por %p452, %p453
      %p455 = scmp.ne.s32.totalorder %s446, %s447
      %p456 = scmp.eq.s32.totalorder %s48, 0
      %p457 = por %p455, %p456
      %p458 = scmp.ne.s32.totalorder %s446, %s447
      %p459 = scmp.eq.s32.totalorder %s49, 1
      %p460 = por %p458, %p459
      %p462 = scmp.ne.s32.totalorder %s447, %s461
      %p463 = scmp.eq.s32.totalorder %s49, 0
      %p464 = por %p462, %p463
      %s466 = sadd.s32 %s465, 1
      %p469 = scmp.eq.s32.totalorder %s43, 1
      %p470 = scmp.ne.s32.totalorder %s465, %s467
      %p471 = scmp.eq.s32.totalorder %s43, 0
      %p472 = por %p470, %p471
      %p473 = scmp.ne.s32.totalorder %s465, %s467
      %p474 = scmp.eq.s32.totalorder %s48, 1
      %p475 = por %p473, %p474
      %p476 = scmp.ne.s32.totalorder %s467, %s468
      %p477 = scmp.eq.s32.totalorder %s48, 0
      %p478 = por %p476, %p477
      %p479 = scmp.ne.s32.totalorder %s467, %s468
      %p480 = scmp.eq.s32.totalorder %s49, 1
      %p481 = por %p479, %p480
      %p483 = scmp.ne.s32.totalorder %s468, %s482
      %p484 = scmp.eq.s32.totalorder %s49, 0
      %p485 = por %p483, %p484
      %s487 = sadd.s32 %s486, 1
      %p490 = scmp.eq.s32.totalorder %s43, 1
      %p491 = scmp.ne.s32.totalorder %s486, %s488
      %p492 = scmp.eq.s32.totalorder %s43, 0
      %p493 = por %p491, %p492
      %p494 = scmp.ne.s32.totalorder %s486, %s488
      %p495 = scmp.eq.s32.totalorder %s48, 1
      %p496 = por %p494, %p495
      %p497 = scmp.ne.s32.totalorder %s488, %s489
      %p498 = scmp.eq.s32.totalorder %s48, 0
      %p499 = por %p497, %p498
      %p500 = scmp.ne.s32.totalorder %s488, %s489
      %p501 = scmp.eq.s32.totalorder %s49, 1
      %p502 = por %p500, %p501
      %p504 = scmp.ne.s32.totalorder %s489, %s503
      %p505 = scmp.eq.s32.totalorder %s49, 0
      %p506 = por %p504, %p505
      %s508 = sadd.s32 %s507, 1
      %p511 = scmp.eq.s32.totalorder %s43, 1
      %p512 = scmp.ne.s32.totalorder %s507, %s509
      %p513 = scmp.eq.s32.totalorder %s43, 0
      %p514 = por %p512, %p513
      %p515 = scmp.ne.s32.totalorder %s507, %s509
      %p516 = scmp.eq.s32.totalorder %s48, 1
      %p517 = por %p515, %p516
      %p518 = scmp.ne.s32.totalorder %s509, %s510
      %p519 = scmp.eq.s32.totalorder %s48, 0
      %p520 = por %p518, %p519
      %p521 = scmp.ne.s32.totalorder %s509, %s510
      %p522 = scmp.eq.s32.totalorder %s49, 1
      %p523 = por %p521, %p522
      %p525 = scmp.ne.s32.totalorder %s510, %s524
      %p526 = scmp.eq.s32.totalorder %s49, 0
      %p527 = por %p525, %p526
      %s529 = sadd.s32 %s528, 1
      %p532 = scmp.eq.s32.totalorder %s43, 1
      %p533 = scmp.ne.s32.totalorder %s528, %s530
      %p534 = scmp.eq.s32.totalorder %s43, 0
      %p535 = por %p533, %p534
      %p536 = scmp.ne.s32.totalorder %s528, %s530
      %p537 = scmp.eq.s32.totalorder %s48, 1
      %p538 = por %p536, %p537
      %p539 = scmp.ne.s32.totalorder %s530, %s531
      %p540 = scmp.eq.s32.totalorder %s48, 0
      %p541 = por %p539, %p540
      %p542 = scmp.ne.s32.totalorder %s530, %s531
      %p543 = scmp.eq.s32.totalorder %s49, 1
      %p544 = por %p542, %p543
      %p546 = scmp.ne.s32.totalorder %s531, %s545
      %p547 = scmp.eq.s32.totalorder %s49, 0
      %p548 = por %p546, %p547
      %s549 = ssub.s32 %s43, %s50
      %p550 = scmp.eq.s32.totalorder %s549, 0
      %s552 = sadd.s32 %s551, 1
      %s553 = scalar_select %p550, %s551, %s552
      %p556 = pneg %p550
      %p557 = scmp.eq.s32.totalorder %s43, 1
      %p558 = por %p556, %p557
      %p559 = scmp.ne.s32.totalorder %s551, %s554
      %p560 = scmp.eq.s32.totalorder %s43, 0
      %p561 = por %p559, %p560
      %p562 = scmp.ne.s32.totalorder %s551, %s554
      %p563 = scmp.eq.s32.totalorder %s48, 1
      %p564 = por %p562, %p563
      %p565 = scmp.ne.s32.totalorder %s554, %s555
      %p566 = scmp.eq.s32.totalorder %s48, 0
      %p567 = por %p565, %p566
      %p568 = scmp.ne.s32.totalorder %s554, %s555
      %p569 = scmp.eq.s32.totalorder %s49, 1
      %p570 = por %p568, %p569
      %p572 = scmp.ne.s32.totalorder %s555, %s571
      %p573 = scmp.eq.s32.totalorder %s49, 0
      %p574 = por %p572, %p573
      %p575 = scmp.le.s32.totalorder 1, %s43
      %p576 = scmp.lt.s32.totalorder %s43, 3
      %p577 = pnand %p575, %p576
      %p578 = pneg %p577
      // Predicated region
      $region9: #{tpu_custom_call.1} parent=5 // pred_check
        _
      $region10: #{tpu_custom_call.1} parent=5 // pred_check_branch
        %580 = sbr.rel (%p577) target = $region12
      $region11: #{tpu_custom_call.1} parent=5 // pred_region
        %s581 = ssub.s32 %s43, 1
        // Predicated region
        $region13: #{tpu_custom_call.1} parent=11 // pred_check
          %p582 = pneg %p142
        $region14: #{tpu_custom_call.1} parent=11 // pred_check_branch
          %584 = sbr.rel (%p582) target = $region16
        $region15: #{tpu_custom_call.1} parent=11 // pred_region
          %586 = vsyncadd [#allocation9], 0
          %s588 = sshll.u32 %s3, 4
          %s589 = int_to_ptr.hbm [resolvable:$true] %s588
          %s590 = sshll.u32 [#allocation8], 4
          %s591 = int_to_ptr.vmem [resolvable:$true] %s590
          %593 = dma.hbm_to_vmem [thread:$0]  %s589, 16, %s591, [#allocation9]
        $region16: #{tpu_custom_call.1} parent=11 // pred_fallthru
          _
        // Predicated region
        $region17: #{tpu_custom_call.1} parent=11 // pred_check
          %p594 = pneg %p163
        $region18: #{tpu_custom_call.1} parent=11 // pred_check_branch
          %596 = sbr.rel (%p594) target = $region20
        $region19: #{tpu_custom_call.1} parent=11 // pred_region
          %598 = vsyncadd [#allocation9], 0
          %s600 = sshll.u32 %s4, 4
          %s601 = int_to_ptr.hbm [resolvable:$true] %s600
          %s602 = sshll.u32 [#allocation10], 4
          %s603 = int_to_ptr.vmem [resolvable:$true] %s602
          %605 = dma.hbm_to_vmem [thread:$0]  %s601, 16, %s603, [#allocation9]
        $region20: #{tpu_custom_call.1} parent=11 // pred_fallthru
          _
        // Predicated region
        $region21: #{tpu_custom_call.1} parent=11 // pred_check
          %p606 = pneg %p184
        $region22: #{tpu_custom_call.1} parent=11 // pred_check_branch
          %608 = sbr.rel (%p606) target = $region24
        $region23: #{tpu_custom_call.1} parent=11 // pred_region
          %610 = vsyncadd [#allocation12], 0
          %s611 = sshll.u32 %s5, 4
          %s612 = int_to_ptr.hbm [resolvable:$true] %s611
          %s613 = sshll.u32 [#allocation11], 4
          %s614 = int_to_ptr.vmem [resolvable:$true] %s613
          %619 = dma.hbm_to_vmem [thread:$0]  %s612, 3072, %s614, [#allocation12], 192, 192, 12
        $region24: #{tpu_custom_call.1} parent=11 // pred_fallthru
          _
        // Predicated region
        $region25: #{tpu_custom_call.1} parent=11 // pred_check
          %p620 = pneg %p205
        $region26: #{tpu_custom_call.1} parent=11 // pred_check_branch
          %622 = sbr.rel (%p620) target = $region28
        $region27: #{tpu_custom_call.1} parent=11 // pred_region
          _
        $region28: #{tpu_custom_call.1} parent=11 // pred_fallthru
          _
        // Predicated region
        $region29: #{tpu_custom_call.1} parent=11 // pred_check
          %p623 = pneg %p226
        $region30: #{tpu_custom_call.1} parent=11 // pred_check_branch
          %625 = sbr.rel (%p623) target = $region32
        $region31: #{tpu_custom_call.1} parent=11 // pred_region
          %627 = vsyncadd [#allocation12], 0
          %s628 = sshll.u32 %s7, 4
          %s629 = int_to_ptr.hbm [resolvable:$true] %s628
          %s630 = sshll.u32 [#allocation13], 4
          %s631 = int_to_ptr.vmem [resolvable:$true] %s630
          %636 = dma.hbm_to_vmem [thread:$0]  %s629, 1024, %s631, [#allocation12], 64, 64, 4
        $region32: #{tpu_custom_call.1} parent=11 // pred_fallthru
          _
        // Predicated region
        $region33: #{tpu_custom_call.1} parent=11 // pred_check
          %p637 = pneg %p247
        $region34: #{tpu_custom_call.1} parent=11 // pred_check_branch
          %639 = sbr.rel (%p637) target = $region36
        $region35: #{tpu_custom_call.1} parent=11 // pred_region
          %641 = vsyncadd [#allocation15], 0
          %s643 = sshll.u32 %s8, 4
          %s644 = int_to_ptr.hbm [resolvable:$true] %s643
          %s645 = sshll.u32 [#allocation14], 4
          %s646 = int_to_ptr.vmem [resolvable:$true] %s645
          %648 = dma.hbm_to_vmem [thread:$0]  %s644, 16, %s646, [#allocation15]
        $region36: #{tpu_custom_call.1} parent=11 // pred_fallthru
          _
        // Predicated region
        $region37: #{tpu_custom_call.1} parent=11 // pred_check
          %p649 = pneg %p268
        $region38: #{tpu_custom_call.1} parent=11 // pred_check_branch
          %651 = sbr.rel (%p649) target = $region40
        $region39: #{tpu_custom_call.1} parent=11 // pred_region
          _
        $region40: #{tpu_custom_call.1} parent=11 // pred_fallthru
          _
        // Predicated region
        $region41: #{tpu_custom_call.1} parent=11 // pred_check
          %p652 = pneg %p289
        $region42: #{tpu_custom_call.1} parent=11 // pred_check_branch
          %654 = sbr.rel (%p652) target = $region44
        $region43: #{tpu_custom_call.1} parent=11 // pred_region
          _
        $region44: #{tpu_custom_call.1} parent=11 // pred_fallthru
          _
        // Predicated region
        $region45: #{tpu_custom_call.1} parent=11 // pred_check
          %p655 = pneg %p310
        $region46: #{tpu_custom_call.1} parent=11 // pred_check_branch
          %657 = sbr.rel (%p655) target = $region48
        $region47: #{tpu_custom_call.1} parent=11 // pred_region
          %659 = vsyncadd [#allocation15], 0
          %s660 = sshll.u32 %s11, 4
          %s661 = int_to_ptr.hbm [resolvable:$true] %s660
          %s662 = sshll.u32 [#allocation16], 4
          %s663 = int_to_ptr.vmem [resolvable:$true] %s662
          %668 = dma.hbm_to_vmem [thread:$0]  %s661, 1024, %s663, [#allocation15], 64, 64, 4
        $region48: #{tpu_custom_call.1} parent=11 // pred_fallthru
          _
        // Predicated region
        $region49: #{tpu_custom_call.1} parent=11 // pred_check
          %p669 = pneg %p331
        $region50: #{tpu_custom_call.1} parent=11 // pred_check_branch
          %671 = sbr.rel (%p669) target = $region52
        $region51: #{tpu_custom_call.1} parent=11 // pred_region
          _
        $region52: #{tpu_custom_call.1} parent=11 // pred_fallthru
          _
        // Predicated region
        $region53: #{tpu_custom_call.1} parent=11 // pred_check
          %p672 = pneg %p352
        $region54: #{tpu_custom_call.1} parent=11 // pred_check_branch
          %674 = sbr.rel (%p672) target = $region56
        $region55: #{tpu_custom_call.1} parent=11 // pred_region
          %676 = vsyncadd [#allocation18], 0
          %s677 = sshll.u32 %s13, 4
          %s678 = int_to_ptr.hbm [resolvable:$true] %s677
          %s679 = sshll.u32 [#allocation17], 4
          %s680 = int_to_ptr.vmem [resolvable:$true] %s679
          %685 = dma.hbm_to_vmem [thread:$0]  %s678, 2048, %s680, [#allocation18], 128, 128, 8
        $region56: #{tpu_custom_call.1} parent=11 // pred_fallthru
          _
        // Predicated region
        $region57: #{tpu_custom_call.1} parent=11 // pred_check
          %p686 = pneg %p373
        $region58: #{tpu_custom_call.1} parent=11 // pred_check_branch
          %688 = sbr.rel (%p686) target = $region60
        $region59: #{tpu_custom_call.1} parent=11 // pred_region
          _
        $region60: #{tpu_custom_call.1} parent=11 // pred_fallthru
          _
        // Predicated region
        $region61: #{tpu_custom_call.1} parent=11 // pred_check
          %p689 = pneg %p394
        $region62: #{tpu_custom_call.1} parent=11 // pred_check_branch
          %691 = sbr.rel (%p689) target = $region64
        $region63: #{tpu_custom_call.1} parent=11 // pred_region
          %693 = vsyncadd [#allocation18], 0
          %s694 = sshll.u32 %s15, 4
          %s695 = int_to_ptr.hbm [resolvable:$true] %s694
          %s696 = sshll.u32 [#allocation19], 4
          %s697 = int_to_ptr.vmem [resolvable:$true] %s696
          %702 = dma.hbm_to_vmem [thread:$0]  %s695, 1024, %s697, [#allocation18], 64, 64, 4
        $region64: #{tpu_custom_call.1} parent=11 // pred_fallthru
          _
        // Predicated region
        $region65: #{tpu_custom_call.1} parent=11 // pred_check
          %p703 = pneg %p415
        $region66: #{tpu_custom_call.1} parent=11 // pred_check_branch
          %705 = sbr.rel (%p703) target = $region68
        $region67: #{tpu_custom_call.1} parent=11 // pred_region
          _
        $region68: #{tpu_custom_call.1} parent=11 // pred_fallthru
          _
        // Predicated region
        $region69: #{tpu_custom_call.1} parent=11 // pred_check
          %p706 = pneg %p436
        $region70: #{tpu_custom_call.1} parent=11 // pred_check_branch
          %708 = sbr.rel (%p706) target = $region72
        $region71: #{tpu_custom_call.1} parent=11 // pred_region
          _
        $region72: #{tpu_custom_call.1} parent=11 // pred_fallthru
          _
        // Predicated region
        $region73: #{tpu_custom_call.1} parent=11 // pred_check
          %p709 = pneg %p457
        $region74: #{tpu_custom_call.1} parent=11 // pred_check_branch
          %711 = sbr.rel (%p709) target = $region76
        $region75: #{tpu_custom_call.1} parent=11 // pred_region
          _
        $region76: #{tpu_custom_call.1} parent=11 // pred_fallthru
          _
        // Predicated region
        $region77: #{tpu_custom_call.1} parent=11 // pred_check
          %p712 = pneg %p478
        $region78: #{tpu_custom_call.1} parent=11 // pred_check_branch
          %714 = sbr.rel (%p712) target = $region80
        $region79: #{tpu_custom_call.1} parent=11 // pred_region
          %716 = vsyncadd [#allocation21], 0
          %s717 = sshll.u32 %s19, 4
          %s718 = int_to_ptr.hbm [resolvable:$true] %s717
          %s719 = sshll.u32 [#allocation20], 4
          %s720 = int_to_ptr.vmem [resolvable:$true] %s719
          %725 = dma.hbm_to_vmem [thread:$0]  %s718, 2048, %s720, [#allocation21], 128, 128, 8
        $region80: #{tpu_custom_call.1} parent=11 // pred_fallthru
          _
        // Predicated region
        $region81: #{tpu_custom_call.1} parent=11 // pred_check
          %p726 = pneg %p499
        $region82: #{tpu_custom_call.1} parent=11 // pred_check_branch
          %728 = sbr.rel (%p726) target = $region84
        $region83: #{tpu_custom_call.1} parent=11 // pred_region
          _
        $region84: #{tpu_custom_call.1} parent=11 // pred_fallthru
          _
        // Predicated region
        $region85: #{tpu_custom_call.1} parent=11 // pred_check
          %p729 = pneg %p520
        $region86: #{tpu_custom_call.1} parent=11 // pred_check_branch
          %731 = sbr.rel (%p729) target = $region88
        $region87: #{tpu_custom_call.1} parent=11 // pred_region
          %733 = vsyncadd [#allocation21], 0
          %s734 = sshll.u32 %s21, 4
          %s735 = int_to_ptr.hbm [resolvable:$true] %s734
          %s736 = sshll.u32 [#allocation22], 4
          %s737 = int_to_ptr.vmem [resolvable:$true] %s736
          %742 = dma.hbm_to_vmem [thread:$0]  %s735, 2048, %s737, [#allocation21], 64, 64, 4
        $region88: #{tpu_custom_call.1} parent=11 // pred_fallthru
          _
        // Predicated region
        $region89: #{tpu_custom_call.1} parent=11 // pred_check
          %p743 = pneg %p541
        $region90: #{tpu_custom_call.1} parent=11 // pred_check_branch
          %745 = sbr.rel (%p743) target = $region92
        $region91: #{tpu_custom_call.1} parent=11 // pred_region
          _
        $region92: #{tpu_custom_call.1} parent=11 // pred_fallthru
          _
      $region12: #{tpu_custom_call.1} parent=5 // pred_fallthru
        _
      %p746 = scmp.lt.s32.totalorder %s43, 2
      // Predicated region
      $region93: #{tpu_custom_call.1} parent=5 // pred_check
        %p747 = pneg %p746
      $region94: #{tpu_custom_call.1} parent=5 // pred_check_branch
        %749 = sbr.rel (%p747) target = $region96
      $region95: #{tpu_custom_call.1} parent=5 // pred_region
        // Predicated region
        $region97: #{tpu_custom_call.1} parent=95 // pred_check
          %p750 = pneg %p63
        $region98: #{tpu_custom_call.1} parent=95 // pred_check_branch
          %752 = sbr.rel (%p750) target = $region100
        $region99: #{tpu_custom_call.1} parent=95 // pred_region
          %s753 = sand.u32 %s53, 1
          %s754 = scalar_lea.sflag [#allocation3], %s753
          %s755 = sand.u32 %s53, 1
          %s756 = smul.addr %s755, 16
          %s757 = scalar_lea.vmem [#allocation2], %s756
          %759 = vsyncadd %s754, 0
          %s760 = smul.addr %s43, 2
          %s761 = smul.addr %s760, 8
          %s762 = scalar_lea.hbm %s0, %s761
          %s763 = sshll.u32 %s762, 4
          %s764 = int_to_ptr.hbm [resolvable:$true] %s763
          %s765 = sshll.u32 %s757, 4
          %s766 = int_to_ptr.vmem [resolvable:$true] %s765
          %771 = dma.hbm_to_vmem [thread:$0]  %s764, 256, %s766, %s754, 128, 128, 8
        $region100: #{tpu_custom_call.1} parent=95 // pred_fallthru
          _
        // Predicated region
        $region101: #{tpu_custom_call.1} parent=95 // pred_check
          %p772 = pneg %p89
        $region102: #{tpu_custom_call.1} parent=95 // pred_check_branch
          %774 = sbr.rel (%p772) target = $region104
        $region103: #{tpu_custom_call.1} parent=95 // pred_region
          %s775 = sand.u32 %s43, 1
          %s776 = scalar_lea.sflag [#allocation6], %s775
          %s777 = sand.u32 %s79, 1
          %s778 = smul.addr %s777, 8
          %s779 = scalar_lea.vmem [#allocation5], %s778
          %781 = vsyncadd %s776, 0
          %s782 = smul.addr %s43, 8
          %s783 = scalar_lea.hbm %s1, %s782
          %s785 = sshll.u32 %s783, 4
          %s786 = int_to_ptr.hbm [resolvable:$true] %s785
          %s787 = sshll.u32 %s779, 4
          %s788 = int_to_ptr.vmem [resolvable:$true] %s787
          %790 = dma.hbm_to_vmem [thread:$0]  %s786, 128, %s788, %s776
        $region104: #{tpu_custom_call.1} parent=95 // pred_fallthru
          _
        // Predicated region
        $region105: #{tpu_custom_call.1} parent=95 // pred_check
          %p791 = pneg %p115
        $region106: #{tpu_custom_call.1} parent=95 // pred_check_branch
          %793 = sbr.rel (%p791) target = $region108
        $region107: #{tpu_custom_call.1} parent=95 // pred_region
          %s794 = sand.u32 %s43, 1
          %s795 = scalar_lea.sflag [#allocation6], %s794
          %s796 = sand.u32 %s105, 1
          %s797 = scalar_lea.vmem [#allocation7], %s796
          %799 = vsyncadd %s795, 0
          %s800 = scalar_lea.hbm %s2, %s43
          %s802 = sshll.u32 %s800, 4
          %s803 = int_to_ptr.hbm [resolvable:$true] %s802
          %s804 = sshll.u32 %s797, 4
          %s805 = int_to_ptr.vmem [resolvable:$true] %s804
          %807 = dma.hbm_to_vmem [thread:$0]  %s803, 16, %s805, %s795
        $region108: #{tpu_custom_call.1} parent=95 // pred_fallthru
          _
      $region96: #{tpu_custom_call.1} parent=5 // pred_fallthru
        _
      %p808 = scmp.le.s32.totalorder 1, %s43
      %p809 = scmp.lt.s32.totalorder %s43, 3
      %p810 = pnand %p808, %p809
      %p811 = pneg %p810
      // Predicated region
      $region109: #{tpu_custom_call.1} parent=5 // pred_check
        _
      $region110: #{tpu_custom_call.1} parent=5 // pred_check_branch
        %813 = sbr.rel (%p810) target = $region112
      $region111: #{tpu_custom_call.1} parent=5 // pred_region
        %s814 = ssub.s32 %s43, 1
        %s815 = sand.u32 %s56, 1
        %s816 = scalar_lea.sflag [#allocation3], %s815
        %s817 = sand.u32 %s56, 1
        %s818 = smul.addr %s817, 16
        %s819 = scalar_lea.vmem [#allocation2], %s818
        // Predicated region
        $region113: #{tpu_custom_call.1} parent=111 // pred_check
          %p820 = pneg %p69
        $region114: #{tpu_custom_call.1} parent=111 // pred_check_branch
          %822 = sbr.rel (%p820) target = $region116
        $region115: #{tpu_custom_call.1} parent=111 // pred_region
          %824 = dma.done %s816, 256
        $region116: #{tpu_custom_call.1} parent=111 // pred_fallthru
          _
        %s825 = sand.u32 %s48, 1
        %s826 = scalar_lea.sflag [#allocation6], %s825
        %s827 = sand.u32 %s82, 1
        %s828 = smul.addr %s827, 8
        %s829 = scalar_lea.vmem [#allocation5], %s828
        // Predicated region
        $region117: #{tpu_custom_call.1} parent=111 // pred_check
          %p830 = pneg %p95
        $region118: #{tpu_custom_call.1} parent=111 // pred_check_branch
          %832 = sbr.rel (%p830) target = $region120
        $region119: #{tpu_custom_call.1} parent=111 // pred_region
          %834 = dma.done %s826, 128
        $region120: #{tpu_custom_call.1} parent=111 // pred_fallthru
          _
        %s835 = sand.u32 %s48, 1
        %s836 = scalar_lea.sflag [#allocation6], %s835
        %s837 = sand.u32 %s108, 1
        %s838 = scalar_lea.vmem [#allocation7], %s837
        // Predicated region
        $region121: #{tpu_custom_call.1} parent=111 // pred_check
          %p839 = pneg %p121
        $region122: #{tpu_custom_call.1} parent=111 // pred_check_branch
          %841 = sbr.rel (%p839) target = $region124
        $region123: #{tpu_custom_call.1} parent=111 // pred_region
          %843 = dma.done %s836, 16
        $region124: #{tpu_custom_call.1} parent=111 // pred_fallthru
          _
        // Predicated region
        $region125: #{tpu_custom_call.1} parent=111 // pred_check
          %p844 = pneg %p142
        $region126: #{tpu_custom_call.1} parent=111 // pred_check_branch
          %846 = sbr.rel (%p844) target = $region128
        $region127: #{tpu_custom_call.1} parent=111 // pred_region
          %848 = dma.done [#allocation9], 16
        $region128: #{tpu_custom_call.1} parent=111 // pred_fallthru
          _
        // Predicated region
        $region129: #{tpu_custom_call.1} parent=111 // pred_check
          %p849 = pneg %p163
        $region130: #{tpu_custom_call.1} parent=111 // pred_check_branch
          %851 = sbr.rel (%p849) target = $region132
        $region131: #{tpu_custom_call.1} parent=111 // pred_region
          %853 = dma.done [#allocation9], 16
        $region132: #{tpu_custom_call.1} parent=111 // pred_fallthru
          _
        // Predicated region
        $region133: #{tpu_custom_call.1} parent=111 // pred_check
          %p854 = pneg %p184
        $region134: #{tpu_custom_call.1} parent=111 // pred_check_branch
          %856 = sbr.rel (%p854) target = $region136
        $region135: #{tpu_custom_call.1} parent=111 // pred_region
          %858 = dma.done [#allocation12], 3072
        $region136: #{tpu_custom_call.1} parent=111 // pred_fallthru
          _
        // Predicated region
        $region137: #{tpu_custom_call.1} parent=111 // pred_check
          %p859 = pneg %p226
        $region138: #{tpu_custom_call.1} parent=111 // pred_check_branch
          %861 = sbr.rel (%p859) target = $region140
        $region139: #{tpu_custom_call.1} parent=111 // pred_region
          %863 = dma.done [#allocation12], 1024
        $region140: #{tpu_custom_call.1} parent=111 // pred_fallthru
          _
        // Predicated region
        $region141: #{tpu_custom_call.1} parent=111 // pred_check
          %p864 = pneg %p247
        $region142: #{tpu_custom_call.1} parent=111 // pred_check_branch
          %866 = sbr.rel (%p864) target = $region144
        $region143: #{tpu_custom_call.1} parent=111 // pred_region
          %868 = dma.done [#allocation15], 16
        $region144: #{tpu_custom_call.1} parent=111 // pred_fallthru
          _
        // Predicated region
        $region145: #{tpu_custom_call.1} parent=111 // pred_check
          %p869 = pneg %p310
        $region146: #{tpu_custom_call.1} parent=111 // pred_check_branch
          %871 = sbr.rel (%p869) target = $region148
        $region147: #{tpu_custom_call.1} parent=111 // pred_region
          %873 = dma.done [#allocation15], 1024
        $region148: #{tpu_custom_call.1} parent=111 // pred_fallthru
          _
        // Predicated region
        $region149: #{tpu_custom_call.1} parent=111 // pred_check
          %p874 = pneg %p352
        $region150: #{tpu_custom_call.1} parent=111 // pred_check_branch
          %876 = sbr.rel (%p874) target = $region152
        $region151: #{tpu_custom_call.1} parent=111 // pred_region
          %878 = dma.done [#allocation18], 2048
        $region152: #{tpu_custom_call.1} parent=111 // pred_fallthru
          _
        // Predicated region
        $region153: #{tpu_custom_call.1} parent=111 // pred_check
          %p879 = pneg %p394
        $region154: #{tpu_custom_call.1} parent=111 // pred_check_branch
          %881 = sbr.rel (%p879) target = $region156
        $region155: #{tpu_custom_call.1} parent=111 // pred_region
          %883 = dma.done [#allocation18], 1024
        $region156: #{tpu_custom_call.1} parent=111 // pred_fallthru
          _
        // Predicated region
        $region157: #{tpu_custom_call.1} parent=111 // pred_check
          %p884 = pneg %p478
        $region158: #{tpu_custom_call.1} parent=111 // pred_check_branch
          %886 = sbr.rel (%p884) target = $region160
        $region159: #{tpu_custom_call.1} parent=111 // pred_region
          %888 = dma.done [#allocation21], 2048
        $region160: #{tpu_custom_call.1} parent=111 // pred_fallthru
          _
        // Predicated region
        $region161: #{tpu_custom_call.1} parent=111 // pred_check
          %p889 = pneg %p520
        $region162: #{tpu_custom_call.1} parent=111 // pred_check_branch
          %891 = sbr.rel (%p889) target = $region164
        $region163: #{tpu_custom_call.1} parent=111 // pred_region
          %893 = dma.done [#allocation21], 2048
        $region164: #{tpu_custom_call.1} parent=111 // pred_fallthru
          _
        %s894 = sand.u32 %s56, 1
        %s895 = scalar_lea.sflag [#allocation3], %s894
        %s896 = sand.u32 %s56, 1
        %s897 = smul.addr %s896, 16
        %s898 = scalar_lea.vmem [#allocation2], %s897
        %p899 = pneg %p69
        %p900 = pneg %p66
        %s901 = sand.u32 %s48, 1
        %s902 = scalar_lea.sflag [#allocation6], %s901
        %s903 = sand.u32 %s82, 1
        %s904 = smul.addr %s903, 8
        %s905 = scalar_lea.vmem [#allocation5], %s904
        %p906 = pneg %p95
        %p907 = pneg %p92
        %s908 = sand.u32 %s48, 1
        %s909 = scalar_lea.sflag [#allocation6], %s908
        %s910 = sand.u32 %s108, 1
        %s911 = scalar_lea.vmem [#allocation7], %s910
        %p912 = pneg %p121
        %p913 = pneg %p118
        %p914 = pneg %p142
        %p915 = pneg %p139
        %p916 = pneg %p163
        %p917 = pneg %p160
        %p918 = pneg %p184
        %p919 = pneg %p181
        %p920 = pneg %p205
        %p921 = pneg %p202
        %p922 = pneg %p226
        %p923 = pneg %p223
        %p924 = pneg %p247
        %p925 = pneg %p244
        %p926 = pneg %p268
        %p927 = pneg %p265
        %p928 = pneg %p289
        %p929 = pneg %p286
        %p930 = pneg %p310
        %p931 = pneg %p307
        %p932 = pneg %p331
        %p933 = pneg %p328
        %p934 = pneg %p352
        %p935 = pneg %p349
        %p936 = pneg %p373
        %p937 = pneg %p370
        %p938 = pneg %p394
        %p939 = pneg %p391
        %p940 = pneg %p415
        %p941 = pneg %p412
        %p942 = pneg %p436
        %p943 = pneg %p433
        %p944 = pneg %p457
        %p945 = pneg %p454
        %p946 = pneg %p478
        %p947 = pneg %p475
        %p948 = pneg %p499
        %p949 = pneg %p496
        %p950 = pneg %p520
        %p951 = pneg %p517
        %p952 = pneg %p541
        %p953 = pneg %p538
        %p954 = pneg %p567
        %p955 = pneg %p564
        %s956 = sand.u32 %s554, 1
        %s957 = scalar_lea.sflag [#allocation4], %s956
        %s958 = sand.u32 %s554, 1
        %s959 = smul.addr %s958, 16
        %s960 = scalar_lea.vmem [#allocation23], %s959
        %v962 = vld [vmem:[%s819] sm:$0xff]
        %v963 = vld [vmem:[%s819 + $0x8] sm:$0xff]
        %v964 = vld [vmem:[%s829] sm:$0xff]
        %v965 = vld [vmem:[%s838] sm:$0x1]
        %vm966 = vcmp.gt.f32.partialorder %v965, 0.0
        %v967 = vld [vmem:[#allocation8] sm:$0x1]
        %v968 = vld [vmem:[#allocation10] sm:$0x1]
        %969 = vadd.xlane.f32.xlu0 %v962
        %v970 = vpop.xlane.xlu0 %969
        %971 = vadd.xlane.f32.xlu0 %v963
        %v972 = vpop.xlane.xlu0 %971
        %v973 = vrcp.pop 128.0
        %v974 = vmul.f32 128.0, %v973
        %v975 = vsub.f32 1.0, %v974
        %v976 = vmul.f32 %v973, %v975
        %v977 = vadd.f32 %v973, %v976
        %vm978 = vweird.f32 %v973
        %v979 = vsel %vm978, %v973, %v977
        %v980 = vmul.f32 %v970, %v979
        %v981 = vmul.f32 %v972, %v979
        %v982 = vsub.f32 %v962, %v980
        %v983 = vsub.f32 %v963, %v981
        %v984 = vmul.f32 %v982, %v982
        %v985 = vmul.f32 %v983, %v983
        %986 = vadd.xlane.f32.xlu0 %v984
        %v987 = vpop.xlane.xlu0 %986
        %988 = vadd.xlane.f32.xlu0 %v985
        %v989 = vpop.xlane.xlu0 %988
        %v990 = vmul.f32 %v987, %v979
        %v991 = vmul.f32 %v989, %v979
        %v992 = vadd.f32 %v990, 1e-06
        %v993 = vadd.f32 %v991, 1e-06
        %v994 = vrsqrt.pop %v992
        %v995 = vmul.f32 %v994, %v992
        %v996 = vmul.f32 %v995, %v994
        %v997 = vmul.f32 0.5, %v996
        %v998 = vsub.f32 1.5, %v997
        %v999 = vmul.f32 %v994, %v998
        %vm1000 = vweird.f32 %v992
        %vm1001 = vweird.f32 %v994
        %vm1002 = vmor %vm1000, %vm1001
        %v1003 = vsel %vm1002, %v994, %v999
        %v1004 = vrsqrt.pop %v993
        %v1005 = vmul.f32 %v1004, %v993
        %v1006 = vmul.f32 %v1005, %v1004
        %v1007 = vmul.f32 0.5, %v1006
        %v1008 = vsub.f32 1.5, %v1007
        %v1009 = vmul.f32 %v1004, %v1008
        %vm1010 = vweird.f32 %v993
        %vm1011 = vweird.f32 %v1004
        %vm1012 = vmor %vm1010, %vm1011
        %v1013 = vsel %vm1012, %v1004, %v1009
        %v1014 = vmul.f32 %v982, %v1003
        %v1015 = vmul.f32 %v983, %v1013
        %v1017 = vperm.slane %v967, 0
        %v1019 = vmul.f32 %v1014, %v1017
        %v1020 = vmul.f32 %v1015, %v1017
        %v1022 = vperm.slane %v968, 0
        %v1024 = vadd.f32 %v1019, %v1022
        %v1025 = vadd.f32 %v1020, %v1022
        %v1026 = vpack.c.bf16 %v1025, %v1024
        %v1027 = vld [vmem:[#allocation11] sm:$0xff]
        %v1028 = vld [vmem:[#allocation11 + $0x8] sm:$0xf]
        %v1029 = vld [vmem:[#allocation11 + $0xc] sm:$0xff]
        %v1030 = vld [vmem:[#allocation11 + $0x14] sm:$0xf]
        %v1031 = vld [vmem:[#allocation11 + $0x18] sm:$0xff]
        %v1032 = vld [vmem:[#allocation11 + $0x20] sm:$0xf]
        %v1033 = vld [vmem:[#allocation11 + $0x24] sm:$0xff]
        %v1034 = vld [vmem:[#allocation11 + $0x2c] sm:$0xf]
        %v1035 = vld [vmem:[#allocation11 + $0x30] sm:$0xff]
        %v1036 = vld [vmem:[#allocation11 + $0x38] sm:$0xf]
        %v1037 = vld [vmem:[#allocation11 + $0x3c] sm:$0xff]
        %v1038 = vld [vmem:[#allocation11 + $0x44] sm:$0xf]
        %v1039 = vld [vmem:[#allocation11 + $0x48] sm:$0xff]
        %v1040 = vld [vmem:[#allocation11 + $0x50] sm:$0xf]
        %v1041 = vld [vmem:[#allocation11 + $0x54] sm:$0xff]
        %v1042 = vld [vmem:[#allocation11 + $0x5c] sm:$0xf]
        %v1043 = vld [vmem:[#allocation11 + $0x60] sm:$0xff]
        %v1044 = vld [vmem:[#allocation11 + $0x68] sm:$0xf]
        %v1045 = vld [vmem:[#allocation11 + $0x6c] sm:$0xff]
        %v1046 = vld [vmem:[#allocation11 + $0x74] sm:$0xf]
        %v1047 = vld [vmem:[#allocation11 + $0x78] sm:$0xff]
        %v1048 = vld [vmem:[#allocation11 + $0x80] sm:$0xf]
        %v1049 = vld [vmem:[#allocation11 + $0x84] sm:$0xff]
        %v1050 = vld [vmem:[#allocation11 + $0x8c] sm:$0xf]
        %v1051 = vld [vmem:[#allocation11 + $0x90] sm:$0xff]
        %v1052 = vld [vmem:[#allocation11 + $0x98] sm:$0xf]
        %v1053 = vld [vmem:[#allocation11 + $0x9c] sm:$0xff]
        %v1054 = vld [vmem:[#allocation11 + $0xa4] sm:$0xf]
        %v1055 = vld [vmem:[#allocation11 + $0xa8] sm:$0xff]
        %v1056 = vld [vmem:[#allocation11 + $0xb0] sm:$0xf]
        %v1057 = vld [vmem:[#allocation11 + $0xb4] sm:$0xff]
        %v1058 = vld [vmem:[#allocation11 + $0xbc] sm:$0xf]
        %v1059 = vld [vmem:[%s6] sm:$0x7]
        %v1061 = vperm.slane %v1059, 0
        %v1062 = vperm.slane %v1059, 1
        %v1063 = vperm.slane %v1059, 2
        %v1099 = vunpack.c.l.b16 %v1027
        %v1100 = vunpack.c.h.b16 %v1027
        %v1101 = vunpack.c.l.b16 %v1028
        %v1102 = vunpack.c.l.b16 %v1029
        %v1103 = vunpack.c.h.b16 %v1029
        %v1104 = vunpack.c.l.b16 %v1030
        %v1105 = vunpack.c.l.b16 %v1031
        %v1106 = vunpack.c.h.b16 %v1031
        %v1107 = vunpack.c.l.b16 %v1032
        %v1108 = vunpack.c.l.b16 %v1033
        %v1109 = vunpack.c.h.b16 %v1033
        %v1110 = vunpack.c.l.b16 %v1034
        %v1111 = vunpack.c.l.b16 %v1035
        %v1112 = vunpack.c.h.b16 %v1035
        %v1113 = vunpack.c.l.b16 %v1036
        %v1114 = vunpack.c.l.b16 %v1037
        %v1115 = vunpack.c.h.b16 %v1037
        %v1116 = vunpack.c.l.b16 %v1038
        %v1117 = vunpack.c.l.b16 %v1039
        %v1118 = vunpack.c.h.b16 %v1039
        %v1119 = vunpack.c.l.b16 %v1040
        %v1120 = vunpack.c.l.b16 %v1041
        %v1121 = vunpack.c.h.b16 %v1041
        %v1122 = vunpack.c.l.b16 %v1042
        %v1123 = vunpack.c.l.b16 %v1043
        %v1124 = vunpack.c.h.b16 %v1043
        %v1125 = vunpack.c.l.b16 %v1044
        %v1126 = vunpack.c.l.b16 %v1045
        %v1127 = vunpack.c.h.b16 %v1045
        %v1128 = vunpack.c.l.b16 %v1046
        %v1129 = vunpack.c.l.b16 %v1047
        %v1130 = vunpack.c.h.b16 %v1047
        %v1131 = vunpack.c.l.b16 %v1048
        %v1132 = vunpack.c.l.b16 %v1049
        %v1133 = vunpack.c.h.b16 %v1049
        %v1134 = vunpack.c.l.b16 %v1050
        %v1135 = vunpack.c.l.b16 %v1051
        %v1136 = vunpack.c.h.b16 %v1051
        %v1137 = vunpack.c.l.b16 %v1052
        %v1138 = vunpack.c.l.b16 %v1053
        %v1139 = vunpack.c.h.b16 %v1053
        %v1140 = vunpack.c.l.b16 %v1054
        %v1141 = vunpack.c.l.b16 %v1055
        %v1142 = vunpack.c.h.b16 %v1055
        %v1143 = vunpack.c.l.b16 %v1056
        %v1144 = vunpack.c.l.b16 %v1057
        %v1145 = vunpack.c.h.b16 %v1057
        %v1146 = vunpack.c.l.b16 %v1058
        %v1147 = vpack.c.b16 %v1102, %v1099
        %v1148 = vpack.c.b16 %v1103, %v1100
        %v1149 = vpack.c.b16 %v1104, %v1101
        %v1150 = vpack.c.b16 %v1108, %v1105
        %v1151 = vpack.c.b16 %v1109, %v1106
        %v1152 = vpack.c.b16 %v1110, %v1107
        %v1153 = vpack.c.b16 %v1114, %v1111
        %v1154 = vpack.c.b16 %v1115, %v1112
        %v1155 = vpack.c.b16 %v1116, %v1113
        %v1156 = vpack.c.b16 %v1120, %v1117
        %v1157 = vpack.c.b16 %v1121, %v1118
        %v1158 = vpack.c.b16 %v1122, %v1119
        %v1159 = vpack.c.b16 %v1126, %v1123
        %v1160 = vpack.c.b16 %v1127, %v1124
        %v1161 = vpack.c.b16 %v1128, %v1125
        %v1162 = vpack.c.b16 %v1132, %v1129
        %v1163 = vpack.c.b16 %v1133, %v1130
        %v1164 = vpack.c.b16 %v1134, %v1131
        %v1165 = vpack.c.b16 %v1138, %v1135
        %v1166 = vpack.c.b16 %v1139, %v1136
        %v1167 = vpack.c.b16 %v1140, %v1137
        %v1168 = vpack.c.b16 %v1144, %v1141
        %v1169 = vpack.c.b16 %v1145, %v1142
        %v1170 = vpack.c.b16 %v1146, %v1143
        %1195 = vmatpush.bf16.msra.mxu0 %v1168
        %1196 = vmatpush.bf16.msra.mxu0 %v1165
        %1197 = vmatpush.bf16.msra.mxu0 %v1162
        %1198 = vmatpush.bf16.msra.mxu0 %v1159
        %1199 = vmatpush.bf16.msra.mxu0 %v1156
        %1200 = vmatpush.bf16.msra.mxu0 %v1153
        %1201 = vmatpush.bf16.msra.mxu0 %v1150
        %1202 = vmatpush.bf16.msra.mxu0 %v1147
        %1203 = vmatmul.bf16.gmra.mxu0 %v1026
        %v1204 = vpop.f32.mrf.mxu0
        %v1205 = vadd.f32 %v1061, %v1204
        %v1206 = vpop.f32.mrf.mxu0
        %v1207 = vadd.f32 %v1061, %v1206
        %1208 = vdwg.mxu0
        %1209 = vmatpush.bf16.msra.mxu0 %v1169
        %1210 = vmatpush.bf16.msra.mxu0 %v1166
        %1211 = vmatpush.bf16.msra.mxu0 %v1163
        %1212 = vmatpush.bf16.msra.mxu0 %v1160
        %1213 = vmatpush.bf16.msra.mxu0 %v1157
        %1214 = vmatpush.bf16.msra.mxu0 %v1154
        %1215 = vmatpush.bf16.msra.mxu0 %v1151
        %1216 = vmatpush.bf16.msra.mxu0 %v1148
        %1217 = vmatmul.bf16.gmra.mxu0 %v1026
        %v1218 = vpop.f32.mrf.mxu0
        %v1219 = vadd.f32 %v1062, %v1218
        %v1220 = vpop.f32.mrf.mxu0
        %v1221 = vadd.f32 %v1062, %v1220
        %1222 = vdwg.mxu0
        %1223 = vmatpush.bf16.msra.mxu0 %v1170
        %1224 = vmatpush.bf16.msra.mxu0 %v1167
        %1225 = vmatpush.bf16.msra.mxu0 %v1164
        %1226 = vmatpush.bf16.msra.mxu0 %v1161
        %1227 = vmatpush.bf16.msra.mxu0 %v1158
        %1228 = vmatpush.bf16.msra.mxu0 %v1155
        %1229 = vmatpush.bf16.msra.mxu0 %v1152
        %1230 = vmatpush.bf16.msra.mxu0 %v1149
        %1231 = vmatmul.bf16.gmra.mxu0 %v1026
        %v1232 = vpop.f32.mrf.mxu0
        %v1233 = vadd.f32 %v1063, %v1232
        %v1234 = vpop.f32.mrf.mxu0
        %v1235 = vadd.f32 %v1063, %v1234
        %1236 = vdwg.mxu0
        %v1237 = vlaneseq
        %v1238 = vshrl.u32 %v1237, 7
        %v1239 = vadd.s32 %v1238, 8
        %v1240 = vlaneseq
        %v1241 = vand.u32 %v1240, 127
        %vm1242 = vcmp.ge.s32.totalorder %v1238, %v1241
        %vm1243 = vcmp.ge.s32.totalorder %v1239, %v1241
        %1246 = vrot.lane.b32.xlu0 %v1205, 96
        %v1247 = vpop.permute.xlu0 %1246
        %1248 = vrot.lane.b32.xlu0 %v1207, 96
        %v1249 = vpop.permute.xlu0 %1248
        %1252 = vrot.lane.b32.xlu0 %v1205, 64
        %v1253 = vpop.permute.xlu0 %1252
        %1254 = vrot.lane.b32.xlu0 %v1207, 64
        %v1255 = vpop.permute.xlu0 %1254
        %1258 = vrot.lane.b32.xlu0 %v1205, 32
        %v1259 = vpop.permute.xlu0 %1258
        %1260 = vrot.lane.b32.xlu0 %v1207, 32
        %v1261 = vpop.permute.xlu0 %1260
        %v1264 = vpack.c.bf16 %v1205, %v1205
        %v1265 = vpack.c.bf16 %v1207, %v1207
        %v1266 = vpack.c.bf16 %v1247, %v1247
        %v1267 = vpack.c.bf16 %v1249, %v1249
        %v1268 = vpack.c.bf16 %v1253, %v1253
        %v1269 = vpack.c.bf16 %v1255, %v1255
        %v1270 = vpack.c.bf16 %v1259, %v1259
        %v1271 = vpack.c.bf16 %v1261, %v1261
        %1274 = vrot.lane.b32.xlu0 %v1219, 96
        %v1275 = vpop.permute.xlu0 %1274
        %1276 = vrot.lane.b32.xlu0 %v1221, 96
        %v1277 = vpop.permute.xlu0 %1276
        %1280 = vrot.lane.b32.xlu0 %v1219, 64
        %v1281 = vpop.permute.xlu0 %1280
        %1282 = vrot.lane.b32.xlu0 %v1221, 64
        %v1283 = vpop.permute.xlu0 %1282
        %1286 = vrot.lane.b32.xlu0 %v1219, 32
        %v1287 = vpop.permute.xlu0 %1286
        %1288 = vrot.lane.b32.xlu0 %v1221, 32
        %v1289 = vpop.permute.xlu0 %1288
        %v1292 = vpack.c.bf16 %v1219, %v1219
        %v1293 = vpack.c.bf16 %v1221, %v1221
        %v1294 = vpack.c.bf16 %v1275, %v1275
        %v1295 = vpack.c.bf16 %v1277, %v1277
        %v1296 = vpack.c.bf16 %v1281, %v1281
        %v1297 = vpack.c.bf16 %v1283, %v1283
        %v1298 = vpack.c.bf16 %v1287, %v1287
        %v1299 = vpack.c.bf16 %v1289, %v1289
        %1302 = vrot.lane.b32.xlu0 %v1233, 96
        %v1303 = vpop.permute.xlu0 %1302
        %1304 = vrot.lane.b32.xlu0 %v1235, 96
        %v1305 = vpop.permute.xlu0 %1304
        %1308 = vrot.lane.b32.xlu0 %v1233, 64
        %v1309 = vpop.permute.xlu0 %1308
        %1310 = vrot.lane.b32.xlu0 %v1235, 64
        %v1311 = vpop.permute.xlu0 %1310
        %1314 = vrot.lane.b32.xlu0 %v1233, 32
        %v1315 = vpop.permute.xlu0 %1314
        %1316 = vrot.lane.b32.xlu0 %v1235, 32
        %v1317 = vpop.permute.xlu0 %1316
        %v1320 = vpack.c.bf16 %v1233, %v1233
        %v1321 = vpack.c.bf16 %v1235, %v1235
        %v1322 = vpack.c.bf16 %v1303, %v1303
        %v1323 = vpack.c.bf16 %v1305, %v1305
        %v1324 = vpack.c.bf16 %v1309, %v1309
        %v1325 = vpack.c.bf16 %v1311, %v1311
        %v1326 = vpack.c.bf16 %v1315, %v1315
        %v1327 = vpack.c.bf16 %v1317, %v1317
        %v1330 = vunpack.c.l.b16 %v1264
        %v1331 = vunpack.c.l.b16 %v1265
        %v1332 = vpack.c.b16 %v1331, %v1330
        %v1335 = vunpack.c.l.b16 %v1292
        %v1336 = vunpack.c.l.b16 %v1293
        %v1337 = vpack.c.b16 %v1336, %v1335
        %vm1338 = vcmask 261120
        %v1340 = vsel %vm1338, %v1332, 0
        %v1343 = vsel %vm1338, %v1337, 0
        %1345 = vmatpush.bf16.xpose.msra.mxu0 0
        %1346 = vmatpush.bf16.xpose.msra.mxu0 0
        %1347 = vmatpush.bf16.xpose.msra.mxu0 0
        %1348 = vmatpush.bf16.xpose.msra.mxu0 0
        %1349 = vmatpush.bf16.xpose.msra.mxu0 0
        %1350 = vmatpush.bf16.xpose.msra.mxu0 0
        %1351 = vmatpush.bf16.xpose.msra.mxu0 0
        %1352 = vmatpush.bf16.xpose.msra.mxu0 %v1343
        %1353 = vmatmul.bf16.gmra.mxu0 %v1340
        %v1354 = vpop.f32.mrf.mxu0
        %v1355 = vadd.f32 0.0, %v1354
        %v1356 = vpop.f32.mrf.mxu0
        %v1357 = vadd.f32 0.0, %v1356
        %1358 = vdwg.mxu0
        %v1361 = vunpack.c.l.b16 %v1266
        %v1362 = vunpack.c.l.b16 %v1267
        %v1363 = vpack.c.b16 %v1362, %v1361
        %v1366 = vunpack.c.l.b16 %v1294
        %v1367 = vunpack.c.l.b16 %v1295
        %v1368 = vpack.c.b16 %v1367, %v1366
        %v1370 = vsel %vm1338, %v1363, 0
        %v1373 = vsel %vm1338, %v1368, 0
        %1375 = vmatpush.bf16.xpose.msra.mxu0 0
        %1376 = vmatpush.bf16.xpose.msra.mxu0 0
        %1377 = vmatpush.bf16.xpose.msra.mxu0 0
        %1378 = vmatpush.bf16.xpose.msra.mxu0 0
        %1379 = vmatpush.bf16.xpose.msra.mxu0 0
        %1380 = vmatpush.bf16.xpose.msra.mxu0 0
        %1381 = vmatpush.bf16.xpose.msra.mxu0 0
        %1382 = vmatpush.bf16.xpose.msra.mxu0 %v1373
        %1383 = vmatmul.bf16.gmra.mxu0 %v1370
        %v1384 = vpop.f32.mrf.mxu0
        %v1385 = vadd.f32 0.0, %v1384
        %v1386 = vpop.f32.mrf.mxu0
        %v1387 = vadd.f32 0.0, %v1386
        %1388 = vdwg.mxu0
        %v1391 = vunpack.c.l.b16 %v1268
        %v1392 = vunpack.c.l.b16 %v1269
        %v1393 = vpack.c.b16 %v1392, %v1391
        %v1396 = vunpack.c.l.b16 %v1296
        %v1397 = vunpack.c.l.b16 %v1297
        %v1398 = vpack.c.b16 %v1397, %v1396
        %v1400 = vsel %vm1338, %v1393, 0
        %v1403 = vsel %vm1338, %v1398, 0
        %1405 = vmatpush.bf16.xpose.msra.mxu0 0
        %1406 = vmatpush.bf16.xpose.msra.mxu0 0
        %1407 = vmatpush.bf16.xpose.msra.mxu0 0
        %1408 = vmatpush.bf16.xpose.msra.mxu0 0
        %1409 = vmatpush.bf16.xpose.msra.mxu0 0
        %1410 = vmatpush.bf16.xpose.msra.mxu0 0
        %1411 = vmatpush.bf16.xpose.msra.mxu0 0
        %1412 = vmatpush.bf16.xpose.msra.mxu0 %v1403
        %1413 = vmatmul.bf16.gmra.mxu0 %v1400
        %v1414 = vpop.f32.mrf.mxu0
        %v1415 = vadd.f32 0.0, %v1414
        %v1416 = vpop.f32.mrf.mxu0
        %v1417 = vadd.f32 0.0, %v1416
        %1418 = vdwg.mxu0
        %v1421 = vunpack.c.l.b16 %v1270
        %v1422 = vunpack.c.l.b16 %v1271
        %v1423 = vpack.c.b16 %v1422, %v1421
        %v1426 = vunpack.c.l.b16 %v1298
        %v1427 = vunpack.c.l.b16 %v1299
        %v1428 = vpack.c.b16 %v1427, %v1426
        %v1430 = vsel %vm1338, %v1423, 0
        %v1433 = vsel %vm1338, %v1428, 0
        %1435 = vmatpush.bf16.xpose.msra.mxu0 0
        %1436 = vmatpush.bf16.xpose.msra.mxu0 0
        %1437 = vmatpush.bf16.xpose.msra.mxu0 0
        %1438 = vmatpush.bf16.xpose.msra.mxu0 0
        %1439 = vmatpush.bf16.xpose.msra.mxu0 0
        %1440 = vmatpush.bf16.xpose.msra.mxu0 0
        %1441 = vmatpush.bf16.xpose.msra.mxu0 0
        %1442 = vmatpush.bf16.xpose.msra.mxu0 %v1433
        %1443 = vmatmul.bf16.gmra.mxu0 %v1430
        %v1444 = vpop.f32.mrf.mxu0
        %v1445 = vadd.f32 0.0, %v1444
        %v1446 = vpop.f32.mrf.mxu0
        %v1447 = vadd.f32 0.0, %v1446
        %1448 = vdwg.mxu0
        %v1449 = vmul.f32 %v1355, 0.17677669
        %v1450 = vmul.f32 %v1357, 0.17677669
        %v1451 = vmul.f32 %v1385, 0.17677669
        %v1452 = vmul.f32 %v1387, 0.17677669
        %v1453 = vmul.f32 %v1415, 0.17677669
        %v1454 = vmul.f32 %v1417, 0.17677669
        %v1455 = vmul.f32 %v1445, 0.17677669
        %v1456 = vmul.f32 %v1447, 0.17677669
        %v1457 = vsel %vm1242, 1, 0
        %v1458 = vsel %vm1243, 1, 0
        %vm1459 = vcmp.eq.s32.totalorder %v1457, 1
        %vm1460 = vcmp.eq.s32.totalorder %v1458, 1
        %v1461 = vsel %vm1459, %v1449, -1e+09
        %v1462 = vsel %vm1460, %v1450, -1e+09
        %v1463 = vsel %vm1459, %v1451, -1e+09
        %v1464 = vsel %vm1460, %v1452, -1e+09
        %v1465 = vsel %vm1459, %v1453, -1e+09
        %v1466 = vsel %vm1460, %v1454, -1e+09
        %v1467 = vsel %vm1459, %v1455, -1e+09
        %v1468 = vsel %vm1460, %v1456, -1e+09
        %vm1469 = vcmask 130048
        %v1470 = vsel %vm1469, %v1461, -inf
        %1471 = vmax.xlane.f32.xlu0 %v1470
        %v1472 = vpop.xlane.xlu0 %1471
        %v1473 = vsel %vm1469, %v1462, -inf
        %1474 = vmax.xlane.f32.xlu0 %v1473
        %v1475 = vpop.xlane.xlu0 %1474
        %v1476 = vsel %vm1469, %v1463, -inf
        %1477 = vmax.xlane.f32.xlu0 %v1476
        %v1478 = vpop.xlane.xlu0 %1477
        %v1479 = vsel %vm1469, %v1464, -inf
        %1480 = vmax.xlane.f32.xlu0 %v1479
        %v1481 = vpop.xlane.xlu0 %1480
        %v1482 = vsel %vm1469, %v1465, -inf
        %1483 = vmax.xlane.f32.xlu0 %v1482
        %v1484 = vpop.xlane.xlu0 %1483
        %v1485 = vsel %vm1469, %v1466, -inf
        %1486 = vmax.xlane.f32.xlu0 %v1485
        %v1487 = vpop.xlane.xlu0 %1486
        %v1488 = vsel %vm1469, %v1467, -inf
        %1489 = vmax.xlane.f32.xlu0 %v1488
        %v1490 = vpop.xlane.xlu0 %1489
        %v1491 = vsel %vm1469, %v1468, -inf
        %1492 = vmax.xlane.f32.xlu0 %v1491
        %v1493 = vpop.xlane.xlu0 %1492
        %v1494 = vsub.f32 %v1461, %v1472
        %v1495 = vsub.f32 %v1462, %v1475
        %v1496 = vsub.f32 %v1463, %v1478
        %v1497 = vsub.f32 %v1464, %v1481
        %v1498 = vsub.f32 %v1465, %v1484
        %v1499 = vsub.f32 %v1466, %v1487
        %v1500 = vsub.f32 %v1467, %v1490
        %v1501 = vsub.f32 %v1468, %v1493
        %v1502 = vmul.f32 %v1494, 1.442695
        %v1503 = vpow.pop %v1502
        %v1504 = vmul.f32 %v1495, 1.442695
        %v1505 = vpow.pop %v1504
        %v1506 = vmul.f32 %v1496, 1.442695
        %v1507 = vpow.pop %v1506
        %v1508 = vmul.f32 %v1497, 1.442695
        %v1509 = vpow.pop %v1508
        %v1510 = vmul.f32 %v1498, 1.442695
        %v1511 = vpow.pop %v1510
        %v1512 = vmul.f32 %v1499, 1.442695
        %v1513 = vpow.pop %v1512
        %v1514 = vmul.f32 %v1500, 1.442695
        %v1515 = vpow.pop %v1514
        %v1516 = vmul.f32 %v1501, 1.442695
        %v1517 = vpow.pop %v1516
        %v1518 = vsel %vm1469, %v1503, 0.0
        %1519 = vadd.xlane.f32.xlu0 %v1518
        %v1520 = vpop.xlane.xlu0 %1519
        %v1521 = vsel %vm1469, %v1505, 0.0
        %1522 = vadd.xlane.f32.xlu0 %v1521
        %v1523 = vpop.xlane.xlu0 %1522
        %v1524 = vsel %vm1469, %v1507, 0.0
        %1525 = vadd.xlane.f32.xlu0 %v1524
        %v1526 = vpop.xlane.xlu0 %1525
        %v1527 = vsel %vm1469, %v1509, 0.0
        %1528 = vadd.xlane.f32.xlu0 %v1527
        %v1529 = vpop.xlane.xlu0 %1528
        %v1530 = vsel %vm1469, %v1511, 0.0
        %1531 = vadd.xlane.f32.xlu0 %v1530
        %v1532 = vpop.xlane.xlu0 %1531
        %v1533 = vsel %vm1469, %v1513, 0.0
        %1534 = vadd.xlane.f32.xlu0 %v1533
        %v1535 = vpop.xlane.xlu0 %1534
        %v1536 = vsel %vm1469, %v1515, 0.0
        %1537 = vadd.xlane.f32.xlu0 %v1536
        %v1538 = vpop.xlane.xlu0 %1537
        %v1539 = vsel %vm1469, %v1517, 0.0
        %1540 = vadd.xlane.f32.xlu0 %v1539
        %v1541 = vpop.xlane.xlu0 %1540
        %v1542 = vrcp.pop %v1520
        %v1543 = vrcp.pop %v1523
        %v1544 = vrcp.pop %v1526
        %v1545 = vrcp.pop %v1529
        %v1546 = vrcp.pop %v1532
        %v1547 = vrcp.pop %v1535
        %v1548 = vrcp.pop %v1538
        %v1549 = vrcp.pop %v1541
        %v1550 = vmul.f32 %v1503, %v1542
        %v1551 = vmul.f32 %v1505, %v1543
        %v1552 = vmul.f32 %v1507, %v1544
        %v1553 = vmul.f32 %v1509, %v1545
        %v1554 = vmul.f32 %v1511, %v1546
        %v1555 = vmul.f32 %v1513, %v1547
        %v1556 = vmul.f32 %v1515, %v1548
        %v1557 = vmul.f32 %v1517, %v1549
        %v1558 = vpack.c.bf16 %v1550, %v1550
        %v1559 = vpack.c.bf16 %v1551, %v1551
        %v1560 = vpack.c.bf16 %v1552, %v1552
        %v1561 = vpack.c.bf16 %v1553, %v1553
        %v1562 = vpack.c.bf16 %v1554, %v1554
        %v1563 = vpack.c.bf16 %v1555, %v1555
        %v1564 = vpack.c.bf16 %v1556, %v1556
        %v1565 = vpack.c.bf16 %v1557, %v1557
        %v1568 = vunpack.c.l.b16 %v1558
        %v1569 = vunpack.c.l.b16 %v1559
        %v1570 = vpack.c.b16 %v1569, %v1568
        %v1573 = vunpack.c.l.b16 %v1320
        %v1574 = vunpack.c.l.b16 %v1321
        %v1575 = vpack.c.b16 %v1574, %v1573
        %v1578 = vsel %vm1469, %v1570, 0
        %1580 = vmatpush.bf16.msra.mxu0 0
        %1581 = vmatpush.bf16.msra.mxu0 0
        %1582 = vmatpush.bf16.msra.mxu0 0
        %1583 = vmatpush.bf16.msra.mxu0 0
        %1584 = vmatpush.bf16.msra.mxu0 0
        %1585 = vmatpush.bf16.msra.mxu0 0
        %1586 = vmatpush.bf16.msra.mxu0 0
        %1587 = vmatpush.bf16.msra.mxu0 %v1575
        %1588 = vmatmul.bf16.gmra.mxu0 %v1578
        %v1589 = vpop.f32.mrf.mxu0
        %v1590 = vadd.f32 0.0, %v1589
        %v1591 = vpop.f32.mrf.mxu0
        %v1592 = vadd.f32 0.0, %v1591
        %1593 = vdwg.mxu0
        %v1596 = vunpack.c.l.b16 %v1560
        %v1597 = vunpack.c.l.b16 %v1561
        %v1598 = vpack.c.b16 %v1597, %v1596
        %v1601 = vunpack.c.l.b16 %v1322
        %v1602 = vunpack.c.l.b16 %v1323
        %v1603 = vpack.c.b16 %v1602, %v1601
        %v1606 = vsel %vm1469, %v1598, 0
        %1608 = vmatpush.bf16.msra.mxu0 0
        %1609 = vmatpush.bf16.msra.mxu0 0
        %1610 = vmatpush.bf16.msra.mxu0 0
        %1611 = vmatpush.bf16.msra.mxu0 0
        %1612 = vmatpush.bf16.msra.mxu0 0
        %1613 = vmatpush.bf16.msra.mxu0 0
        %1614 = vmatpush.bf16.msra.mxu0 0
        %1615 = vmatpush.bf16.msra.mxu0 %v1603
        %1616 = vmatmul.bf16.gmra.mxu0 %v1606
        %v1617 = vpop.f32.mrf.mxu0
        %v1618 = vadd.f32 0.0, %v1617
        %v1619 = vpop.f32.mrf.mxu0
        %v1620 = vadd.f32 0.0, %v1619
        %1621 = vdwg.mxu0
        %v1624 = vunpack.c.l.b16 %v1562
        %v1625 = vunpack.c.l.b16 %v1563
        %v1626 = vpack.c.b16 %v1625, %v1624
        %v1629 = vunpack.c.l.b16 %v1324
        %v1630 = vunpack.c.l.b16 %v1325
        %v1631 = vpack.c.b16 %v1630, %v1629
        %v1634 = vsel %vm1469, %v1626, 0
        %1636 = vmatpush.bf16.msra.mxu0 0
        %1637 = vmatpush.bf16.msra.mxu0 0
        %1638 = vmatpush.bf16.msra.mxu0 0
        %1639 = vmatpush.bf16.msra.mxu0 0
        %1640 = vmatpush.bf16.msra.mxu0 0
        %1641 = vmatpush.bf16.msra.mxu0 0
        %1642 = vmatpush.bf16.msra.mxu0 0
        %1643 = vmatpush.bf16.msra.mxu0 %v1631
        %1644 = vmatmul.bf16.gmra.mxu0 %v1634
        %v1645 = vpop.f32.mrf.mxu0
        %v1646 = vadd.f32 0.0, %v1645
        %v1647 = vpop.f32.mrf.mxu0
        %v1648 = vadd.f32 0.0, %v1647
        %1649 = vdwg.mxu0
        %v1652 = vunpack.c.l.b16 %v1564
        %v1653 = vunpack.c.l.b16 %v1565
        %v1654 = vpack.c.b16 %v1653, %v1652
        %v1657 = vunpack.c.l.b16 %v1326
        %v1658 = vunpack.c.l.b16 %v1327
        %v1659 = vpack.c.b16 %v1658, %v1657
        %v1662 = vsel %vm1469, %v1654, 0
        %1664 = vmatpush.bf16.msra.mxu0 0
        %1665 = vmatpush.bf16.msra.mxu0 0
        %1666 = vmatpush.bf16.msra.mxu0 0
        %1667 = vmatpush.bf16.msra.mxu0 0
        %1668 = vmatpush.bf16.msra.mxu0 0
        %1669 = vmatpush.bf16.msra.mxu0 0
        %1670 = vmatpush.bf16.msra.mxu0 0
        %1671 = vmatpush.bf16.msra.mxu0 %v1659
        %1672 = vmatmul.bf16.gmra.mxu0 %v1662
        %v1673 = vpop.f32.mrf.mxu0
        %v1674 = vadd.f32 0.0, %v1673
        %v1675 = vpop.f32.mrf.mxu0
        %v1676 = vadd.f32 0.0, %v1675
        %1677 = vdwg.mxu0
        %1680 = vrot.lane.b32.xlu0 %v1618, 32
        %v1681 = vpop.permute.xlu0 %1680
        %1682 = vrot.lane.b32.xlu0 %v1620, 32
        %v1683 = vpop.permute.xlu0 %1682
        %1688 = vrot.lane.b32.xlu0 %v1646, 64
        %v1689 = vpop.permute.xlu0 %1688
        %1690 = vrot.lane.b32.xlu0 %v1648, 64
        %v1691 = vpop.permute.xlu0 %1690
        %1696 = vrot.lane.b32.xlu0 %v1674, 96
        %v1697 = vpop.permute.xlu0 %1696
        %1698 = vrot.lane.b32.xlu0 %v1676, 96
        %v1699 = vpop.permute.xlu0 %1698
        %v1702 = vsel %vm1338, %v1590, %v1681
        %v1703 = vsel %vm1338, %v1592, %v1683
        %vm1704 = vcmask 523264
        %v1705 = vsel %vm1704, %v1702, %v1689
        %v1706 = vsel %vm1704, %v1703, %v1691
        %vm1707 = vcmask 785408
        %v1708 = vsel %vm1707, %v1705, %v1697
        %v1709 = vsel %vm1707, %v1706, %v1699
        %v1710 = vpack.c.bf16 %v1709, %v1708
        %v1711 = vld [vmem:[#allocation13] sm:$0xf]
        %v1712 = vld [vmem:[#allocation13 + $0x4] sm:$0xf]
        %v1713 = vld [vmem:[#allocation13 + $0x8] sm:$0xf]
        %v1714 = vld [vmem:[#allocation13 + $0xc] sm:$0xf]
        %v1715 = vld [vmem:[#allocation13 + $0x10] sm:$0xf]
        %v1716 = vld [vmem:[#allocation13 + $0x14] sm:$0xf]
        %v1717 = vld [vmem:[#allocation13 + $0x18] sm:$0xf]
        %v1718 = vld [vmem:[#allocation13 + $0x1c] sm:$0xf]
        %v1719 = vld [vmem:[#allocation13 + $0x20] sm:$0xf]
        %v1720 = vld [vmem:[#allocation13 + $0x24] sm:$0xf]
        %v1721 = vld [vmem:[#allocation13 + $0x28] sm:$0xf]
        %v1722 = vld [vmem:[#allocation13 + $0x2c] sm:$0xf]
        %v1723 = vld [vmem:[#allocation13 + $0x30] sm:$0xf]
        %v1724 = vld [vmem:[#allocation13 + $0x34] sm:$0xf]
        %v1725 = vld [vmem:[#allocation13 + $0x38] sm:$0xf]
        %v1726 = vld [vmem:[#allocation13 + $0x3c] sm:$0xf]
        %v1727 = vld [vmem:[#allocation14] sm:$0x1]
        %v1729 = vperm.slane %v1727, 0
        %v1747 = vunpack.c.l.b16 %v1711
        %v1748 = vunpack.c.l.b16 %v1712
        %v1749 = vunpack.c.l.b16 %v1713
        %v1750 = vunpack.c.l.b16 %v1714
        %v1751 = vunpack.c.l.b16 %v1715
        %v1752 = vunpack.c.l.b16 %v1716
        %v1753 = vunpack.c.l.b16 %v1717
        %v1754 = vunpack.c.l.b16 %v1718
        %v1755 = vunpack.c.l.b16 %v1719
        %v1756 = vunpack.c.l.b16 %v1720
        %v1757 = vunpack.c.l.b16 %v1721
        %v1758 = vunpack.c.l.b16 %v1722
        %v1759 = vunpack.c.l.b16 %v1723
        %v1760 = vunpack.c.l.b16 %v1724
        %v1761 = vunpack.c.l.b16 %v1725
        %v1762 = vunpack.c.l.b16 %v1726
        %v1763 = vpack.c.b16 %v1748, %v1747
        %v1764 = vpack.c.b16 %v1750, %v1749
        %v1765 = vpack.c.b16 %v1752, %v1751
        %v1766 = vpack.c.b16 %v1754, %v1753
        %v1767 = vpack.c.b16 %v1756, %v1755
        %v1768 = vpack.c.b16 %v1758, %v1757
        %v1769 = vpack.c.b16 %v1760, %v1759
        %v1770 = vpack.c.b16 %v1762, %v1761
        %1779 = vmatpush.bf16.msra.mxu0 %v1770
        %1780 = vmatpush.bf16.msra.mxu0 %v1769
        %1781 = vmatpush.bf16.msra.mxu0 %v1768
        %1782 = vmatpush.bf16.msra.mxu0 %v1767
        %1783 = vmatpush.bf16.msra.mxu0 %v1766
        %1784 = vmatpush.bf16.msra.mxu0 %v1765
        %1785 = vmatpush.bf16.msra.mxu0 %v1764
        %1786 = vmatpush.bf16.msra.mxu0 %v1763
        %1787 = vmatmul.bf16.gmra.mxu0 %v1710
        %v1788 = vpop.f32.mrf.mxu0
        %v1789 = vadd.f32 %v1729, %v1788
        %v1790 = vpop.f32.mrf.mxu0
        %v1791 = vadd.f32 %v1729, %v1790
        %1792 = vdwg.mxu0
        %v1793 = vadd.f32 %v962, %v1789
        %v1794 = vadd.f32 %v963, %v1791
        %v1795 = vld [vmem:[%s9] sm:$0x1]
        %v1796 = vld [vmem:[%s10] sm:$0x1]
        %1797 = vadd.xlane.f32.xlu0 %v1793
        %v1798 = vpop.xlane.xlu0 %1797
        %1799 = vadd.xlane.f32.xlu0 %v1794
        %v1800 = vpop.xlane.xlu0 %1799
        %v1801 = vmul.f32 %v1798, %v979
        %v1802 = vmul.f32 %v1800, %v979
        %v1803 = vsub.f32 %v1793, %v1801
        %v1804 = vsub.f32 %v1794, %v1802
        %v1805 = vmul.f32 %v1803, %v1803
        %v1806 = vmul.f32 %v1804, %v1804
        %1807 = vadd.xlane.f32.xlu0 %v1805
        %v1808 = vpop.xlane.xlu0 %1807
        %1809 = vadd.xlane.f32.xlu0 %v1806
        %v1810 = vpop.xlane.xlu0 %1809
        %v1811 = vmul.f32 %v1808, %v979
        %v1812 = vmul.f32 %v1810, %v979
        %v1813 = vadd.f32 %v1811, 1e-06
        %v1814 = vadd.f32 %v1812, 1e-06
        %v1815 = vrsqrt.pop %v1813
        %v1816 = vmul.f32 %v1815, %v1813
        %v1817 = vmul.f32 %v1816, %v1815
        %v1818 = vmul.f32 0.5, %v1817
        %v1819 = vsub.f32 1.5, %v1818
        %v1820 = vmul.f32 %v1815, %v1819
        %vm1821 = vweird.f32 %v1813
        %vm1822 = vweird.f32 %v1815
        %vm1823 = vmor %vm1821, %vm1822
        %v1824 = vsel %vm1823, %v1815, %v1820
        %v1825 = vrsqrt.pop %v1814
        %v1826 = vmul.f32 %v1825, %v1814
        %v1827 = vmul.f32 %v1826, %v1825
        %v1828 = vmul.f32 0.5, %v1827
        %v1829 = vsub.f32 1.5, %v1828
        %v1830 = vmul.f32 %v1825, %v1829
        %vm1831 = vweird.f32 %v1814
        %vm1832 = vweird.f32 %v1825
        %vm1833 = vmor %vm1831, %vm1832
        %v1834 = vsel %vm1833, %v1825, %v1830
        %v1835 = vmul.f32 %v1803, %v1824
        %v1836 = vmul.f32 %v1804, %v1834
        %v1838 = vperm.slane %v1795, 0
        %v1840 = vmul.f32 %v1835, %v1838
        %v1841 = vmul.f32 %v1836, %v1838
        %v1843 = vperm.slane %v1796, 0
        %v1845 = vadd.f32 %v1840, %v1843
        %v1846 = vadd.f32 %v1841, %v1843
        %v1847 = vpack.c.bf16 %v1846, %v1845
        %v1848 = vld [vmem:[#allocation16] sm:$0xf]
        %v1849 = vld [vmem:[#allocation16 + $0x4] sm:$0xf]
        %v1850 = vld [vmem:[#allocation16 + $0x8] sm:$0xf]
        %v1851 = vld [vmem:[#allocation16 + $0xc] sm:$0xf]
        %v1852 = vld [vmem:[#allocation16 + $0x10] sm:$0xf]
        %v1853 = vld [vmem:[#allocation16 + $0x14] sm:$0xf]
        %v1854 = vld [vmem:[#allocation16 + $0x18] sm:$0xf]
        %v1855 = vld [vmem:[#allocation16 + $0x1c] sm:$0xf]
        %v1856 = vld [vmem:[#allocation16 + $0x20] sm:$0xf]
        %v1857 = vld [vmem:[#allocation16 + $0x24] sm:$0xf]
        %v1858 = vld [vmem:[#allocation16 + $0x28] sm:$0xf]
        %v1859 = vld [vmem:[#allocation16 + $0x2c] sm:$0xf]
        %v1860 = vld [vmem:[#allocation16 + $0x30] sm:$0xf]
        %v1861 = vld [vmem:[#allocation16 + $0x34] sm:$0xf]
        %v1862 = vld [vmem:[#allocation16 + $0x38] sm:$0xf]
        %v1863 = vld [vmem:[#allocation16 + $0x3c] sm:$0xf]
        %v1864 = vld [vmem:[%s12] sm:$0x1]
        %v1866 = vperm.slane %v1864, 0
        %v1884 = vunpack.c.l.b16 %v1848
        %v1885 = vunpack.c.l.b16 %v1849
        %v1886 = vunpack.c.l.b16 %v1850
        %v1887 = vunpack.c.l.b16 %v1851
        %v1888 = vunpack.c.l.b16 %v1852
        %v1889 = vunpack.c.l.b16 %v1853
        %v1890 = vunpack.c.l.b16 %v1854
        %v1891 = vunpack.c.l.b16 %v1855
        %v1892 = vunpack.c.l.b16 %v1856
        %v1893 = vunpack.c.l.b16 %v1857
        %v1894 = vunpack.c.l.b16 %v1858
        %v1895 = vunpack.c.l.b16 %v1859
        %v1896 = vunpack.c.l.b16 %v1860
        %v1897 = vunpack.c.l.b16 %v1861
        %v1898 = vunpack.c.l.b16 %v1862
        %v1899 = vunpack.c.l.b16 %v1863
        %v1900 = vpack.c.b16 %v1885, %v1884
        %v1901 = vpack.c.b16 %v1887, %v1886
        %v1902 = vpack.c.b16 %v1889, %v1888
        %v1903 = vpack.c.b16 %v1891, %v1890
        %v1904 = vpack.c.b16 %v1893, %v1892
        %v1905 = vpack.c.b16 %v1895, %v1894
        %v1906 = vpack.c.b16 %v1897, %v1896
        %v1907 = vpack.c.b16 %v1899, %v1898
        %1916 = vmatpush.bf16.msra.mxu0 %v1907
        %1917 = vmatpush.bf16.msra.mxu0 %v1906
        %1918 = vmatpush.bf16.msra.mxu0 %v1905
        %1919 = vmatpush.bf16.msra.mxu0 %v1904
        %1920 = vmatpush.bf16.msra.mxu0 %v1903
        %1921 = vmatpush.bf16.msra.mxu0 %v1902
        %1922 = vmatpush.bf16.msra.mxu0 %v1901
        %1923 = vmatpush.bf16.msra.mxu0 %v1900
        %1924 = vmatmul.bf16.gmra.mxu0 %v1847
        %v1925 = vpop.f32.mrf.mxu0
        %v1926 = vadd.f32 %v1866, %v1925
        %v1927 = vpop.f32.mrf.mxu0
        %v1928 = vadd.f32 %v1866, %v1927
        %1929 = vdwg.mxu0
        %v1930 = vpack.c.bf16 %v964, %v964
        %v1931 = vld [vmem:[#allocation17] sm:$0xff]
        %v1932 = vld [vmem:[#allocation17 + $0x8] sm:$0xff]
        %v1933 = vld [vmem:[#allocation17 + $0x10] sm:$0xff]
        %v1934 = vld [vmem:[#allocation17 + $0x18] sm:$0xff]
        %v1935 = vld [vmem:[#allocation17 + $0x20] sm:$0xff]
        %v1936 = vld [vmem:[#allocation17 + $0x28] sm:$0xff]
        %v1937 = vld [vmem:[#allocation17 + $0x30] sm:$0xff]
        %v1938 = vld [vmem:[#allocation17 + $0x38] sm:$0xff]
        %v1939 = vld [vmem:[#allocation17 + $0x40] sm:$0xff]
        %v1940 = vld [vmem:[#allocation17 + $0x48] sm:$0xff]
        %v1941 = vld [vmem:[#allocation17 + $0x50] sm:$0xff]
        %v1942 = vld [vmem:[#allocation17 + $0x58] sm:$0xff]
        %v1943 = vld [vmem:[#allocation17 + $0x60] sm:$0xff]
        %v1944 = vld [vmem:[#allocation17 + $0x68] sm:$0xff]
        %v1945 = vld [vmem:[#allocation17 + $0x70] sm:$0xff]
        %v1946 = vld [vmem:[#allocation17 + $0x78] sm:$0xff]
        %v1947 = vld [vmem:[%s14] sm:$0x3]
        %v1949 = vperm.slane %v1947, 0
        %v1950 = vperm.slane %v1947, 1
        %v1969 = vunpack.c.l.b16 %v1931
        %v1970 = vunpack.c.h.b16 %v1931
        %v1971 = vunpack.c.l.b16 %v1932
        %v1972 = vunpack.c.h.b16 %v1932
        %v1973 = vunpack.c.l.b16 %v1933
        %v1974 = vunpack.c.h.b16 %v1933
        %v1975 = vunpack.c.l.b16 %v1934
        %v1976 = vunpack.c.h.b16 %v1934
        %v1977 = vunpack.c.l.b16 %v1935
        %v1978 = vunpack.c.h.b16 %v1935
        %v1979 = vunpack.c.l.b16 %v1936
        %v1980 = vunpack.c.h.b16 %v1936
        %v1981 = vunpack.c.l.b16 %v1937
        %v1982 = vunpack.c.h.b16 %v1937
        %v1983 = vunpack.c.l.b16 %v1938
        %v1984 = vunpack.c.h.b16 %v1938
        %v1985 = vunpack.c.l.b16 %v1939
        %v1986 = vunpack.c.h.b16 %v1939
        %v1987 = vunpack.c.l.b16 %v1940
        %v1988 = vunpack.c.h.b16 %v1940
        %v1989 = vunpack.c.l.b16 %v1941
        %v1990 = vunpack.c.h.b16 %v1941
        %v1991 = vunpack.c.l.b16 %v1942
        %v1992 = vunpack.c.h.b16 %v1942
        %v1993 = vunpack.c.l.b16 %v1943
        %v1994 = vunpack.c.h.b16 %v1943
        %v1995 = vunpack.c.l.b16 %v1944
        %v1996 = vunpack.c.h.b16 %v1944
        %v1997 = vunpack.c.l.b16 %v1945
        %v1998 = vunpack.c.h.b16 %v1945
        %v1999 = vunpack.c.l.b16 %v1946
        %v2000 = vunpack.c.h.b16 %v1946
        %v2001 = vpack.c.b16 %v1971, %v1969
        %v2002 = vpack.c.b16 %v1972, %v1970
        %v2003 = vpack.c.b16 %v1975, %v1973
        %v2004 = vpack.c.b16 %v1976, %v1974
        %v2005 = vpack.c.b16 %v1979, %v1977
        %v2006 = vpack.c.b16 %v1980, %v1978
        %v2007 = vpack.c.b16 %v1983, %v1981
        %v2008 = vpack.c.b16 %v1984, %v1982
        %v2009 = vpack.c.b16 %v1987, %v1985
        %v2010 = vpack.c.b16 %v1988, %v1986
        %v2011 = vpack.c.b16 %v1991, %v1989
        %v2012 = vpack.c.b16 %v1992, %v1990
        %v2013 = vpack.c.b16 %v1995, %v1993
        %v2014 = vpack.c.b16 %v1996, %v1994
        %v2015 = vpack.c.b16 %v1999, %v1997
        %v2016 = vpack.c.b16 %v2000, %v1998
        %2033 = vmatpush.bf16.msra.mxu0 %v2015
        %2034 = vmatpush.bf16.msra.mxu0 %v2013
        %2035 = vmatpush.bf16.msra.mxu0 %v2011
        %2036 = vmatpush.bf16.msra.mxu0 %v2009
        %2037 = vmatpush.bf16.msra.mxu0 %v2007
        %2038 = vmatpush.bf16.msra.mxu0 %v2005
        %2039 = vmatpush.bf16.msra.mxu0 %v2003
        %2040 = vmatpush.bf16.msra.mxu0 %v2001
        %2041 = vmatmul.bf16.gmra.mxu0 %v1930
        %v2042 = vpop.f32.mrf.mxu0
        %v2043 = vadd.f32 %v1949, %v2042
        %v2044 = vpop.f32.mrf.mxu0
        %2045 = vdwg.mxu0
        %2046 = vmatpush.bf16.msra.mxu0 %v2016
        %2047 = vmatpush.bf16.msra.mxu0 %v2014
        %2048 = vmatpush.bf16.msra.mxu0 %v2012
        %2049 = vmatpush.bf16.msra.mxu0 %v2010
        %2050 = vmatpush.bf16.msra.mxu0 %v2008
        %2051 = vmatpush.bf16.msra.mxu0 %v2006
        %2052 = vmatpush.bf16.msra.mxu0 %v2004
        %2053 = vmatpush.bf16.msra.mxu0 %v2002
        %2054 = vmatmul.bf16.gmra.mxu0 %v1930
        %v2055 = vpop.f32.mrf.mxu0
        %v2056 = vadd.f32 %v1950, %v2055
        %v2057 = vpop.f32.mrf.mxu0
        %2058 = vdwg.mxu0
        %2061 = vrot.lane.b32.xlu0 %v1926, 96
        %v2062 = vpop.permute.xlu0 %2061
        %2063 = vrot.lane.b32.xlu0 %v1928, 96
        %v2064 = vpop.permute.xlu0 %2063
        %2067 = vrot.lane.b32.xlu0 %v1926, 64
        %v2068 = vpop.permute.xlu0 %2067
        %2069 = vrot.lane.b32.xlu0 %v1928, 64
        %v2070 = vpop.permute.xlu0 %2069
        %2073 = vrot.lane.b32.xlu0 %v1926, 32
        %v2074 = vpop.permute.xlu0 %2073
        %2075 = vrot.lane.b32.xlu0 %v1928, 32
        %v2076 = vpop.permute.xlu0 %2075
        %v2079 = vpack.c.bf16 %v1926, %v1926
        %v2080 = vpack.c.bf16 %v1928, %v1928
        %v2081 = vpack.c.bf16 %v2062, %v2062
        %v2082 = vpack.c.bf16 %v2064, %v2064
        %v2083 = vpack.c.bf16 %v2068, %v2068
        %v2084 = vpack.c.bf16 %v2070, %v2070
        %v2085 = vpack.c.bf16 %v2074, %v2074
        %v2086 = vpack.c.bf16 %v2076, %v2076
        %2088 = vrot.lane.b32.xlu0 %v2043, 96
        %v2089 = vpop.permute.xlu0 %2088
        %2091 = vrot.lane.b32.xlu0 %v2043, 64
        %v2092 = vpop.permute.xlu0 %2091
        %2094 = vrot.lane.b32.xlu0 %v2043, 32
        %v2095 = vpop.permute.xlu0 %2094
        %v2097 = vpack.c.bf16 %v2043, %v2043
        %v2098 = vpack.c.bf16 %v2089, %v2089
        %v2099 = vpack.c.bf16 %v2092, %v2092
        %v2100 = vpack.c.bf16 %v2095, %v2095
        %2102 = vrot.lane.b32.xlu0 %v2056, 96
        %v2103 = vpop.permute.xlu0 %2102
        %2105 = vrot.lane.b32.xlu0 %v2056, 64
        %v2106 = vpop.permute.xlu0 %2105
        %2108 = vrot.lane.b32.xlu0 %v2056, 32
        %v2109 = vpop.permute.xlu0 %2108
        %v2111 = vpack.c.bf16 %v2056, %v2056
        %v2112 = vpack.c.bf16 %v2103, %v2103
        %v2113 = vpack.c.bf16 %v2106, %v2106
        %v2114 = vpack.c.bf16 %v2109, %v2109
        %v2117 = vunpack.c.l.b16 %v2079
        %v2118 = vunpack.c.l.b16 %v2080
        %v2119 = vpack.c.b16 %v2118, %v2117
        %v2121 = vsel %vm1338, %v2119, 0
        %v2124 = vsel %vm1338, %v2097, 0
        %2126 = vmatpush.bf16.xpose.msra.mxu0 0
        %2127 = vmatpush.bf16.xpose.msra.mxu0 0
        %2128 = vmatpush.bf16.xpose.msra.mxu0 0
        %2129 = vmatpush.bf16.xpose.msra.mxu0 0
        %2130 = vmatpush.bf16.xpose.msra.mxu0 0
        %2131 = vmatpush.bf16.xpose.msra.mxu0 0
        %2132 = vmatpush.bf16.xpose.msra.mxu0 0
        %2133 = vmatpush.bf16.xpose.msra.mxu0 %v2124
        %2134 = vmatmul.bf16.gmra.mxu0 %v2121
        %v2135 = vpop.f32.mrf.mxu0
        %v2136 = vadd.f32 0.0, %v2135
        %v2137 = vpop.f32.mrf.mxu0
        %v2138 = vadd.f32 0.0, %v2137
        %2139 = vdwg.mxu0
        %v2142 = vunpack.c.l.b16 %v2081
        %v2143 = vunpack.c.l.b16 %v2082
        %v2144 = vpack.c.b16 %v2143, %v2142
        %v2146 = vsel %vm1338, %v2144, 0
        %v2149 = vsel %vm1338, %v2098, 0
        %2151 = vmatpush.bf16.xpose.msra.mxu0 0
        %2152 = vmatpush.bf16.xpose.msra.mxu0 0
        %2153 = vmatpush.bf16.xpose.msra.mxu0 0
        %2154 = vmatpush.bf16.xpose.msra.mxu0 0
        %2155 = vmatpush.bf16.xpose.msra.mxu0 0
        %2156 = vmatpush.bf16.xpose.msra.mxu0 0
        %2157 = vmatpush.bf16.xpose.msra.mxu0 0
        %2158 = vmatpush.bf16.xpose.msra.mxu0 %v2149
        %2159 = vmatmul.bf16.gmra.mxu0 %v2146
        %v2160 = vpop.f32.mrf.mxu0
        %v2161 = vadd.f32 0.0, %v2160
        %v2162 = vpop.f32.mrf.mxu0
        %v2163 = vadd.f32 0.0, %v2162
        %2164 = vdwg.mxu0
        %v2167 = vunpack.c.l.b16 %v2083
        %v2168 = vunpack.c.l.b16 %v2084
        %v2169 = vpack.c.b16 %v2168, %v2167
        %v2171 = vsel %vm1338, %v2169, 0
        %v2174 = vsel %vm1338, %v2099, 0
        %2176 = vmatpush.bf16.xpose.msra.mxu0 0
        %2177 = vmatpush.bf16.xpose.msra.mxu0 0
        %2178 = vmatpush.bf16.xpose.msra.mxu0 0
        %2179 = vmatpush.bf16.xpose.msra.mxu0 0
        %2180 = vmatpush.bf16.xpose.msra.mxu0 0
        %2181 = vmatpush.bf16.xpose.msra.mxu0 0
        %2182 = vmatpush.bf16.xpose.msra.mxu0 0
        %2183 = vmatpush.bf16.xpose.msra.mxu0 %v2174
        %2184 = vmatmul.bf16.gmra.mxu0 %v2171
        %v2185 = vpop.f32.mrf.mxu0
        %v2186 = vadd.f32 0.0, %v2185
        %v2187 = vpop.f32.mrf.mxu0
        %v2188 = vadd.f32 0.0, %v2187
        %2189 = vdwg.mxu0
        %v2192 = vunpack.c.l.b16 %v2085
        %v2193 = vunpack.c.l.b16 %v2086
        %v2194 = vpack.c.b16 %v2193, %v2192
        %v2196 = vsel %vm1338, %v2194, 0
        %v2199 = vsel %vm1338, %v2100, 0
        %2201 = vmatpush.bf16.xpose.msra.mxu0 0
        %2202 = vmatpush.bf16.xpose.msra.mxu0 0
        %2203 = vmatpush.bf16.xpose.msra.mxu0 0
        %2204 = vmatpush.bf16.xpose.msra.mxu0 0
        %2205 = vmatpush.bf16.xpose.msra.mxu0 0
        %2206 = vmatpush.bf16.xpose.msra.mxu0 0
        %2207 = vmatpush.bf16.xpose.msra.mxu0 0
        %2208 = vmatpush.bf16.xpose.msra.mxu0 %v2199
        %2209 = vmatmul.bf16.gmra.mxu0 %v2196
        %v2210 = vpop.f32.mrf.mxu0
        %v2211 = vadd.f32 0.0, %v2210
        %v2212 = vpop.f32.mrf.mxu0
        %v2213 = vadd.f32 0.0, %v2212
        %2214 = vdwg.mxu0
        %v2215 = vmul.f32 %v2136, 0.17677669
        %v2216 = vmul.f32 %v2138, 0.17677669
        %v2217 = vmul.f32 %v2161, 0.17677669
        %v2218 = vmul.f32 %v2163, 0.17677669
        %v2219 = vmul.f32 %v2186, 0.17677669
        %v2220 = vmul.f32 %v2188, 0.17677669
        %v2221 = vmul.f32 %v2211, 0.17677669
        %v2222 = vmul.f32 %v2213, 0.17677669
        %v2223 = vsel %vm966, 1, 0
        %v2224 = vperm.slane %v2223, 0
        %vm2225 = vcmp.eq.s32.totalorder %v2224, 1
        %v2226 = vsel %vm2225, %v2215, -1e+09
        %v2227 = vsel %vm2225, %v2216, -1e+09
        %v2228 = vsel %vm2225, %v2217, -1e+09
        %v2229 = vsel %vm2225, %v2218, -1e+09
        %v2230 = vsel %vm2225, %v2219, -1e+09
        %v2231 = vsel %vm2225, %v2220, -1e+09
        %v2232 = vsel %vm2225, %v2221, -1e+09
        %v2233 = vsel %vm2225, %v2222, -1e+09
        %vm2234 = vcmask 64512
        %v2235 = vsel %vm2234, %v2226, -inf
        %2236 = vmax.xlane.f32.xlu0 %v2235
        %v2237 = vpop.xlane.xlu0 %2236
        %v2238 = vsel %vm2234, %v2227, -inf
        %2239 = vmax.xlane.f32.xlu0 %v2238
        %v2240 = vpop.xlane.xlu0 %2239
        %v2241 = vsel %vm2234, %v2228, -inf
        %2242 = vmax.xlane.f32.xlu0 %v2241
        %v2243 = vpop.xlane.xlu0 %2242
        %v2244 = vsel %vm2234, %v2229, -inf
        %2245 = vmax.xlane.f32.xlu0 %v2244
        %v2246 = vpop.xlane.xlu0 %2245
        %v2247 = vsel %vm2234, %v2230, -inf
        %2248 = vmax.xlane.f32.xlu0 %v2247
        %v2249 = vpop.xlane.xlu0 %2248
        %v2250 = vsel %vm2234, %v2231, -inf
        %2251 = vmax.xlane.f32.xlu0 %v2250
        %v2252 = vpop.xlane.xlu0 %2251
        %v2253 = vsel %vm2234, %v2232, -inf
        %2254 = vmax.xlane.f32.xlu0 %v2253
        %v2255 = vpop.xlane.xlu0 %2254
        %v2256 = vsel %vm2234, %v2233, -inf
        %2257 = vmax.xlane.f32.xlu0 %v2256
        %v2258 = vpop.xlane.xlu0 %2257
        %v2259 = vsub.f32 %v2226, %v2237
        %v2260 = vsub.f32 %v2227, %v2240
        %v2261 = vsub.f32 %v2228, %v2243
        %v2262 = vsub.f32 %v2229, %v2246
        %v2263 = vsub.f32 %v2230, %v2249
        %v2264 = vsub.f32 %v2231, %v2252
        %v2265 = vsub.f32 %v2232, %v2255
        %v2266 = vsub.f32 %v2233, %v2258
        %v2267 = vmul.f32 %v2259, 1.442695
        %v2268 = vpow.pop %v2267
        %v2269 = vmul.f32 %v2260, 1.442695
        %v2270 = vpow.pop %v2269
        %v2271 = vmul.f32 %v2261, 1.442695
        %v2272 = vpow.pop %v2271
        %v2273 = vmul.f32 %v2262, 1.442695
        %v2274 = vpow.pop %v2273
        %v2275 = vmul.f32 %v2263, 1.442695
        %v2276 = vpow.pop %v2275
        %v2277 = vmul.f32 %v2264, 1.442695
        %v2278 = vpow.pop %v2277
        %v2279 = vmul.f32 %v2265, 1.442695
        %v2280 = vpow.pop %v2279
        %v2281 = vmul.f32 %v2266, 1.442695
        %v2282 = vpow.pop %v2281
        %v2283 = vsel %vm2234, %v2268, 0.0
        %2284 = vadd.xlane.f32.xlu0 %v2283
        %v2285 = vpop.xlane.xlu0 %2284
        %v2286 = vsel %vm2234, %v2270, 0.0
        %2287 = vadd.xlane.f32.xlu0 %v2286
        %v2288 = vpop.xlane.xlu0 %2287
        %v2289 = vsel %vm2234, %v2272, 0.0
        %2290 = vadd.xlane.f32.xlu0 %v2289
        %v2291 = vpop.xlane.xlu0 %2290
        %v2292 = vsel %vm2234, %v2274, 0.0
        %2293 = vadd.xlane.f32.xlu0 %v2292
        %v2294 = vpop.xlane.xlu0 %2293
        %v2295 = vsel %vm2234, %v2276, 0.0
        %2296 = vadd.xlane.f32.xlu0 %v2295
        %v2297 = vpop.xlane.xlu0 %2296
        %v2298 = vsel %vm2234, %v2278, 0.0
        %2299 = vadd.xlane.f32.xlu0 %v2298
        %v2300 = vpop.xlane.xlu0 %2299
        %v2301 = vsel %vm2234, %v2280, 0.0
        %2302 = vadd.xlane.f32.xlu0 %v2301
        %v2303 = vpop.xlane.xlu0 %2302
        %v2304 = vsel %vm2234, %v2282, 0.0
        %2305 = vadd.xlane.f32.xlu0 %v2304
        %v2306 = vpop.xlane.xlu0 %2305
        %v2307 = vrcp.pop %v2285
        %v2308 = vrcp.pop %v2288
        %v2309 = vrcp.pop %v2291
        %v2310 = vrcp.pop %v2294
        %v2311 = vrcp.pop %v2297
        %v2312 = vrcp.pop %v2300
        %v2313 = vrcp.pop %v2303
        %v2314 = vrcp.pop %v2306
        %v2315 = vmul.f32 %v2268, %v2307
        %v2316 = vmul.f32 %v2270, %v2308
        %v2317 = vmul.f32 %v2272, %v2309
        %v2318 = vmul.f32 %v2274, %v2310
        %v2319 = vmul.f32 %v2276, %v2311
        %v2320 = vmul.f32 %v2278, %v2312
        %v2321 = vmul.f32 %v2280, %v2313
        %v2322 = vmul.f32 %v2282, %v2314
        %v2323 = vpack.c.bf16 %v2315, %v2315
        %v2324 = vpack.c.bf16 %v2316, %v2316
        %v2325 = vpack.c.bf16 %v2317, %v2317
        %v2326 = vpack.c.bf16 %v2318, %v2318
        %v2327 = vpack.c.bf16 %v2319, %v2319
        %v2328 = vpack.c.bf16 %v2320, %v2320
        %v2329 = vpack.c.bf16 %v2321, %v2321
        %v2330 = vpack.c.bf16 %v2322, %v2322
        %v2333 = vunpack.c.l.b16 %v2323
        %v2334 = vunpack.c.l.b16 %v2324
        %v2335 = vpack.c.b16 %v2334, %v2333
        %v2337 = vsel %vm2234, %v2335, 0
        %vm2339 = vcmask 1043456
        %v2341 = vsel %vm2339, %v2111, 0
        %2343 = vmatpush.bf16.msra.mxu0 0
        %2344 = vmatpush.bf16.msra.mxu0 0
        %2345 = vmatpush.bf16.msra.mxu0 0
        %2346 = vmatpush.bf16.msra.mxu0 0
        %2347 = vmatpush.bf16.msra.mxu0 0
        %2348 = vmatpush.bf16.msra.mxu0 0
        %2349 = vmatpush.bf16.msra.mxu0 0
        %2350 = vmatpush.bf16.msra.mxu0 %v2341
        %2351 = vmatmul.bf16.gmra.mxu0 %v2337
        %v2352 = vpop.f32.mrf.mxu0
        %v2353 = vadd.f32 0.0, %v2352
        %v2354 = vpop.f32.mrf.mxu0
        %v2355 = vadd.f32 0.0, %v2354
        %2356 = vdwg.mxu0
        %v2359 = vunpack.c.l.b16 %v2325
        %v2360 = vunpack.c.l.b16 %v2326
        %v2361 = vpack.c.b16 %v2360, %v2359
        %v2363 = vsel %vm2234, %v2361, 0
        %v2366 = vsel %vm2339, %v2112, 0
        %2368 = vmatpush.bf16.msra.mxu0 0
        %2369 = vmatpush.bf16.msra.mxu0 0
        %2370 = vmatpush.bf16.msra.mxu0 0
        %2371 = vmatpush.bf16.msra.mxu0 0
        %2372 = vmatpush.bf16.msra.mxu0 0
        %2373 = vmatpush.bf16.msra.mxu0 0
        %2374 = vmatpush.bf16.msra.mxu0 0
        %2375 = vmatpush.bf16.msra.mxu0 %v2366
        %2376 = vmatmul.bf16.gmra.mxu0 %v2363
        %v2377 = vpop.f32.mrf.mxu0
        %v2378 = vadd.f32 0.0, %v2377
        %v2379 = vpop.f32.mrf.mxu0
        %v2380 = vadd.f32 0.0, %v2379
        %2381 = vdwg.mxu0
        %v2384 = vunpack.c.l.b16 %v2327
        %v2385 = vunpack.c.l.b16 %v2328
        %v2386 = vpack.c.b16 %v2385, %v2384
        %v2388 = vsel %vm2234, %v2386, 0
        %v2391 = vsel %vm2339, %v2113, 0
        %2393 = vmatpush.bf16.msra.mxu0 0
        %2394 = vmatpush.bf16.msra.mxu0 0
        %2395 = vmatpush.bf16.msra.mxu0 0
        %2396 = vmatpush.bf16.msra.mxu0 0
        %2397 = vmatpush.bf16.msra.mxu0 0
        %2398 = vmatpush.bf16.msra.mxu0 0
        %2399 = vmatpush.bf16.msra.mxu0 0
        %2400 = vmatpush.bf16.msra.mxu0 %v2391
        %2401 = vmatmul.bf16.gmra.mxu0 %v2388
        %v2402 = vpop.f32.mrf.mxu0
        %v2403 = vadd.f32 0.0, %v2402
        %v2404 = vpop.f32.mrf.mxu0
        %v2405 = vadd.f32 0.0, %v2404
        %2406 = vdwg.mxu0
        %v2409 = vunpack.c.l.b16 %v2329
        %v2410 = vunpack.c.l.b16 %v2330
        %v2411 = vpack.c.b16 %v2410, %v2409
        %v2413 = vsel %vm2234, %v2411, 0
        %v2416 = vsel %vm2339, %v2114, 0
        %2418 = vmatpush.bf16.msra.mxu0 0
        %2419 = vmatpush.bf16.msra.mxu0 0
        %2420 = vmatpush.bf16.msra.mxu0 0
        %2421 = vmatpush.bf16.msra.mxu0 0
        %2422 = vmatpush.bf16.msra.mxu0 0
        %2423 = vmatpush.bf16.msra.mxu0 0
        %2424 = vmatpush.bf16.msra.mxu0 0
        %2425 = vmatpush.bf16.msra.mxu0 %v2416
        %2426 = vmatmul.bf16.gmra.mxu0 %v2413
        %v2427 = vpop.f32.mrf.mxu0
        %v2428 = vadd.f32 0.0, %v2427
        %v2429 = vpop.f32.mrf.mxu0
        %v2430 = vadd.f32 0.0, %v2429
        %2431 = vdwg.mxu0
        %2434 = vrot.lane.b32.xlu0 %v2378, 32
        %v2435 = vpop.permute.xlu0 %2434
        %2436 = vrot.lane.b32.xlu0 %v2380, 32
        %v2437 = vpop.permute.xlu0 %2436
        %2442 = vrot.lane.b32.xlu0 %v2403, 64
        %v2443 = vpop.permute.xlu0 %2442
        %2444 = vrot.lane.b32.xlu0 %v2405, 64
        %v2445 = vpop.permute.xlu0 %2444
        %2450 = vrot.lane.b32.xlu0 %v2428, 96
        %v2451 = vpop.permute.xlu0 %2450
        %2452 = vrot.lane.b32.xlu0 %v2430, 96
        %v2453 = vpop.permute.xlu0 %2452
        %v2456 = vsel %vm1338, %v2353, %v2435
        %v2457 = vsel %vm1338, %v2355, %v2437
        %v2458 = vsel %vm1704, %v2456, %v2443
        %v2459 = vsel %vm1704, %v2457, %v2445
        %v2460 = vsel %vm1707, %v2458, %v2451
        %v2461 = vsel %vm1707, %v2459, %v2453
        %v2462 = vpack.c.bf16 %v2461, %v2460
        %v2463 = vld [vmem:[#allocation19] sm:$0xf]
        %v2464 = vld [vmem:[#allocation19 + $0x4] sm:$0xf]
        %v2465 = vld [vmem:[#allocation19 + $0x8] sm:$0xf]
        %v2466 = vld [vmem:[#allocation19 + $0xc] sm:$0xf]
        %v2467 = vld [vmem:[#allocation19 + $0x10] sm:$0xf]
        %v2468 = vld [vmem:[#allocation19 + $0x14] sm:$0xf]
        %v2469 = vld [vmem:[#allocation19 + $0x18] sm:$0xf]
        %v2470 = vld [vmem:[#allocation19 + $0x1c] sm:$0xf]
        %v2471 = vld [vmem:[#allocation19 + $0x20] sm:$0xf]
        %v2472 = vld [vmem:[#allocation19 + $0x24] sm:$0xf]
        %v2473 = vld [vmem:[#allocation19 + $0x28] sm:$0xf]
        %v2474 = vld [vmem:[#allocation19 + $0x2c] sm:$0xf]
        %v2475 = vld [vmem:[#allocation19 + $0x30] sm:$0xf]
        %v2476 = vld [vmem:[#allocation19 + $0x34] sm:$0xf]
        %v2477 = vld [vmem:[#allocation19 + $0x38] sm:$0xf]
        %v2478 = vld [vmem:[#allocation19 + $0x3c] sm:$0xf]
        %v2479 = vld [vmem:[%s16] sm:$0x1]
        %v2481 = vperm.slane %v2479, 0
        %v2499 = vunpack.c.l.b16 %v2463
        %v2500 = vunpack.c.l.b16 %v2464
        %v2501 = vunpack.c.l.b16 %v2465
        %v2502 = vunpack.c.l.b16 %v2466
        %v2503 = vunpack.c.l.b16 %v2467
        %v2504 = vunpack.c.l.b16 %v2468
        %v2505 = vunpack.c.l.b16 %v2469
        %v2506 = vunpack.c.l.b16 %v2470
        %v2507 = vunpack.c.l.b16 %v2471
        %v2508 = vunpack.c.l.b16 %v2472
        %v2509 = vunpack.c.l.b16 %v2473
        %v2510 = vunpack.c.l.b16 %v2474
        %v2511 = vunpack.c.l.b16 %v2475
        %v2512 = vunpack.c.l.b16 %v2476
        %v2513 = vunpack.c.l.b16 %v2477
        %v2514 = vunpack.c.l.b16 %v2478
        %v2515 = vpack.c.b16 %v2500, %v2499
        %v2516 = vpack.c.b16 %v2502, %v2501
        %v2517 = vpack.c.b16 %v2504, %v2503
        %v2518 = vpack.c.b16 %v2506, %v2505
        %v2519 = vpack.c.b16 %v2508, %v2507
        %v2520 = vpack.c.b16 %v2510, %v2509
        %v2521 = vpack.c.b16 %v2512, %v2511
        %v2522 = vpack.c.b16 %v2514, %v2513
        %2531 = vmatpush.bf16.msra.mxu0 %v2522
        %2532 = vmatpush.bf16.msra.mxu0 %v2521
        %2533 = vmatpush.bf16.msra.mxu0 %v2520
        %2534 = vmatpush.bf16.msra.mxu0 %v2519
        %2535 = vmatpush.bf16.msra.mxu0 %v2518
        %2536 = vmatpush.bf16.msra.mxu0 %v2517
        %2537 = vmatpush.bf16.msra.mxu0 %v2516
        %2538 = vmatpush.bf16.msra.mxu0 %v2515
        %2539 = vmatmul.bf16.gmra.mxu0 %v2462
        %v2540 = vpop.f32.mrf.mxu0
        %v2541 = vadd.f32 %v2481, %v2540
        %v2542 = vpop.f32.mrf.mxu0
        %v2543 = vadd.f32 %v2481, %v2542
        %2544 = vdwg.mxu0
        %v2545 = vadd.f32 %v1793, %v2541
        %v2546 = vadd.f32 %v1794, %v2543
        %v2547 = vld [vmem:[%s17] sm:$0x1]
        %v2548 = vld [vmem:[%s18] sm:$0x1]
        %2549 = vadd.xlane.f32.xlu0 %v2545
        %v2550 = vpop.xlane.xlu0 %2549
        %2551 = vadd.xlane.f32.xlu0 %v2546
        %v2552 = vpop.xlane.xlu0 %2551
        %v2553 = vmul.f32 %v2550, %v979
        %v2554 = vmul.f32 %v2552, %v979
        %v2555 = vsub.f32 %v2545, %v2553
        %v2556 = vsub.f32 %v2546, %v2554
        %v2557 = vmul.f32 %v2555, %v2555
        %v2558 = vmul.f32 %v2556, %v2556
        %2559 = vadd.xlane.f32.xlu0 %v2557
        %v2560 = vpop.xlane.xlu0 %2559
        %2561 = vadd.xlane.f32.xlu0 %v2558
        %v2562 = vpop.xlane.xlu0 %2561
        %v2563 = vmul.f32 %v2560, %v979
        %v2564 = vmul.f32 %v2562, %v979
        %v2565 = vadd.f32 %v2563, 1e-06
        %v2566 = vadd.f32 %v2564, 1e-06
        %v2567 = vrsqrt.pop %v2565
        %v2568 = vmul.f32 %v2567, %v2565
        %v2569 = vmul.f32 %v2568, %v2567
        %v2570 = vmul.f32 0.5, %v2569
        %v2571 = vsub.f32 1.5, %v2570
        %v2572 = vmul.f32 %v2567, %v2571
        %vm2573 = vweird.f32 %v2565
        %vm2574 = vweird.f32 %v2567
        %vm2575 = vmor %vm2573, %vm2574
        %v2576 = vsel %vm2575, %v2567, %v2572
        %v2577 = vrsqrt.pop %v2566
        %v2578 = vmul.f32 %v2577, %v2566
        %v2579 = vmul.f32 %v2578, %v2577
        %v2580 = vmul.f32 0.5, %v2579
        %v2581 = vsub.f32 1.5, %v2580
        %v2582 = vmul.f32 %v2577, %v2581
        %vm2583 = vweird.f32 %v2566
        %vm2584 = vweird.f32 %v2577
        %vm2585 = vmor %vm2583, %vm2584
        %v2586 = vsel %vm2585, %v2577, %v2582
        %v2587 = vmul.f32 %v2555, %v2576
        %v2588 = vmul.f32 %v2556, %v2586
        %v2590 = vperm.slane %v2547, 0
        %v2592 = vmul.f32 %v2587, %v2590
        %v2593 = vmul.f32 %v2588, %v2590
        %v2595 = vperm.slane %v2548, 0
        %v2597 = vadd.f32 %v2592, %v2595
        %v2598 = vadd.f32 %v2593, %v2595
        %v2599 = vpack.c.bf16 %v2598, %v2597
        %v2600 = vld [vmem:[#allocation20] sm:$0xff]
        %v2601 = vld [vmem:[#allocation20 + $0x8] sm:$0xff]
        %v2602 = vld [vmem:[#allocation20 + $0x10] sm:$0xff]
        %v2603 = vld [vmem:[#allocation20 + $0x18] sm:$0xff]
        %v2604 = vld [vmem:[#allocation20 + $0x20] sm:$0xff]
        %v2605 = vld [vmem:[#allocation20 + $0x28] sm:$0xff]
        %v2606 = vld [vmem:[#allocation20 + $0x30] sm:$0xff]
        %v2607 = vld [vmem:[#allocation20 + $0x38] sm:$0xff]
        %v2608 = vld [vmem:[#allocation20 + $0x40] sm:$0xff]
        %v2609 = vld [vmem:[#allocation20 + $0x48] sm:$0xff]
        %v2610 = vld [vmem:[#allocation20 + $0x50] sm:$0xff]
        %v2611 = vld [vmem:[#allocation20 + $0x58] sm:$0xff]
        %v2612 = vld [vmem:[#allocation20 + $0x60] sm:$0xff]
        %v2613 = vld [vmem:[#allocation20 + $0x68] sm:$0xff]
        %v2614 = vld [vmem:[#allocation20 + $0x70] sm:$0xff]
        %v2615 = vld [vmem:[#allocation20 + $0x78] sm:$0xff]
        %v2616 = vld [vmem:[%s20] sm:$0x3]
        %v2618 = vperm.slane %v2616, 0
        %v2619 = vperm.slane %v2616, 1
        %v2638 = vunpack.c.l.b16 %v2600
        %v2639 = vunpack.c.h.b16 %v2600
        %v2640 = vunpack.c.l.b16 %v2601
        %v2641 = vunpack.c.h.b16 %v2601
        %v2642 = vunpack.c.l.b16 %v2602
        %v2643 = vunpack.c.h.b16 %v2602
        %v2644 = vunpack.c.l.b16 %v2603
        %v2645 = vunpack.c.h.b16 %v2603
        %v2646 = vunpack.c.l.b16 %v2604
        %v2647 = vunpack.c.h.b16 %v2604
        %v2648 = vunpack.c.l.b16 %v2605
        %v2649 = vunpack.c.h.b16 %v2605
        %v2650 = vunpack.c.l.b16 %v2606
        %v2651 = vunpack.c.h.b16 %v2606
        %v2652 = vunpack.c.l.b16 %v2607
        %v2653 = vunpack.c.h.b16 %v2607
        %v2654 = vunpack.c.l.b16 %v2608
        %v2655 = vunpack.c.h.b16 %v2608
        %v2656 = vunpack.c.l.b16 %v2609
        %v2657 = vunpack.c.h.b16 %v2609
        %v2658 = vunpack.c.l.b16 %v2610
        %v2659 = vunpack.c.h.b16 %v2610
        %v2660 = vunpack.c.l.b16 %v2611
        %v2661 = vunpack.c.h.b16 %v2611
        %v2662 = vunpack.c.l.b16 %v2612
        %v2663 = vunpack.c.h.b16 %v2612
        %v2664 = vunpack.c.l.b16 %v2613
        %v2665 = vunpack.c.h.b16 %v2613
        %v2666 = vunpack.c.l.b16 %v2614
        %v2667 = vunpack.c.h.b16 %v2614
        %v2668 = vunpack.c.l.b16 %v2615
        %v2669 = vunpack.c.h.b16 %v2615
        %v2670 = vpack.c.b16 %v2640, %v2638
        %v2671 = vpack.c.b16 %v2641, %v2639
        %v2672 = vpack.c.b16 %v2644, %v2642
        %v2673 = vpack.c.b16 %v2645, %v2643
        %v2674 = vpack.c.b16 %v2648, %v2646
        %v2675 = vpack.c.b16 %v2649, %v2647
        %v2676 = vpack.c.b16 %v2652, %v2650
        %v2677 = vpack.c.b16 %v2653, %v2651
        %v2678 = vpack.c.b16 %v2656, %v2654
        %v2679 = vpack.c.b16 %v2657, %v2655
        %v2680 = vpack.c.b16 %v2660, %v2658
        %v2681 = vpack.c.b16 %v2661, %v2659
        %v2682 = vpack.c.b16 %v2664, %v2662
        %v2683 = vpack.c.b16 %v2665, %v2663
        %v2684 = vpack.c.b16 %v2668, %v2666
        %v2685 = vpack.c.b16 %v2669, %v2667
        %2702 = vmatpush.bf16.msra.mxu0 %v2684
        %2703 = vmatpush.bf16.msra.mxu0 %v2682
        %2704 = vmatpush.bf16.msra.mxu0 %v2680
        %2705 = vmatpush.bf16.msra.mxu0 %v2678
        %2706 = vmatpush.bf16.msra.mxu0 %v2676
        %2707 = vmatpush.bf16.msra.mxu0 %v2674
        %2708 = vmatpush.bf16.msra.mxu0 %v2672
        %2709 = vmatpush.bf16.msra.mxu0 %v2670
        %2710 = vmatmul.bf16.gmra.mxu0 %v2599
        %v2711 = vpop.f32.mrf.mxu0
        %v2712 = vadd.f32 %v2618, %v2711
        %v2713 = vpop.f32.mrf.mxu0
        %v2714 = vadd.f32 %v2618, %v2713
        %2715 = vdwg.mxu0
        %2716 = vmatpush.bf16.msra.mxu0 %v2685
        %2717 = vmatpush.bf16.msra.mxu0 %v2683
        %2718 = vmatpush.bf16.msra.mxu0 %v2681
        %2719 = vmatpush.bf16.msra.mxu0 %v2679
        %2720 = vmatpush.bf16.msra.mxu0 %v2677
        %2721 = vmatpush.bf16.msra.mxu0 %v2675
        %2722 = vmatpush.bf16.msra.mxu0 %v2673
        %2723 = vmatpush.bf16.msra.mxu0 %v2671
        %2724 = vmatmul.bf16.gmra.mxu0 %v2599
        %v2725 = vpop.f32.mrf.mxu0
        %v2726 = vadd.f32 %v2619, %v2725
        %v2727 = vpop.f32.mrf.mxu0
        %v2728 = vadd.f32 %v2619, %v2727
        %2729 = vdwg.mxu0
        %v2730 = vmax.f32 %v2712, 0.0
        %v2731 = vmax.f32 %v2726, 0.0
        %v2732 = vmax.f32 %v2714, 0.0
        %v2733 = vmax.f32 %v2728, 0.0
        %v2734 = vpack.c.bf16 %v2732, %v2730
        %v2735 = vpack.c.bf16 %v2733, %v2731
        %v2736 = vld [vmem:[#allocation22] sm:$0xf]
        %v2737 = vld [vmem:[#allocation22 + $0x4] sm:$0xf]
        %v2738 = vld [vmem:[#allocation22 + $0x8] sm:$0xf]
        %v2739 = vld [vmem:[#allocation22 + $0xc] sm:$0xf]
        %v2740 = vld [vmem:[#allocation22 + $0x10] sm:$0xf]
        %v2741 = vld [vmem:[#allocation22 + $0x14] sm:$0xf]
        %v2742 = vld [vmem:[#allocation22 + $0x18] sm:$0xf]
        %v2743 = vld [vmem:[#allocation22 + $0x1c] sm:$0xf]
        %v2744 = vld [vmem:[#allocation22 + $0x20] sm:$0xf]
        %v2745 = vld [vmem:[#allocation22 + $0x24] sm:$0xf]
        %v2746 = vld [vmem:[#allocation22 + $0x28] sm:$0xf]
        %v2747 = vld [vmem:[#allocation22 + $0x2c] sm:$0xf]
        %v2748 = vld [vmem:[#allocation22 + $0x30] sm:$0xf]
        %v2749 = vld [vmem:[#allocation22 + $0x34] sm:$0xf]
        %v2750 = vld [vmem:[#allocation22 + $0x38] sm:$0xf]
        %v2751 = vld [vmem:[#allocation22 + $0x3c] sm:$0xf]
        %v2752 = vld [vmem:[#allocation22 + $0x40] sm:$0xf]
        %v2753 = vld [vmem:[#allocation22 + $0x44] sm:$0xf]
        %v2754 = vld [vmem:[#allocation22 + $0x48] sm:$0xf]
        %v2755 = vld [vmem:[#allocation22 + $0x4c] sm:$0xf]
        %v2756 = vld [vmem:[#allocation22 + $0x50] sm:$0xf]
        %v2757 = vld [vmem:[#allocation22 + $0x54] sm:$0xf]
        %v2758 = vld [vmem:[#allocation22 + $0x58] sm:$0xf]
        %v2759 = vld [vmem:[#allocation22 + $0x5c] sm:$0xf]
        %v2760 = vld [vmem:[#allocation22 + $0x60] sm:$0xf]
        %v2761 = vld [vmem:[#allocation22 + $0x64] sm:$0xf]
        %v2762 = vld [vmem:[#allocation22 + $0x68] sm:$0xf]
        %v2763 = vld [vmem:[#allocation22 + $0x6c] sm:$0xf]
        %v2764 = vld [vmem:[#allocation22 + $0x70] sm:$0xf]
        %v2765 = vld [vmem:[#allocation22 + $0x74] sm:$0xf]
        %v2766 = vld [vmem:[#allocation22 + $0x78] sm:$0xf]
        %v2767 = vld [vmem:[#allocation22 + $0x7c] sm:$0xf]
        %v2768 = vld [vmem:[%s22] sm:$0x1]
        %v2770 = vperm.slane %v2768, 0
        %v2804 = vunpack.c.l.b16 %v2736
        %v2805 = vunpack.c.l.b16 %v2737
        %v2806 = vunpack.c.l.b16 %v2738
        %v2807 = vunpack.c.l.b16 %v2739
        %v2808 = vunpack.c.l.b16 %v2740
        %v2809 = vunpack.c.l.b16 %v2741
        %v2810 = vunpack.c.l.b16 %v2742
        %v2811 = vunpack.c.l.b16 %v2743
        %v2812 = vunpack.c.l.b16 %v2744
        %v2813 = vunpack.c.l.b16 %v2745
        %v2814 = vunpack.c.l.b16 %v2746
        %v2815 = vunpack.c.l.b16 %v2747
        %v2816 = vunpack.c.l.b16 %v2748
        %v2817 = vunpack.c.l.b16 %v2749
        %v2818 = vunpack.c.l.b16 %v2750
        %v2819 = vunpack.c.l.b16 %v2751
        %v2820 = vunpack.c.l.b16 %v2752
        %v2821 = vunpack.c.l.b16 %v2753
        %v2822 = vunpack.c.l.b16 %v2754
        %v2823 = vunpack.c.l.b16 %v2755
        %v2824 = vunpack.c.l.b16 %v2756
        %v2825 = vunpack.c.l.b16 %v2757
        %v2826 = vunpack.c.l.b16 %v2758
        %v2827 = vunpack.c.l.b16 %v2759
        %v2828 = vunpack.c.l.b16 %v2760
        %v2829 = vunpack.c.l.b16 %v2761
        %v2830 = vunpack.c.l.b16 %v2762
        %v2831 = vunpack.c.l.b16 %v2763
        %v2832 = vunpack.c.l.b16 %v2764
        %v2833 = vunpack.c.l.b16 %v2765
        %v2834 = vunpack.c.l.b16 %v2766
        %v2835 = vunpack.c.l.b16 %v2767
        %v2836 = vpack.c.b16 %v2805, %v2804
        %v2837 = vpack.c.b16 %v2807, %v2806
        %v2838 = vpack.c.b16 %v2809, %v2808
        %v2839 = vpack.c.b16 %v2811, %v2810
        %v2840 = vpack.c.b16 %v2813, %v2812
        %v2841 = vpack.c.b16 %v2815, %v2814
        %v2842 = vpack.c.b16 %v2817, %v2816
        %v2843 = vpack.c.b16 %v2819, %v2818
        %v2844 = vpack.c.b16 %v2821, %v2820
        %v2845 = vpack.c.b16 %v2823, %v2822
        %v2846 = vpack.c.b16 %v2825, %v2824
        %v2847 = vpack.c.b16 %v2827, %v2826
        %v2848 = vpack.c.b16 %v2829, %v2828
        %v2849 = vpack.c.b16 %v2831, %v2830
        %v2850 = vpack.c.b16 %v2833, %v2832
        %v2851 = vpack.c.b16 %v2835, %v2834
        %2868 = vmatpush.bf16.msra.mxu0 %v2843
        %2869 = vmatpush.bf16.msra.mxu0 %v2842
        %2870 = vmatpush.bf16.msra.mxu0 %v2841
        %2871 = vmatpush.bf16.msra.mxu0 %v2840
        %2872 = vmatpush.bf16.msra.mxu0 %v2839
        %2873 = vmatpush.bf16.msra.mxu0 %v2838
        %2874 = vmatpush.bf16.msra.mxu0 %v2837
        %2875 = vmatpush.bf16.msra.mxu0 %v2836
        %2876 = vmatmul.bf16.gmra.mxu0 %v2734
        %v2877 = vpop.f32.mrf.mxu0
        %v2878 = vadd.f32 %v2770, %v2877
        %v2879 = vpop.f32.mrf.mxu0
        %v2880 = vadd.f32 %v2770, %v2879
        %2881 = vdwg.mxu0
        %2882 = vmatpush.bf16.msra.mxu0 %v2851
        %2883 = vmatpush.bf16.msra.mxu0 %v2850
        %2884 = vmatpush.bf16.msra.mxu0 %v2849
        %2885 = vmatpush.bf16.msra.mxu0 %v2848
        %2886 = vmatpush.bf16.msra.mxu0 %v2847
        %2887 = vmatpush.bf16.msra.mxu0 %v2846
        %2888 = vmatpush.bf16.msra.mxu0 %v2845
        %2889 = vmatpush.bf16.msra.mxu0 %v2844
        %2890 = vmatmul.bf16.gmra.mxu0 %v2735
        %v2891 = vpop.f32.mrf.mxu0
        %v2892 = vadd.f32 %v2878, %v2891
        %v2893 = vpop.f32.mrf.mxu0
        %v2894 = vadd.f32 %v2880, %v2893
        %2895 = vdwg.mxu0
        %v2896 = vadd.f32 %v2545, %v2892
        %v2897 = vadd.f32 %v2546, %v2894
        %2898 = vst [vmem:[%s960] sm:$0xff] %v2896
        %2899 = vst [vmem:[%s960 + $0x8] sm:$0xff] %v2897
        %s2900 = sand.u32 %s554, 1
        %s2901 = scalar_lea.sflag [#allocation4], %s2900
        %s2902 = sand.u32 %s554, 1
        %s2903 = smul.addr %s2902, 16
        %s2904 = scalar_lea.vmem [#allocation23], %s2903
        // Predicated region
        $region165: #{tpu_custom_call.1} parent=111 // pred_check
          %p2905 = pneg %p564
        $region166: #{tpu_custom_call.1} parent=111 // pred_check_branch
          %2907 = sbr.rel (%p2905) target = $region168
        $region167: #{tpu_custom_call.1} parent=111 // pred_region
          %2909 = vsyncadd %s2901, 0
          %s2910 = smul.addr %s48, 2
          %s2911 = smul.addr %s2910, 8
          %s2912 = scalar_lea.hbm %s23, %s2911
          %s2913 = sshll.u32 %s2904, 4
          %s2914 = int_to_ptr.vmem [resolvable:$true] %s2913
          %s2915 = sshll.u32 %s2912, 4
          %s2916 = int_to_ptr.hbm [resolvable:$true] %s2915
          %2921 = dma.vmem_to_hbm [thread:$0]  %s2914, 256, %s2916, %s2901, 128, 128, 8
        $region168: #{tpu_custom_call.1} parent=111 // pred_fallthru
          _
      $region112: #{tpu_custom_call.1} parent=5 // pred_fallthru
        _
      %p2922 = scmp.le.s32.totalorder 2, %s43
      // Predicated region
      $region169: #{tpu_custom_call.1} parent=5 // pred_check
        %p2923 = pneg %p2922
      $region170: #{tpu_custom_call.1} parent=5 // pred_check_branch
        %2925 = sbr.rel (%p2923) target = $region172
      $region171: #{tpu_custom_call.1} parent=5 // pred_region
        %s2926 = ssub.s32 %s43, 2
        // Predicated region
        $region173: #{tpu_custom_call.1} parent=171 // pred_check
          %p2927 = pneg %p570
        $region174: #{tpu_custom_call.1} parent=171 // pred_check_branch
          %2929 = sbr.rel (%p2927) target = $region176
        $region175: #{tpu_custom_call.1} parent=171 // pred_region
          %s2930 = sand.u32 %s555, 1
          %s2931 = scalar_lea.sflag [#allocation4], %s2930
          %s2932 = sand.u32 %s555, 1
          %s2933 = smul.addr %s2932, 16
          %s2934 = scalar_lea.vmem [#allocation23], %s2933
          %2936 = dma.done %s2931, 256
        $region176: #{tpu_custom_call.1} parent=171 // pred_fallthru
          _
      $region172: #{tpu_custom_call.1} parent=5 // pred_fallthru
        _
    $region6: #{tpu_custom_call.1} parent=1 // loop_footer
      %s47 = sadd.s32 1, %s43
    $region7: #{tpu_custom_call.1} parent=1 // loop_footer_branch
      %42 = sbr.rel target = $region3
    $region8: #{tpu_custom_call.1} parent=1 // loop_exit
      _
    %2937 = vsyncpa [#allocation3], 1
    %s2938 = scalar_lea.sflag [#allocation3], 1
    %2939 = vsyncpa %s2938, 1
    %2940 = vsyncpa [#allocation6], 1
    %s2941 = scalar_lea.sflag [#allocation6], 1
    %2942 = vsyncpa %s2941, 1
    %2943 = vsyncpa [#allocation9], 1
    %2944 = vsyncpa [#allocation12], 1
    %2945 = vsyncpa [#allocation15], 1
    %2946 = vsyncpa [#allocation18], 1
    %2947 = vsyncpa [#allocation21], 1
    %2948 = vsyncpa [#allocation4], 1
    %s2949 = scalar_lea.sflag [#allocation4], 1
    %2950 = vsyncpa %s2949, 1

</llo_original>
